<compile_context>
chip_gen: v7x
topology: tpu7x:2x2x1
jax: 0.10.0
libtpu: 0.0.40
codegen_flags: <defaults>
</compile_context>

<pallas_src>
import jax
import jax.numpy as jnp
import numpy as np
from jax.experimental import pallas as pl
from jax.experimental.pallas import tpu as pltpu


# ----------------------------- helpers --------------------------------------


def _pick_batch_tile(B: int, max_bt: int = 128) -> int:
    """Sublane-aligned batch tile; prefer >=2 grid programs (v7x has 2 TCs)."""
    bpad = -(-B // 8) * 8                       # round batch up to sublane multiple
    if bpad > max_bt:
        return max_bt                           # many programs; VMEM-capped tile
    if bpad >= 16:
        # split into >=2 programs, each tile still >= 8 rows (full sublanes)
        return max(8, (-(-(bpad // 2) // 8)) * 8)
    return bpad                                 # tiny batch: one program


def _permute_gates(w, H: int):
    """Reorder PyTorch gate packing [i; f; g; o] -> [i; f; o; g] along axis 0,
    so the three sigmoid gates are one contiguous 3H slice in the kernel."""
    return jnp.concatenate([w[0 * H:2 * H], w[3 * H:4 * H], w[2 * H:3 * H]], axis=0)


# ----------------------------- kernel ---------------------------------------


def make_lstm_kernel(T: int, H: int, L: int, Bt: int, din0: int, mxu_dtype):
    def _sigmoid(z):
        # exp on the EUP; the divide becomes an approximate EUP vrcp (separate
        # VLIW slot), keeping the serial recurrence chain short.
        return pl.reciprocal(1.0 + jnp.exp(-z), approx=True)

    def kernel(*refs):
        # refs = (x, [w_ih_T, w_hh_T, bias] * L, out, xp_scratch, h_scratch)
        x_ref = refs[0]
        o_ref = refs[1 + 3 * L]                 # [T, Bt, H]   (output block)
        xp_ref = refs[2 + 3 * L]                # [T, Bt, 4H]  f32 scratch
        hb_ref = refs[3 + 3 * L]                # [T, Bt, H]   f32 scratch

        for k in range(L):
            w_ih_t = refs[1 + 3 * k][...]       # [Din_k, 4H]  bf16
            w_hh_t = refs[2 + 3 * k][...]       # [H, 4H]      bf16
            bias = refs[3 + 3 * k][...]         # [1, 4H]      f32 (b_ih + b_hh)

            din_k = din0 if k == 0 else H
            src = x_ref if k == 0 else hb_ref

            # Fused input->hidden projection for ALL timesteps of this layer:
            # one lane-dense [T*Bt, Din_k] @ [Din_k, 4H] matmul (f32 accumulate).
            inp = src[...].reshape(T * Bt, din_k).astype(mxu_dtype)
            xp = jnp.dot(inp, w_ih_t, preferred_element_type=jnp.float32) + bias
            xp_ref[...] = xp.reshape(T, Bt, 4 * H)

            dst_ref = o_ref if k == L - 1 else hb_ref

            def step(t, carry):
                h, c = carry                                      # [Bt, H] f32
                gates = xp_ref[t] + jnp.dot(
                    h.astype(mxu_dtype), w_hh_t,
                    preferred_element_type=jnp.float32)           # [Bt, 4H]
                # gate order after prep-time permutation: (i, f, o, g)
                sig = _sigmoid(gates[:, :3 * H])                  # one wide EUP pass
                i_g = sig[:, 0 * H:1 * H]
                f_g = sig[:, 1 * H:2 * H]
                o_g = sig[:, 2 * H:3 * H]
                g_g = jnp.tanh(gates[:, 3 * H:4 * H])
                c = f_g * c + i_g * g_g
                h = o_g * jnp.tanh(c)
                dst_ref[t] = h.astype(dst_ref.dtype)              # full-width vst
                return (h, c)

            h0 = jnp.zeros((Bt, H), jnp.float32)
            c0 = jnp.zeros((Bt, H), jnp.float32)
            jax.lax.fori_loop(0, T, step, (h0, c0),
                              unroll=True if T <= 16 else 4)
            # TODO(synk): nn.LSTM inter-layer dropout is train-mode only; this is
            # the inference forward, so no dropout is applied.

    return kernel


# ----------------------------- wrapper ---------------------------------------


def rnn_layer_pallas(x, params, *, max_batch_tile: int = 128):
    """x: [T, B, Din]; params: list of (w_ih [4H,Din_k], w_hh [4H,H], b_ih, b_hh)."""
    T, B, Din = x.shape
    H = params[0][1].shape[1]
    L = len(params)
    assert H % 128 == 0, "hid_size should be a multiple of 128 for lane-dense tiles"

    Bt = _pick_batch_tile(B, max_batch_tile)
    B_pad = -(-B // Bt) * Bt
    x_p = x if B_pad == B else jnp.pad(x, ((0, 0), (0, B_pad - B), (0, 0)))

    mxu_dtype = jnp.bfloat16   # MXU operands only; gate/state math stays f32

    # ---- Hoisted, grid-invariant prep (done once, outside the kernel) ----
    args = [x_p]
    in_specs = [pl.BlockSpec((T, Bt, Din), lambda b: (0, b, 0))]
    for (w_ih, w_hh, b_ih, b_hh) in params:
        w_ih_t = jnp.transpose(_permute_gates(w_ih, H)).astype(mxu_dtype)  # [Din_k,4H]
        w_hh_t = jnp.transpose(_permute_gates(w_hh, H)).astype(mxu_dtype)  # [H,4H]
        bias = _permute_gates(b_ih + b_hh, H).reshape(1, 4 * H).astype(jnp.float32)
        args += [w_ih_t, w_hh_t, bias]
        in_specs += [
            pl.BlockSpec(w_ih_t.shape, lambda b: (0, 0)),   # VMEM-resident, constant
            pl.BlockSpec(w_hh_t.shape, lambda b: (0, 0)),
            pl.BlockSpec((1, 4 * H), lambda b: (0, 0)),
        ]

    out = pl.pallas_call(
        make_lstm_kernel(T, H, L, Bt, Din, mxu_dtype),
        out_shape=jax.ShapeDtypeStruct((T, B_pad, H), x.dtype),   # time-major directly
        grid_spec=pltpu.PrefetchScalarGridSpec(
            num_scalar_prefetch=0,
            grid=(B_pad // Bt,),                                  # batch tiles
            in_specs=in_specs,
            out_specs=pl.BlockSpec((T, Bt, H), lambda b: (0, b, 0)),
            scratch_shapes=[
                pltpu.VMEM((T, Bt, 4 * H), jnp.float32),  # fused projection xp
                pltpu.VMEM((T, Bt, H), jnp.float32),      # inter-layer h buffer
            ],
        ),
        compiler_params=pltpu.CompilerParams(
            dimension_semantics=("parallel",)),                   # shard TCs
    )(*args)
    return out if B_pad == B else out[:, :B, :]


# ----------------------------- reference -------------------------------------


def rnn_layer_reference(x, params, mxu_dtype=jnp.bfloat16):
    """Pure-JAX multi-layer LSTM mirroring nn.LSTM (eval mode), with the same
    bf16 matmul operands / f32 accumulation as the kernel."""
    H = params[0][1].shape[1]
    B = x.shape[1]
    inp = x
    for (w_ih, w_hh, b_ih, b_hh) in params:
        wiT = jnp.transpose(w_ih).astype(mxu_dtype)
        whT = jnp.transpose(w_hh).astype(mxu_dtype)
        bias = (b_ih + b_hh).astype(jnp.float32)

        def step(carry, x_t):
            h, c = carry
            gates = (jnp.dot(x_t.astype(mxu_dtype), wiT,
                             preferred_element_type=jnp.float32)
                     + jnp.dot(h.astype(mxu_dtype), whT,
                               preferred_element_type=jnp.float32)
                     + bias)
            i_g = 1.0 / (1.0 + jnp.exp(-gates[:, 0 * H:1 * H]))
            f_g = 1.0 / (1.0 + jnp.exp(-gates[:, 1 * H:2 * H]))
            g_g = jnp.tanh(gates[:, 2 * H:3 * H])
            o_g = 1.0 / (1.0 + jnp.exp(-gates[:, 3 * H:4 * H]))
            c = f_g * c + i_g * g_g
            h = o_g * jnp.tanh(c)
            return (h, c), h

        h0 = jnp.zeros((B, H), jnp.float32)
        c0 = jnp.zeros((B, H), jnp.float32)
        _, outs = jax.lax.scan(step, (h0, c0), inp)
        inp = outs                                              # [T, B, H]
    return inp


# ----------------------------- test ------------------------------------------


if __name__ == "__main__":
    T, B, Din = 8, 10, 16     # seq_len, batch, in_channels (small test shapes)
    H = 128                   # hid_size (module default)
    L = 3                     # num_layers (kept small for the test)

    key = jax.random.PRNGKey(0)
    kx, key = jax.random.split(key)
    x = jax.random.normal(kx, (T, B, Din), dtype=jnp.float32)

    # PyTorch nn.LSTM init: U(-1/sqrt(H), 1/sqrt(H)) for all weights & biases.
    bound = 1.0 / np.sqrt(H)
    params = []
    for k in range(L):
        din_k = Din if k == 0 else H
        key, k1, k2, k3, k4 = jax.random.split(key, 5)
        w_ih = jax.random.uniform(k1, (4 * H, din_k), jnp.float32, -bound, bound)
        w_hh = jax.random.uniform(k2, (4 * H, H), jnp.float32, -bound, bound)
        b_ih = jax.random.uniform(k3, (4 * H,), jnp.float32, -bound, bound)
        b_hh = jax.random.uniform(k4, (4 * H,), jnp.float32, -bound, bound)
        params.append((w_ih, w_hh, b_ih, b_hh))

    out = jax.block_until_ready(rnn_layer_pallas(x, params))
    ref = jax.block_until_ready(rnn_layer_reference(x, params))

    assert out.shape == (T, B, H), out.shape
    # bf16 MXU operands + approx-reciprocal sigmoid -> loosened tolerance
    # (reference mirrors the bf16 matmuls, so the residual is small).
    np.testing.assert_allclose(np.asarray(out), np.asarray(ref),
                               rtol=2e-2, atol=2e-2)
    print("KERNEL_OK")
</pallas_src>

<mosaic_0001>
module attributes {stable_mosaic.version = 11 : i64} {
  func.func @kernel(%arg0: i32, %arg1: memref<8x8x16xf32, #tpu.memory_space<vmem>>, %arg2: memref<16x512xbf16, #tpu.memory_space<vmem>>, %arg3: memref<128x512xbf16, #tpu.memory_space<vmem>>, %arg4: memref<1x512xf32, #tpu.memory_space<vmem>>, %arg5: memref<128x512xbf16, #tpu.memory_space<vmem>>, %arg6: memref<128x512xbf16, #tpu.memory_space<vmem>>, %arg7: memref<1x512xf32, #tpu.memory_space<vmem>>, %arg8: memref<128x512xbf16, #tpu.memory_space<vmem>>, %arg9: memref<128x512xbf16, #tpu.memory_space<vmem>>, %arg10: memref<1x512xf32, #tpu.memory_space<vmem>>, %arg11: memref<8x8x128xf32, #tpu.memory_space<vmem>>, %arg12: memref<8x8x512xf32, #tpu.memory_space<vmem>>, %arg13: memref<8x8x128xf32, #tpu.memory_space<vmem>>) attributes {dimension_semantics = [#tpu.dimension_semantics<parallel>], iteration_bounds = array<i64: 2>, scalar_prefetch = 0 : i64, scratch_operands = 2 : i64, tpu.core_type = #tpu.core_type<tc>, window_params = [{transform_indices = @transform_0, window_bounds = array<i64: 8, 8, 16>}, {pipeline_mode = #tpu.pipeline_mode<synchronous>, transform_indices = @transform_1, window_bounds = array<i64: 16, 512>}, {pipeline_mode = #tpu.pipeline_mode<synchronous>, transform_indices = @transform_2, window_bounds = array<i64: 128, 512>}, {pipeline_mode = #tpu.pipeline_mode<synchronous>, transform_indices = @transform_3, window_bounds = array<i64: 1, 512>}, {pipeline_mode = #tpu.pipeline_mode<synchronous>, transform_indices = @transform_4, window_bounds = array<i64: 128, 512>}, {pipeline_mode = #tpu.pipeline_mode<synchronous>, transform_indices = @transform_5, window_bounds = array<i64: 128, 512>}, {pipeline_mode = #tpu.pipeline_mode<synchronous>, transform_indices = @transform_6, window_bounds = array<i64: 1, 512>}, {pipeline_mode = #tpu.pipeline_mode<synchronous>, transform_indices = @transform_7, window_bounds = array<i64: 128, 512>}, {pipeline_mode = #tpu.pipeline_mode<synchronous>, transform_indices = @transform_8, window_bounds = array<i64: 128, 512>}, {pipeline_mode = #tpu.pipeline_mode<synchronous>, transform_indices = @transform_9, window_bounds = array<i64: 1, 512>}, {transform_indices = @transform_10, window_bounds = array<i64: 8, 8, 128>}]} {
    %c0 = arith.constant 0 : index
    %c0_0 = arith.constant 0 : index
    %0 = vector.load %arg2[%c0, %c0_0] : memref<16x512xbf16, #tpu.memory_space<vmem>>, vector<16x512xbf16>
    %c0_1 = arith.constant 0 : index
    %c0_2 = arith.constant 0 : index
    %1 = vector.load %arg3[%c0_1, %c0_2] : memref<128x512xbf16, #tpu.memory_space<vmem>>, vector<128x512xbf16>
    %c0_3 = arith.constant 0 : index
    %c0_4 = arith.constant 0 : index
    %2 = vector.load %arg4[%c0_3, %c0_4] : memref<1x512xf32, #tpu.memory_space<vmem>>, vector<1x512xf32>
    %c0_5 = arith.constant 0 : index
    %c0_6 = arith.constant 0 : index
    %c0_7 = arith.constant 0 : index
    %3 = vector.load %arg1[%c0_5, %c0_6, %c0_7] : memref<8x8x16xf32, #tpu.memory_space<vmem>>, vector<8x8x16xf32>
    %4 = vector.shape_cast %3 : vector<8x8x16xf32> to vector<64x16xf32>
    %5 = arith.truncf %4 : vector<64x16xf32> to vector<64x16xbf16>
    %cst = arith.constant dense<0.000000e+00> : vector<64x512xf32>
    %6 = tpu.matmul %5, %0, %cst {dimension_numbers = #tpu.dot_dimension_numbers<[1], [0], [0], [1], [0, 0, 1, 1], [], []>} : vector<64x16xbf16>, vector<16x512xbf16>, vector<64x512xf32> -> vector<64x512xf32>
    %7 = vector.broadcast %2 : vector<1x512xf32> to vector<64x512xf32>
    %8 = arith.addf %6, %7 : vector<64x512xf32>
    %9 = vector.shape_cast %8 : vector<64x512xf32> to vector<8x8x512xf32>
    %c0_8 = arith.constant 0 : index
    %c0_9 = arith.constant 0 : index
    %c0_10 = arith.constant 0 : index
    %10 = vector.load %arg12[%c0_8, %c0_9, %c0_10] : memref<8x8x512xf32, #tpu.memory_space<vmem>>, vector<8x8x512xf32>
    tpu.vector_store %arg12[%c0_8, %c0_9, %c0_10], %9 {strides = array<i32>} : memref<8x8x512xf32, #tpu.memory_space<vmem>>, vector<8x8x512xf32>,
    %cst_11 = arith.constant 0.000000e+00 : f32
    %11 = vector.broadcast %cst_11 : f32 to vector<8x128xf32>
    %cst_12 = arith.constant 0.000000e+00 : f32
    %12 = vector.broadcast %cst_12 : f32 to vector<8x128xf32>
    %c0_i32 = arith.constant 0 : i32
    %13 = arith.index_cast %c0_i32 : i32 to index
    %c0_13 = arith.constant 0 : index
    %c0_14 = arith.constant 0 : index
    %14 = vector.load %arg12[%13, %c0_13, %c0_14] : memref<8x8x512xf32, #tpu.memory_space<vmem>>, vector<1x8x512xf32>
    %15 = vector.shape_cast %14 : vector<1x8x512xf32> to vector<8x512xf32>
    %16 = arith.truncf %11 : vector<8x128xf32> to vector<8x128xbf16>
    %cst_15 = arith.constant dense<0.000000e+00> : vector<8x512xf32>
    %17 = tpu.matmul %16, %1, %cst_15 {dimension_numbers = #tpu.dot_dimension_numbers<[1], [0], [0], [1], [0, 0, 1, 1], [], []>} : vector<8x128xbf16>, vector<128x512xbf16>, vector<8x512xf32> -> vector<8x512xf32>
    %18 = arith.addf %15, %17 : vector<8x512xf32>
    %19 = vector.extract_strided_slice %18 {offsets = [0, 0], sizes = [8, 384], strides = [1, 1]} : vector<8x512xf32> to vector<8x384xf32>
    %cst_16 = arith.constant 0.000000e+00 : f32
    %20 = vector.broadcast %cst_16 : f32 to vector<8x384xf32>
    %21 = arith.subf %20, %19 : vector<8x384xf32>
    %22 = math.exp %21 : vector<8x384xf32>
    %cst_17 = arith.constant 1.000000e+00 : f32
    %23 = vector.broadcast %cst_17 : f32 to vector<8x384xf32>
    %24 = arith.addf %23, %22 : vector<8x384xf32>
    %25 = tpu.reciprocal %24 {approx = true} : vector<8x384xf32> -> vector<8x384xf32>
    %26 = vector.extract_strided_slice %25 {offsets = [0, 0], sizes = [8, 128], strides = [1, 1]} : vector<8x384xf32> to vector<8x128xf32>
    %27 = vector.extract_strided_slice %25 {offsets = [0, 128], sizes = [8, 128], strides = [1, 1]} : vector<8x384xf32> to vector<8x128xf32>
    %28 = vector.extract_strided_slice %25 {offsets = [0, 256], sizes = [8, 128], strides = [1, 1]} : vector<8x384xf32> to vector<8x128xf32>
    %29 = vector.extract_strided_slice %18 {offsets = [0, 384], sizes = [8, 128], strides = [1, 1]} : vector<8x512xf32> to vector<8x128xf32>
    %30 = math.tanh %29 : vector<8x128xf32>
    %31 = arith.mulf %27, %12 : vector<8x128xf32>
    %32 = arith.mulf %26, %30 : vector<8x128xf32>
    %33 = arith.addf %31, %32 : vector<8x128xf32>
    %34 = math.tanh %33 : vector<8x128xf32>
    %35 = arith.mulf %28, %34 : vector<8x128xf32>
    %36 = arith.index_cast %c0_i32 : i32 to index
    %c0_18 = arith.constant 0 : index
    %c0_19 = arith.constant 0 : index
    %37 = vector.load %arg13[%36, %c0_18, %c0_19] : memref<8x8x128xf32, #tpu.memory_space<vmem>>, vector<1x8x128xf32>
    %38 = vector.shape_cast %37 : vector<1x8x128xf32> to vector<8x128xf32>
    %39 = vector.shape_cast %35 : vector<8x128xf32> to vector<1x8x128xf32>
    tpu.vector_store %arg13[%36, %c0_18, %c0_19], %39 {strides = array<i32>} : memref<8x8x128xf32, #tpu.memory_space<vmem>>, vector<1x8x128xf32>,
    %c1_i32 = arith.constant 1 : i32
    %40 = arith.index_cast %c1_i32 : i32 to index
    %c0_20 = arith.constant 0 : index
    %c0_21 = arith.constant 0 : index
    %41 = vector.load %arg12[%40, %c0_20, %c0_21] : memref<8x8x512xf32, #tpu.memory_space<vmem>>, vector<1x8x512xf32>
    %42 = vector.shape_cast %41 : vector<1x8x512xf32> to vector<8x512xf32>
    %43 = arith.truncf %35 : vector<8x128xf32> to vector<8x128xbf16>
    %cst_22 = arith.constant dense<0.000000e+00> : vector<8x512xf32>
    %44 = tpu.matmul %43, %1, %cst_22 {dimension_numbers = #tpu.dot_dimension_numbers<[1], [0], [0], [1], [0, 0, 1, 1], [], []>} : vector<8x128xbf16>, vector<128x512xbf16>, vector<8x512xf32> -> vector<8x512xf32>
    %45 = arith.addf %42, %44 : vector<8x512xf32>
    %46 = vector.extract_strided_slice %45 {offsets = [0, 0], sizes = [8, 384], strides = [1, 1]} : vector<8x512xf32> to vector<8x384xf32>
    %cst_23 = arith.constant 0.000000e+00 : f32
    %47 = vector.broadcast %cst_23 : f32 to vector<8x384xf32>
    %48 = arith.subf %47, %46 : vector<8x384xf32>
    %49 = math.exp %48 : vector<8x384xf32>
    %cst_24 = arith.constant 1.000000e+00 : f32
    %50 = vector.broadcast %cst_24 : f32 to vector<8x384xf32>
    %51 = arith.addf %50, %49 : vector<8x384xf32>
    %52 = tpu.reciprocal %51 {approx = true} : vector<8x384xf32> -> vector<8x384xf32>
    %53 = vector.extract_strided_slice %52 {offsets = [0, 0], sizes = [8, 128], strides = [1, 1]} : vector<8x384xf32> to vector<8x128xf32>
    %54 = vector.extract_strided_slice %52 {offsets = [0, 128], sizes = [8, 128], strides = [1, 1]} : vector<8x384xf32> to vector<8x128xf32>
    %55 = vector.extract_strided_slice %52 {offsets = [0, 256], sizes = [8, 128], strides = [1, 1]} : vector<8x384xf32> to vector<8x128xf32>
    %56 = vector.extract_strided_slice %45 {offsets = [0, 384], sizes = [8, 128], strides = [1, 1]} : vector<8x512xf32> to vector<8x128xf32>
    %57 = math.tanh %56 : vector<8x128xf32>
    %58 = arith.mulf %54, %33 : vector<8x128xf32>
    %59 = arith.mulf %53, %57 : vector<8x128xf32>
    %60 = arith.addf %58, %59 : vector<8x128xf32>
    %61 = math.tanh %60 : vector<8x128xf32>
    %62 = arith.mulf %55, %61 : vector<8x128xf32>
    %63 = arith.index_cast %c1_i32 : i32 to index
    %c0_25 = arith.constant 0 : index
    %c0_26 = arith.constant 0 : index
    %64 = vector.load %arg13[%63, %c0_25, %c0_26] : memref<8x8x128xf32, #tpu.memory_space<vmem>>, vector<1x8x128xf32>
    %65 = vector.shape_cast %64 : vector<1x8x128xf32> to vector<8x128xf32>
    %66 = vector.shape_cast %62 : vector<8x128xf32> to vector<1x8x128xf32>
    tpu.vector_store %arg13[%63, %c0_25, %c0_26], %66 {strides = array<i32>} : memref<8x8x128xf32, #tpu.memory_space<vmem>>, vector<1x8x128xf32>,
    %c2_i32 = arith.constant 2 : i32
    %67 = arith.index_cast %c2_i32 : i32 to index
    %c0_27 = arith.constant 0 : index
    %c0_28 = arith.constant 0 : index
    %68 = vector.load %arg12[%67, %c0_27, %c0_28] : memref<8x8x512xf32, #tpu.memory_space<vmem>>, vector<1x8x512xf32>
    %69 = vector.shape_cast %68 : vector<1x8x512xf32> to vector<8x512xf32>
    %70 = arith.truncf %62 : vector<8x128xf32> to vector<8x128xbf16>
    %cst_29 = arith.constant dense<0.000000e+00> : vector<8x512xf32>
    %71 = tpu.matmul %70, %1, %cst_29 {dimension_numbers = #tpu.dot_dimension_numbers<[1], [0], [0], [1], [0, 0, 1, 1], [], []>} : vector<8x128xbf16>, vector<128x512xbf16>, vector<8x512xf32> -> vector<8x512xf32>
    %72 = arith.addf %69, %71 : vector<8x512xf32>
    %73 = vector.extract_strided_slice %72 {offsets = [0, 0], sizes = [8, 384], strides = [1, 1]} : vector<8x512xf32> to vector<8x384xf32>
    %cst_30 = arith.constant 0.000000e+00 : f32
    %74 = vector.broadcast %cst_30 : f32 to vector<8x384xf32>
    %75 = arith.subf %74, %73 : vector<8x384xf32>
    %76 = math.exp %75 : vector<8x384xf32>
    %cst_31 = arith.constant 1.000000e+00 : f32
    %77 = vector.broadcast %cst_31 : f32 to vector<8x384xf32>
    %78 = arith.addf %77, %76 : vector<8x384xf32>
    %79 = tpu.reciprocal %78 {approx = true} : vector<8x384xf32> -> vector<8x384xf32>
    %80 = vector.extract_strided_slice %79 {offsets = [0, 0], sizes = [8, 128], strides = [1, 1]} : vector<8x384xf32> to vector<8x128xf32>
    %81 = vector.extract_strided_slice %79 {offsets = [0, 128], sizes = [8, 128], strides = [1, 1]} : vector<8x384xf32> to vector<8x128xf32>
    %82 = vector.extract_strided_slice %79 {offsets = [0, 256], sizes = [8, 128], strides = [1, 1]} : vector<8x384xf32> to vector<8x128xf32>
    %83 = vector.extract_strided_slice %72 {offsets = [0, 384], sizes = [8, 128], strides = [1, 1]} : vector<8x512xf32> to vector<8x128xf32>
    %84 = math.tanh %83 : vector<8x128xf32>
    %85 = arith.mulf %81, %60 : vector<8x128xf32>
    %86 = arith.mulf %80, %84 : vector<8x128xf32>
    %87 = arith.addf %85, %86 : vector<8x128xf32>
    %88 = math.tanh %87 : vector<8x128xf32>
    %89 = arith.mulf %82, %88 : vector<8x128xf32>
    %90 = arith.index_cast %c2_i32 : i32 to index
    %c0_32 = arith.constant 0 : index
    %c0_33 = arith.constant 0 : index
    %91 = vector.load %arg13[%90, %c0_32, %c0_33] : memref<8x8x128xf32, #tpu.memory_space<vmem>>, vector<1x8x128xf32>
    %92 = vector.shape_cast %91 : vector<1x8x128xf32> to vector<8x128xf32>
    %93 = vector.shape_cast %89 : vector<8x128xf32> to vector<1x8x128xf32>
    tpu.vector_store %arg13[%90, %c0_32, %c0_33], %93 {strides = array<i32>} : memref<8x8x128xf32, #tpu.memory_space<vmem>>, vector<1x8x128xf32>,
    %c3_i32 = arith.constant 3 : i32
    %94 = arith.index_cast %c3_i32 : i32 to index
    %c0_34 = arith.constant 0 : index
    %c0_35 = arith.constant 0 : index
    %95 = vector.load %arg12[%94, %c0_34, %c0_35] : memref<8x8x512xf32, #tpu.memory_space<vmem>>, vector<1x8x512xf32>
    %96 = vector.shape_cast %95 : vector<1x8x512xf32> to vector<8x512xf32>
    %97 = arith.truncf %89 : vector<8x128xf32> to vector<8x128xbf16>
    %cst_36 = arith.constant dense<0.000000e+00> : vector<8x512xf32>
    %98 = tpu.matmul %97, %1, %cst_36 {dimension_numbers = #tpu.dot_dimension_numbers<[1], [0], [0], [1], [0, 0, 1, 1], [], []>} : vector<8x128xbf16>, vector<128x512xbf16>, vector<8x512xf32> -> vector<8x512xf32>
    %99 = arith.addf %96, %98 : vector<8x512xf32>
    %100 = vector.extract_strided_slice %99 {offsets = [0, 0], sizes = [8, 384], strides = [1, 1]} : vector<8x512xf32> to vector<8x384xf32>
    %cst_37 = arith.constant 0.000000e+00 : f32
    %101 = vector.broadcast %cst_37 : f32 to vector<8x384xf32>
    %102 = arith.subf %101, %100 : vector<8x384xf32>
    %103 = math.exp %102 : vector<8x384xf32>
    %cst_38 = arith.constant 1.000000e+00 : f32
    %104 = vector.broadcast %cst_38 : f32 to vector<8x384xf32>
    %105 = arith.addf %104, %103 : vector<8x384xf32>
    %106 = tpu.reciprocal %105 {approx = true} : vector<8x384xf32> -> vector<8x384xf32>
    %107 = vector.extract_strided_slice %106 {offsets = [0, 0], sizes = [8, 128], strides = [1, 1]} : vector<8x384xf32> to vector<8x128xf32>
    %108 = vector.extract_strided_slice %106 {offsets = [0, 128], sizes = [8, 128], strides = [1, 1]} : vector<8x384xf32> to vector<8x128xf32>
    %109 = vector.extract_strided_slice %106 {offsets = [0, 256], sizes = [8, 128], strides = [1, 1]} : vector<8x384xf32> to vector<8x128xf32>
    %110 = vector.extract_strided_slice %99 {offsets = [0, 384], sizes = [8, 128], strides = [1, 1]} : vector<8x512xf32> to vector<8x128xf32>
    %111 = math.tanh %110 : vector<8x128xf32>
    %112 = arith.mulf %108, %87 : vector<8x128xf32>
    %113 = arith.mulf %107, %111 : vector<8x128xf32>
    %114 = arith.addf %112, %113 : vector<8x128xf32>
    %115 = math.tanh %114 : vector<8x128xf32>
    %116 = arith.mulf %109, %115 : vector<8x128xf32>
    %117 = arith.index_cast %c3_i32 : i32 to index
    %c0_39 = arith.constant 0 : index
    %c0_40 = arith.constant 0 : index
    %118 = vector.load %arg13[%117, %c0_39, %c0_40] : memref<8x8x128xf32, #tpu.memory_space<vmem>>, vector<1x8x128xf32>
    %119 = vector.shape_cast %118 : vector<1x8x128xf32> to vector<8x128xf32>
    %120 = vector.shape_cast %116 : vector<8x128xf32> to vector<1x8x128xf32>
    tpu.vector_store %arg13[%117, %c0_39, %c0_40], %120 {strides = array<i32>} : memref<8x8x128xf32, #tpu.memory_space<vmem>>, vector<1x8x128xf32>,
    %c4_i32 = arith.constant 4 : i32
    %121 = arith.index_cast %c4_i32 : i32 to index
    %c0_41 = arith.constant 0 : index
    %c0_42 = arith.constant 0 : index
    %122 = vector.load %arg12[%121, %c0_41, %c0_42] : memref<8x8x512xf32, #tpu.memory_space<vmem>>, vector<1x8x512xf32>
    %123 = vector.shape_cast %122 : vector<1x8x512xf32> to vector<8x512xf32>
    %124 = arith.truncf %116 : vector<8x128xf32> to vector<8x128xbf16>
    %cst_43 = arith.constant dense<0.000000e+00> : vector<8x512xf32>
    %125 = tpu.matmul %124, %1, %cst_43 {dimension_numbers = #tpu.dot_dimension_numbers<[1], [0], [0], [1], [0, 0, 1, 1], [], []>} : vector<8x128xbf16>, vector<128x512xbf16>, vector<8x512xf32> -> vector<8x512xf32>
    %126 = arith.addf %123, %125 : vector<8x512xf32>
    %127 = vector.extract_strided_slice %126 {offsets = [0, 0], sizes = [8, 384], strides = [1, 1]} : vector<8x512xf32> to vector<8x384xf32>
    %cst_44 = arith.constant 0.000000e+00 : f32
    %128 = vector.broadcast %cst_44 : f32 to vector<8x384xf32>
    %129 = arith.subf %128, %127 : vector<8x384xf32>
    %130 = math.exp %129 : vector<8x384xf32>
    %cst_45 = arith.constant 1.000000e+00 : f32
    %131 = vector.broadcast %cst_45 : f32 to vector<8x384xf32>
    %132 = arith.addf %131, %130 : vector<8x384xf32>
    %133 = tpu.reciprocal %132 {approx = true} : vector<8x384xf32> -> vector<8x384xf32>
    %134 = vector.extract_strided_slice %133 {offsets = [0, 0], sizes = [8, 128], strides = [1, 1]} : vector<8x384xf32> to vector<8x128xf32>
    %135 = vector.extract_strided_slice %133 {offsets = [0, 128], sizes = [8, 128], strides = [1, 1]} : vector<8x384xf32> to vector<8x128xf32>
    %136 = vector.extract_strided_slice %133 {offsets = [0, 256], sizes = [8, 128], strides = [1, 1]} : vector<8x384xf32> to vector<8x128xf32>
    %137 = vector.extract_strided_slice %126 {offsets = [0, 384], sizes = [8, 128], strides = [1, 1]} : vector<8x512xf32> to vector<8x128xf32>
    %138 = math.tanh %137 : vector<8x128xf32>
    %139 = arith.mulf %135, %114 : vector<8x128xf32>
    %140 = arith.mulf %134, %138 : vector<8x128xf32>
    %141 = arith.addf %139, %140 : vector<8x128xf32>
    %142 = math.tanh %141 : vector<8x128xf32>
    %143 = arith.mulf %136, %142 : vector<8x128xf32>
    %144 = arith.index_cast %c4_i32 : i32 to index
    %c0_46 = arith.constant 0 : index
    %c0_47 = arith.constant 0 : index
    %145 = vector.load %arg13[%144, %c0_46, %c0_47] : memref<8x8x128xf32, #tpu.memory_space<vmem>>, vector<1x8x128xf32>
    %146 = vector.shape_cast %145 : vector<1x8x128xf32> to vector<8x128xf32>
    %147 = vector.shape_cast %143 : vector<8x128xf32> to vector<1x8x128xf32>
    tpu.vector_store %arg13[%144, %c0_46, %c0_47], %147 {strides = array<i32>} : memref<8x8x128xf32, #tpu.memory_space<vmem>>, vector<1x8x128xf32>,
    %c5_i32 = arith.constant 5 : i32
    %148 = arith.index_cast %c5_i32 : i32 to index
    %c0_48 = arith.constant 0 : index
    %c0_49 = arith.constant 0 : index
    %149 = vector.load %arg12[%148, %c0_48, %c0_49] : memref<8x8x512xf32, #tpu.memory_space<vmem>>, vector<1x8x512xf32>
    %150 = vector.shape_cast %149 : vector<1x8x512xf32> to vector<8x512xf32>
    %151 = arith.truncf %143 : vector<8x128xf32> to vector<8x128xbf16>
    %cst_50 = arith.constant dense<0.000000e+00> : vector<8x512xf32>
    %152 = tpu.matmul %151, %1, %cst_50 {dimension_numbers = #tpu.dot_dimension_numbers<[1], [0], [0], [1], [0, 0, 1, 1], [], []>} : vector<8x128xbf16>, vector<128x512xbf16>, vector<8x512xf32> -> vector<8x512xf32>
    %153 = arith.addf %150, %152 : vector<8x512xf32>
    %154 = vector.extract_strided_slice %153 {offsets = [0, 0], sizes = [8, 384], strides = [1, 1]} : vector<8x512xf32> to vector<8x384xf32>
    %cst_51 = arith.constant 0.000000e+00 : f32
    %155 = vector.broadcast %cst_51 : f32 to vector<8x384xf32>
    %156 = arith.subf %155, %154 : vector<8x384xf32>
    %157 = math.exp %156 : vector<8x384xf32>
    %cst_52 = arith.constant 1.000000e+00 : f32
    %158 = vector.broadcast %cst_52 : f32 to vector<8x384xf32>
    %159 = arith.addf %158, %157 : vector<8x384xf32>
    %160 = tpu.reciprocal %159 {approx = true} : vector<8x384xf32> -> vector<8x384xf32>
    %161 = vector.extract_strided_slice %160 {offsets = [0, 0], sizes = [8, 128], strides = [1, 1]} : vector<8x384xf32> to vector<8x128xf32>
    %162 = vector.extract_strided_slice %160 {offsets = [0, 128], sizes = [8, 128], strides = [1, 1]} : vector<8x384xf32> to vector<8x128xf32>
    %163 = vector.extract_strided_slice %160 {offsets = [0, 256], sizes = [8, 128], strides = [1, 1]} : vector<8x384xf32> to vector<8x128xf32>
    %164 = vector.extract_strided_slice %153 {offsets = [0, 384], sizes = [8, 128], strides = [1, 1]} : vector<8x512xf32> to vector<8x128xf32>
    %165 = math.tanh %164 : vector<8x128xf32>
    %166 = arith.mulf %162, %141 : vector<8x128xf32>
    %167 = arith.mulf %161, %165 : vector<8x128xf32>
    %168 = arith.addf %166, %167 : vector<8x128xf32>
    %169 = math.tanh %168 : vector<8x128xf32>
    %170 = arith.mulf %163, %169 : vector<8x128xf32>
    %171 = arith.index_cast %c5_i32 : i32 to index
    %c0_53 = arith.constant 0 : index
    %c0_54 = arith.constant 0 : index
    %172 = vector.load %arg13[%171, %c0_53, %c0_54] : memref<8x8x128xf32, #tpu.memory_space<vmem>>, vector<1x8x128xf32>
    %173 = vector.shape_cast %172 : vector<1x8x128xf32> to vector<8x128xf32>
    %174 = vector.shape_cast %170 : vector<8x128xf32> to vector<1x8x128xf32>
    tpu.vector_store %arg13[%171, %c0_53, %c0_54], %174 {strides = array<i32>} : memref<8x8x128xf32, #tpu.memory_space<vmem>>, vector<1x8x128xf32>,
    %c6_i32 = arith.constant 6 : i32
    %175 = arith.index_cast %c6_i32 : i32 to index
    %c0_55 = arith.constant 0 : index
    %c0_56 = arith.constant 0 : index
    %176 = vector.load %arg12[%175, %c0_55, %c0_56] : memref<8x8x512xf32, #tpu.memory_space<vmem>>, vector<1x8x512xf32>
    %177 = vector.shape_cast %176 : vector<1x8x512xf32> to vector<8x512xf32>
    %178 = arith.truncf %170 : vector<8x128xf32> to vector<8x128xbf16>
    %cst_57 = arith.constant dense<0.000000e+00> : vector<8x512xf32>
    %179 = tpu.matmul %178, %1, %cst_57 {dimension_numbers = #tpu.dot_dimension_numbers<[1], [0], [0], [1], [0, 0, 1, 1], [], []>} : vector<8x128xbf16>, vector<128x512xbf16>, vector<8x512xf32> -> vector<8x512xf32>
    %180 = arith.addf %177, %179 : vector<8x512xf32>
    %181 = vector.extract_strided_slice %180 {offsets = [0, 0], sizes = [8, 384], strides = [1, 1]} : vector<8x512xf32> to vector<8x384xf32>
    %cst_58 = arith.constant 0.000000e+00 : f32
    %182 = vector.broadcast %cst_58 : f32 to vector<8x384xf32>
    %183 = arith.subf %182, %181 : vector<8x384xf32>
    %184 = math.exp %183 : vector<8x384xf32>
    %cst_59 = arith.constant 1.000000e+00 : f32
    %185 = vector.broadcast %cst_59 : f32 to vector<8x384xf32>
    %186 = arith.addf %185, %184 : vector<8x384xf32>
    %187 = tpu.reciprocal %186 {approx = true} : vector<8x384xf32> -> vector<8x384xf32>
    %188 = vector.extract_strided_slice %187 {offsets = [0, 0], sizes = [8, 128], strides = [1, 1]} : vector<8x384xf32> to vector<8x128xf32>
    %189 = vector.extract_strided_slice %187 {offsets = [0, 128], sizes = [8, 128], strides = [1, 1]} : vector<8x384xf32> to vector<8x128xf32>
    %190 = vector.extract_strided_slice %187 {offsets = [0, 256], sizes = [8, 128], strides = [1, 1]} : vector<8x384xf32> to vector<8x128xf32>
    %191 = vector.extract_strided_slice %180 {offsets = [0, 384], sizes = [8, 128], strides = [1, 1]} : vector<8x512xf32> to vector<8x128xf32>
    %192 = math.tanh %191 : vector<8x128xf32>
    %193 = arith.mulf %189, %168 : vector<8x128xf32>
    %194 = arith.mulf %188, %192 : vector<8x128xf32>
    %195 = arith.addf %193, %194 : vector<8x128xf32>
    %196 = math.tanh %195 : vector<8x128xf32>
    %197 = arith.mulf %190, %196 : vector<8x128xf32>
    %198 = arith.index_cast %c6_i32 : i32 to index
    %c0_60 = arith.constant 0 : index
    %c0_61 = arith.constant 0 : index
    %199 = vector.load %arg13[%198, %c0_60, %c0_61] : memref<8x8x128xf32, #tpu.memory_space<vmem>>, vector<1x8x128xf32>
    %200 = vector.shape_cast %199 : vector<1x8x128xf32> to vector<8x128xf32>
    %201 = vector.shape_cast %197 : vector<8x128xf32> to vector<1x8x128xf32>
    tpu.vector_store %arg13[%198, %c0_60, %c0_61], %201 {strides = array<i32>} : memref<8x8x128xf32, #tpu.memory_space<vmem>>, vector<1x8x128xf32>,
    %c7_i32 = arith.constant 7 : i32
    %202 = arith.index_cast %c7_i32 : i32 to index
    %c0_62 = arith.constant 0 : index
    %c0_63 = arith.constant 0 : index
    %203 = vector.load %arg12[%202, %c0_62, %c0_63] : memref<8x8x512xf32, #tpu.memory_space<vmem>>, vector<1x8x512xf32>
    %204 = vector.shape_cast %203 : vector<1x8x512xf32> to vector<8x512xf32>
    %205 = arith.truncf %197 : vector<8x128xf32> to vector<8x128xbf16>
    %cst_64 = arith.constant dense<0.000000e+00> : vector<8x512xf32>
    %206 = tpu.matmul %205, %1, %cst_64 {dimension_numbers = #tpu.dot_dimension_numbers<[1], [0], [0], [1], [0, 0, 1, 1], [], []>} : vector<8x128xbf16>, vector<128x512xbf16>, vector<8x512xf32> -> vector<8x512xf32>
    %207 = arith.addf %204, %206 : vector<8x512xf32>
    %208 = vector.extract_strided_slice %207 {offsets = [0, 0], sizes = [8, 384], strides = [1, 1]} : vector<8x512xf32> to vector<8x384xf32>
    %cst_65 = arith.constant 0.000000e+00 : f32
    %209 = vector.broadcast %cst_65 : f32 to vector<8x384xf32>
    %210 = arith.subf %209, %208 : vector<8x384xf32>
    %211 = math.exp %210 : vector<8x384xf32>
    %cst_66 = arith.constant 1.000000e+00 : f32
    %212 = vector.broadcast %cst_66 : f32 to vector<8x384xf32>
    %213 = arith.addf %212, %211 : vector<8x384xf32>
    %214 = tpu.reciprocal %213 {approx = true} : vector<8x384xf32> -> vector<8x384xf32>
    %215 = vector.extract_strided_slice %214 {offsets = [0, 0], sizes = [8, 128], strides = [1, 1]} : vector<8x384xf32> to vector<8x128xf32>
    %216 = vector.extract_strided_slice %214 {offsets = [0, 128], sizes = [8, 128], strides = [1, 1]} : vector<8x384xf32> to vector<8x128xf32>
    %217 = vector.extract_strided_slice %214 {offsets = [0, 256], sizes = [8, 128], strides = [1, 1]} : vector<8x384xf32> to vector<8x128xf32>
    %218 = vector.extract_strided_slice %207 {offsets = [0, 384], sizes = [8, 128], strides = [1, 1]} : vector<8x512xf32> to vector<8x128xf32>
    %219 = math.tanh %218 : vector<8x128xf32>
    %220 = arith.mulf %216, %195 : vector<8x128xf32>
    %221 = arith.mulf %215, %219 : vector<8x128xf32>
    %222 = arith.addf %220, %221 : vector<8x128xf32>
    %223 = math.tanh %222 : vector<8x128xf32>
    %224 = arith.mulf %217, %223 : vector<8x128xf32>
    %225 = arith.index_cast %c7_i32 : i32 to index
    %c0_67 = arith.constant 0 : index
    %c0_68 = arith.constant 0 : index
    %226 = vector.load %arg13[%225, %c0_67, %c0_68] : memref<8x8x128xf32, #tpu.memory_space<vmem>>, vector<1x8x128xf32>
    %227 = vector.shape_cast %226 : vector<1x8x128xf32> to vector<8x128xf32>
    %228 = vector.shape_cast %224 : vector<8x128xf32> to vector<1x8x128xf32>
    tpu.vector_store %arg13[%225, %c0_67, %c0_68], %228 {strides = array<i32>} : memref<8x8x128xf32, #tpu.memory_space<vmem>>, vector<1x8x128xf32>,
    %c8_i32 = arith.constant 8 : i32
    %c0_69 = arith.constant 0 : index
    %c0_70 = arith.constant 0 : index
    %229 = vector.load %arg5[%c0_69, %c0_70] : memref<128x512xbf16, #tpu.memory_space<vmem>>, vector<128x512xbf16>
    %c0_71 = arith.constant 0 : index
    %c0_72 = arith.constant 0 : index
    %230 = vector.load %arg6[%c0_71, %c0_72] : memref<128x512xbf16, #tpu.memory_space<vmem>>, vector<128x512xbf16>
    %c0_73 = arith.constant 0 : index
    %c0_74 = arith.constant 0 : index
    %231 = vector.load %arg7[%c0_73, %c0_74] : memref<1x512xf32, #tpu.memory_space<vmem>>, vector<1x512xf32>
    %c0_75 = arith.constant 0 : index
    %c0_76 = arith.constant 0 : index
    %c0_77 = arith.constant 0 : index
    %232 = vector.load %arg13[%c0_75, %c0_76, %c0_77] : memref<8x8x128xf32, #tpu.memory_space<vmem>>, vector<8x8x128xf32>
    %233 = vector.shape_cast %232 : vector<8x8x128xf32> to vector<64x128xf32>
    %234 = arith.truncf %233 : vector<64x128xf32> to vector<64x128xbf16>
    %cst_78 = arith.constant dense<0.000000e+00> : vector<64x512xf32>
    %235 = tpu.matmul %234, %229, %cst_78 {dimension_numbers = #tpu.dot_dimension_numbers<[1], [0], [0], [1], [0, 0, 1, 1], [], []>} : vector<64x128xbf16>, vector<128x512xbf16>, vector<64x512xf32> -> vector<64x512xf32>
    %236 = vector.broadcast %231 : vector<1x512xf32> to vector<64x512xf32>
    %237 = arith.addf %235, %236 : vector<64x512xf32>
    %238 = vector.shape_cast %237 : vector<64x512xf32> to vector<8x8x512xf32>
    %c0_79 = arith.constant 0 : index
    %c0_80 = arith.constant 0 : index
    %c0_81 = arith.constant 0 : index
    %239 = vector.load %arg12[%c0_79, %c0_80, %c0_81] : memref<8x8x512xf32, #tpu.memory_space<vmem>>, vector<8x8x512xf32>
    tpu.vector_store %arg12[%c0_79, %c0_80, %c0_81], %238 {strides = array<i32>} : memref<8x8x512xf32, #tpu.memory_space<vmem>>, vector<8x8x512xf32>,
    %cst_82 = arith.constant 0.000000e+00 : f32
    %240 = vector.broadcast %cst_82 : f32 to vector<8x128xf32>
    %cst_83 = arith.constant 0.000000e+00 : f32
    %241 = vector.broadcast %cst_83 : f32 to vector<8x128xf32>
    %c0_i32_84 = arith.constant 0 : i32
    %242 = arith.index_cast %c0_i32_84 : i32 to index
    %c0_85 = arith.constant 0 : index
    %c0_86 = arith.constant 0 : index
    %243 = vector.load %arg12[%242, %c0_85, %c0_86] : memref<8x8x512xf32, #tpu.memory_space<vmem>>, vector<1x8x512xf32>
    %244 = vector.shape_cast %243 : vector<1x8x512xf32> to vector<8x512xf32>
    %245 = arith.truncf %240 : vector<8x128xf32> to vector<8x128xbf16>
    %cst_87 = arith.constant dense<0.000000e+00> : vector<8x512xf32>
    %246 = tpu.matmul %245, %230, %cst_87 {dimension_numbers = #tpu.dot_dimension_numbers<[1], [0], [0], [1], [0, 0, 1, 1], [], []>} : vector<8x128xbf16>, vector<128x512xbf16>, vector<8x512xf32> -> vector<8x512xf32>
    %247 = arith.addf %244, %246 : vector<8x512xf32>
    %248 = vector.extract_strided_slice %247 {offsets = [0, 0], sizes = [8, 384], strides = [1, 1]} : vector<8x512xf32> to vector<8x384xf32>
    %cst_88 = arith.constant 0.000000e+00 : f32
    %249 = vector.broadcast %cst_88 : f32 to vector<8x384xf32>
    %250 = arith.subf %249, %248 : vector<8x384xf32>
    %251 = math.exp %250 : vector<8x384xf32>
    %cst_89 = arith.constant 1.000000e+00 : f32
    %252 = vector.broadcast %cst_89 : f32 to vector<8x384xf32>
    %253 = arith.addf %252, %251 : vector<8x384xf32>
    %254 = tpu.reciprocal %253 {approx = true} : vector<8x384xf32> -> vector<8x384xf32>
    %255 = vector.extract_strided_slice %254 {offsets = [0, 0], sizes = [8, 128], strides = [1, 1]} : vector<8x384xf32> to vector<8x128xf32>
    %256 = vector.extract_strided_slice %254 {offsets = [0, 128], sizes = [8, 128], strides = [1, 1]} : vector<8x384xf32> to vector<8x128xf32>
    %257 = vector.extract_strided_slice %254 {offsets = [0, 256], sizes = [8, 128], strides = [1, 1]} : vector<8x384xf32> to vector<8x128xf32>
    %258 = vector.extract_strided_slice %247 {offsets = [0, 384], sizes = [8, 128], strides = [1, 1]} : vector<8x512xf32> to vector<8x128xf32>
    %259 = math.tanh %258 : vector<8x128xf32>
    %260 = arith.mulf %256, %241 : vector<8x128xf32>
    %261 = arith.mulf %255, %259 : vector<8x128xf32>
    %262 = arith.addf %260, %261 : vector<8x128xf32>
    %263 = math.tanh %262 : vector<8x128xf32>
    %264 = arith.mulf %257, %263 : vector<8x128xf32>
    %265 = arith.index_cast %c0_i32_84 : i32 to index
    %c0_90 = arith.constant 0 : index
    %c0_91 = arith.constant 0 : index
    %266 = vector.load %arg13[%265, %c0_90, %c0_91] : memref<8x8x128xf32, #tpu.memory_space<vmem>>, vector<1x8x128xf32>
    %267 = vector.shape_cast %266 : vector<1x8x128xf32> to vector<8x128xf32>
    %268 = vector.shape_cast %264 : vector<8x128xf32> to vector<1x8x128xf32>
    tpu.vector_store %arg13[%265, %c0_90, %c0_91], %268 {strides = array<i32>} : memref<8x8x128xf32, #tpu.memory_space<vmem>>, vector<1x8x128xf32>,
    %c1_i32_92 = arith.constant 1 : i32
    %269 = arith.index_cast %c1_i32_92 : i32 to index
    %c0_93 = arith.constant 0 : index
    %c0_94 = arith.constant 0 : index
    %270 = vector.load %arg12[%269, %c0_93, %c0_94] : memref<8x8x512xf32, #tpu.memory_space<vmem>>, vector<1x8x512xf32>
    %271 = vector.shape_cast %270 : vector<1x8x512xf32> to vector<8x512xf32>
    %272 = arith.truncf %264 : vector<8x128xf32> to vector<8x128xbf16>
    %cst_95 = arith.constant dense<0.000000e+00> : vector<8x512xf32>
    %273 = tpu.matmul %272, %230, %cst_95 {dimension_numbers = #tpu.dot_dimension_numbers<[1], [0], [0], [1], [0, 0, 1, 1], [], []>} : vector<8x128xbf16>, vector<128x512xbf16>, vector<8x512xf32> -> vector<8x512xf32>
    %274 = arith.addf %271, %273 : vector<8x512xf32>
    %275 = vector.extract_strided_slice %274 {offsets = [0, 0], sizes = [8, 384], strides = [1, 1]} : vector<8x512xf32> to vector<8x384xf32>
    %cst_96 = arith.constant 0.000000e+00 : f32
    %276 = vector.broadcast %cst_96 : f32 to vector<8x384xf32>
    %277 = arith.subf %276, %275 : vector<8x384xf32>
    %278 = math.exp %277 : vector<8x384xf32>
    %cst_97 = arith.constant 1.000000e+00 : f32
    %279 = vector.broadcast %cst_97 : f32 to vector<8x384xf32>
    %280 = arith.addf %279, %278 : vector<8x384xf32>
    %281 = tpu.reciprocal %280 {approx = true} : vector<8x384xf32> -> vector<8x384xf32>
    %282 = vector.extract_strided_slice %281 {offsets = [0, 0], sizes = [8, 128], strides = [1, 1]} : vector<8x384xf32> to vector<8x128xf32>
    %283 = vector.extract_strided_slice %281 {offsets = [0, 128], sizes = [8, 128], strides = [1, 1]} : vector<8x384xf32> to vector<8x128xf32>
    %284 = vector.extract_strided_slice %281 {offsets = [0, 256], sizes = [8, 128], strides = [1, 1]} : vector<8x384xf32> to vector<8x128xf32>
    %285 = vector.extract_strided_slice %274 {offsets = [0, 384], sizes = [8, 128], strides = [1, 1]} : vector<8x512xf32> to vector<8x128xf32>
    %286 = math.tanh %285 : vector<8x128xf32>
    %287 = arith.mulf %283, %262 : vector<8x128xf32>
    %288 = arith.mulf %282, %286 : vector<8x128xf32>
    %289 = arith.addf %287, %288 : vector<8x128xf32>
    %290 = math.tanh %289 : vector<8x128xf32>
    %291 = arith.mulf %284, %290 : vector<8x128xf32>
    %292 = arith.index_cast %c1_i32_92 : i32 to index
    %c0_98 = arith.constant 0 : index
    %c0_99 = arith.constant 0 : index
    %293 = vector.load %arg13[%292, %c0_98, %c0_99] : memref<8x8x128xf32, #tpu.memory_space<vmem>>, vector<1x8x128xf32>
    %294 = vector.shape_cast %293 : vector<1x8x128xf32> to vector<8x128xf32>
    %295 = vector.shape_cast %291 : vector<8x128xf32> to vector<1x8x128xf32>
    tpu.vector_store %arg13[%292, %c0_98, %c0_99], %295 {strides = array<i32>} : memref<8x8x128xf32, #tpu.memory_space<vmem>>, vector<1x8x128xf32>,
    %c2_i32_100 = arith.constant 2 : i32
    %296 = arith.index_cast %c2_i32_100 : i32 to index
    %c0_101 = arith.constant 0 : index
    %c0_102 = arith.constant 0 : index
    %297 = vector.load %arg12[%296, %c0_101, %c0_102] : memref<8x8x512xf32, #tpu.memory_space<vmem>>, vector<1x8x512xf32>
    %298 = vector.shape_cast %297 : vector<1x8x512xf32> to vector<8x512xf32>
    %299 = arith.truncf %291 : vector<8x128xf32> to vector<8x128xbf16>
    %cst_103 = arith.constant dense<0.000000e+00> : vector<8x512xf32>
    %300 = tpu.matmul %299, %230, %cst_103 {dimension_numbers = #tpu.dot_dimension_numbers<[1], [0], [0], [1], [0, 0, 1, 1], [], []>} : vector<8x128xbf16>, vector<128x512xbf16>, vector<8x512xf32> -> vector<8x512xf32>
    %301 = arith.addf %298, %300 : vector<8x512xf32>
    %302 = vector.extract_strided_slice %301 {offsets = [0, 0], sizes = [8, 384], strides = [1, 1]} : vector<8x512xf32> to vector<8x384xf32>
    %cst_104 = arith.constant 0.000000e+00 : f32
    %303 = vector.broadcast %cst_104 : f32 to vector<8x384xf32>
    %304 = arith.subf %303, %302 : vector<8x384xf32>
    %305 = math.exp %304 : vector<8x384xf32>
    %cst_105 = arith.constant 1.000000e+00 : f32
    %306 = vector.broadcast %cst_105 : f32 to vector<8x384xf32>
    %307 = arith.addf %306, %305 : vector<8x384xf32>
    %308 = tpu.reciprocal %307 {approx = true} : vector<8x384xf32> -> vector<8x384xf32>
    %309 = vector.extract_strided_slice %308 {offsets = [0, 0], sizes = [8, 128], strides = [1, 1]} : vector<8x384xf32> to vector<8x128xf32>
    %310 = vector.extract_strided_slice %308 {offsets = [0, 128], sizes = [8, 128], strides = [1, 1]} : vector<8x384xf32> to vector<8x128xf32>
    %311 = vector.extract_strided_slice %308 {offsets = [0, 256], sizes = [8, 128], strides = [1, 1]} : vector<8x384xf32> to vector<8x128xf32>
    %312 = vector.extract_strided_slice %301 {offsets = [0, 384], sizes = [8, 128], strides = [1, 1]} : vector<8x512xf32> to vector<8x128xf32>
    %313 = math.tanh %312 : vector<8x128xf32>
    %314 = arith.mulf %310, %289 : vector<8x128xf32>
    %315 = arith.mulf %309, %313 : vector<8x128xf32>
    %316 = arith.addf %314, %315 : vector<8x128xf32>
    %317 = math.tanh %316 : vector<8x128xf32>
    %318 = arith.mulf %311, %317 : vector<8x128xf32>
    %319 = arith.index_cast %c2_i32_100 : i32 to index
    %c0_106 = arith.constant 0 : index
    %c0_107 = arith.constant 0 : index
    %320 = vector.load %arg13[%319, %c0_106, %c0_107] : memref<8x8x128xf32, #tpu.memory_space<vmem>>, vector<1x8x128xf32>
    %321 = vector.shape_cast %320 : vector<1x8x128xf32> to vector<8x128xf32>
    %322 = vector.shape_cast %318 : vector<8x128xf32> to vector<1x8x128xf32>
    tpu.vector_store %arg13[%319, %c0_106, %c0_107], %322 {strides = array<i32>} : memref<8x8x128xf32, #tpu.memory_space<vmem>>, vector<1x8x128xf32>,
    %c3_i32_108 = arith.constant 3 : i32
    %323 = arith.index_cast %c3_i32_108 : i32 to index
    %c0_109 = arith.constant 0 : index
    %c0_110 = arith.constant 0 : index
    %324 = vector.load %arg12[%323, %c0_109, %c0_110] : memref<8x8x512xf32, #tpu.memory_space<vmem>>, vector<1x8x512xf32>
    %325 = vector.shape_cast %324 : vector<1x8x512xf32> to vector<8x512xf32>
    %326 = arith.truncf %318 : vector<8x128xf32> to vector<8x128xbf16>
    %cst_111 = arith.constant dense<0.000000e+00> : vector<8x512xf32>
    %327 = tpu.matmul %326, %230, %cst_111 {dimension_numbers = #tpu.dot_dimension_numbers<[1], [0], [0], [1], [0, 0, 1, 1], [], []>} : vector<8x128xbf16>, vector<128x512xbf16>, vector<8x512xf32> -> vector<8x512xf32>
    %328 = arith.addf %325, %327 : vector<8x512xf32>
    %329 = vector.extract_strided_slice %328 {offsets = [0, 0], sizes = [8, 384], strides = [1, 1]} : vector<8x512xf32> to vector<8x384xf32>
    %cst_112 = arith.constant 0.000000e+00 : f32
    %330 = vector.broadcast %cst_112 : f32 to vector<8x384xf32>
    %331 = arith.subf %330, %329 : vector<8x384xf32>
    %332 = math.exp %331 : vector<8x384xf32>
    %cst_113 = arith.constant 1.000000e+00 : f32
    %333 = vector.broadcast %cst_113 : f32 to vector<8x384xf32>
    %334 = arith.addf %333, %332 : vector<8x384xf32>
    %335 = tpu.reciprocal %334 {approx = true} : vector<8x384xf32> -> vector<8x384xf32>
    %336 = vector.extract_strided_slice %335 {offsets = [0, 0], sizes = [8, 128], strides = [1, 1]} : vector<8x384xf32> to vector<8x128xf32>
    %337 = vector.extract_strided_slice %335 {offsets = [0, 128], sizes = [8, 128], strides = [1, 1]} : vector<8x384xf32> to vector<8x128xf32>
    %338 = vector.extract_strided_slice %335 {offsets = [0, 256], sizes = [8, 128], strides = [1, 1]} : vector<8x384xf32> to vector<8x128xf32>
    %339 = vector.extract_strided_slice %328 {offsets = [0, 384], sizes = [8, 128], strides = [1, 1]} : vector<8x512xf32> to vector<8x128xf32>
    %340 = math.tanh %339 : vector<8x128xf32>
    %341 = arith.mulf %337, %316 : vector<8x128xf32>
    %342 = arith.mulf %336, %340 : vector<8x128xf32>
    %343 = arith.addf %341, %342 : vector<8x128xf32>
    %344 = math.tanh %343 : vector<8x128xf32>
    %345 = arith.mulf %338, %344 : vector<8x128xf32>
    %346 = arith.index_cast %c3_i32_108 : i32 to index
    %c0_114 = arith.constant 0 : index
    %c0_115 = arith.constant 0 : index
    %347 = vector.load %arg13[%346, %c0_114, %c0_115] : memref<8x8x128xf32, #tpu.memory_space<vmem>>, vector<1x8x128xf32>
    %348 = vector.shape_cast %347 : vector<1x8x128xf32> to vector<8x128xf32>
    %349 = vector.shape_cast %345 : vector<8x128xf32> to vector<1x8x128xf32>
    tpu.vector_store %arg13[%346, %c0_114, %c0_115], %349 {strides = array<i32>} : memref<8x8x128xf32, #tpu.memory_space<vmem>>, vector<1x8x128xf32>,
    %c4_i32_116 = arith.constant 4 : i32
    %350 = arith.index_cast %c4_i32_116 : i32 to index
    %c0_117 = arith.constant 0 : index
    %c0_118 = arith.constant 0 : index
    %351 = vector.load %arg12[%350, %c0_117, %c0_118] : memref<8x8x512xf32, #tpu.memory_space<vmem>>, vector<1x8x512xf32>
    %352 = vector.shape_cast %351 : vector<1x8x512xf32> to vector<8x512xf32>
    %353 = arith.truncf %345 : vector<8x128xf32> to vector<8x128xbf16>
    %cst_119 = arith.constant dense<0.000000e+00> : vector<8x512xf32>
    %354 = tpu.matmul %353, %230, %cst_119 {dimension_numbers = #tpu.dot_dimension_numbers<[1], [0], [0], [1], [0, 0, 1, 1], [], []>} : vector<8x128xbf16>, vector<128x512xbf16>, vector<8x512xf32> -> vector<8x512xf32>
    %355 = arith.addf %352, %354 : vector<8x512xf32>
    %356 = vector.extract_strided_slice %355 {offsets = [0, 0], sizes = [8, 384], strides = [1, 1]} : vector<8x512xf32> to vector<8x384xf32>
    %cst_120 = arith.constant 0.000000e+00 : f32
    %357 = vector.broadcast %cst_120 : f32 to vector<8x384xf32>
    %358 = arith.subf %357, %356 : vector<8x384xf32>
    %359 = math.exp %358 : vector<8x384xf32>
    %cst_121 = arith.constant 1.000000e+00 : f32
    %360 = vector.broadcast %cst_121 : f32 to vector<8x384xf32>
    %361 = arith.addf %360, %359 : vector<8x384xf32>
    %362 = tpu.reciprocal %361 {approx = true} : vector<8x384xf32> -> vector<8x384xf32>
    %363 = vector.extract_strided_slice %362 {offsets = [0, 0], sizes = [8, 128], strides = [1, 1]} : vector<8x384xf32> to vector<8x128xf32>
    %364 = vector.extract_strided_slice %362 {offsets = [0, 128], sizes = [8, 128], strides = [1, 1]} : vector<8x384xf32> to vector<8x128xf32>
    %365 = vector.extract_strided_slice %362 {offsets = [0, 256], sizes = [8, 128], strides = [1, 1]} : vector<8x384xf32> to vector<8x128xf32>
    %366 = vector.extract_strided_slice %355 {offsets = [0, 384], sizes = [8, 128], strides = [1, 1]} : vector<8x512xf32> to vector<8x128xf32>
    %367 = math.tanh %366 : vector<8x128xf32>
    %368 = arith.mulf %364, %343 : vector<8x128xf32>
    %369 = arith.mulf %363, %367 : vector<8x128xf32>
    %370 = arith.addf %368, %369 : vector<8x128xf32>
    %371 = math.tanh %370 : vector<8x128xf32>
    %372 = arith.mulf %365, %371 : vector<8x128xf32>
    %373 = arith.index_cast %c4_i32_116 : i32 to index
    %c0_122 = arith.constant 0 : index
    %c0_123 = arith.constant 0 : index
    %374 = vector.load %arg13[%373, %c0_122, %c0_123] : memref<8x8x128xf32, #tpu.memory_space<vmem>>, vector<1x8x128xf32>
    %375 = vector.shape_cast %374 : vector<1x8x128xf32> to vector<8x128xf32>
    %376 = vector.shape_cast %372 : vector<8x128xf32> to vector<1x8x128xf32>
    tpu.vector_store %arg13[%373, %c0_122, %c0_123], %376 {strides = array<i32>} : memref<8x8x128xf32, #tpu.memory_space<vmem>>, vector<1x8x128xf32>,
    %c5_i32_124 = arith.constant 5 : i32
    %377 = arith.index_cast %c5_i32_124 : i32 to index
    %c0_125 = arith.constant 0 : index
    %c0_126 = arith.constant 0 : index
    %378 = vector.load %arg12[%377, %c0_125, %c0_126] : memref<8x8x512xf32, #tpu.memory_space<vmem>>, vector<1x8x512xf32>
    %379 = vector.shape_cast %378 : vector<1x8x512xf32> to vector<8x512xf32>
    %380 = arith.truncf %372 : vector<8x128xf32> to vector<8x128xbf16>
    %cst_127 = arith.constant dense<0.000000e+00> : vector<8x512xf32>
    %381 = tpu.matmul %380, %230, %cst_127 {dimension_numbers = #tpu.dot_dimension_numbers<[1], [0], [0], [1], [0, 0, 1, 1], [], []>} : vector<8x128xbf16>, vector<128x512xbf16>, vector<8x512xf32> -> vector<8x512xf32>
    %382 = arith.addf %379, %381 : vector<8x512xf32>
    %383 = vector.extract_strided_slice %382 {offsets = [0, 0], sizes = [8, 384], strides = [1, 1]} : vector<8x512xf32> to vector<8x384xf32>
    %cst_128 = arith.constant 0.000000e+00 : f32
    %384 = vector.broadcast %cst_128 : f32 to vector<8x384xf32>
    %385 = arith.subf %384, %383 : vector<8x384xf32>
    %386 = math.exp %385 : vector<8x384xf32>
    %cst_129 = arith.constant 1.000000e+00 : f32
    %387 = vector.broadcast %cst_129 : f32 to vector<8x384xf32>
    %388 = arith.addf %387, %386 : vector<8x384xf32>
    %389 = tpu.reciprocal %388 {approx = true} : vector<8x384xf32> -> vector<8x384xf32>
    %390 = vector.extract_strided_slice %389 {offsets = [0, 0], sizes = [8, 128], strides = [1, 1]} : vector<8x384xf32> to vector<8x128xf32>
    %391 = vector.extract_strided_slice %389 {offsets = [0, 128], sizes = [8, 128], strides = [1, 1]} : vector<8x384xf32> to vector<8x128xf32>
    %392 = vector.extract_strided_slice %389 {offsets = [0, 256], sizes = [8, 128], strides = [1, 1]} : vector<8x384xf32> to vector<8x128xf32>
    %393 = vector.extract_strided_slice %382 {offsets = [0, 384], sizes = [8, 128], strides = [1, 1]} : vector<8x512xf32> to vector<8x128xf32>
    %394 = math.tanh %393 : vector<8x128xf32>
    %395 = arith.mulf %391, %370 : vector<8x128xf32>
    %396 = arith.mulf %390, %394 : vector<8x128xf32>
    %397 = arith.addf %395, %396 : vector<8x128xf32>
    %398 = math.tanh %397 : vector<8x128xf32>
    %399 = arith.mulf %392, %398 : vector<8x128xf32>
    %400 = arith.index_cast %c5_i32_124 : i32 to index
    %c0_130 = arith.constant 0 : index
    %c0_131 = arith.constant 0 : index
    %401 = vector.load %arg13[%400, %c0_130, %c0_131] : memref<8x8x128xf32, #tpu.memory_space<vmem>>, vector<1x8x128xf32>
    %402 = vector.shape_cast %401 : vector<1x8x128xf32> to vector<8x128xf32>
    %403 = vector.shape_cast %399 : vector<8x128xf32> to vector<1x8x128xf32>
    tpu.vector_store %arg13[%400, %c0_130, %c0_131], %403 {strides = array<i32>} : memref<8x8x128xf32, #tpu.memory_space<vmem>>, vector<1x8x128xf32>,
    %c6_i32_132 = arith.constant 6 : i32
    %404 = arith.index_cast %c6_i32_132 : i32 to index
    %c0_133 = arith.constant 0 : index
    %c0_134 = arith.constant 0 : index
    %405 = vector.load %arg12[%404, %c0_133, %c0_134] : memref<8x8x512xf32, #tpu.memory_space<vmem>>, vector<1x8x512xf32>
    %406 = vector.shape_cast %405 : vector<1x8x512xf32> to vector<8x512xf32>
    %407 = arith.truncf %399 : vector<8x128xf32> to vector<8x128xbf16>
    %cst_135 = arith.constant dense<0.000000e+00> : vector<8x512xf32>
    %408 = tpu.matmul %407, %230, %cst_135 {dimension_numbers = #tpu.dot_dimension_numbers<[1], [0], [0], [1], [0, 0, 1, 1], [], []>} : vector<8x128xbf16>, vector<128x512xbf16>, vector<8x512xf32> -> vector<8x512xf32>
    %409 = arith.addf %406, %408 : vector<8x512xf32>
    %410 = vector.extract_strided_slice %409 {offsets = [0, 0], sizes = [8, 384], strides = [1, 1]} : vector<8x512xf32> to vector<8x384xf32>
    %cst_136 = arith.constant 0.000000e+00 : f32
    %411 = vector.broadcast %cst_136 : f32 to vector<8x384xf32>
    %412 = arith.subf %411, %410 : vector<8x384xf32>
    %413 = math.exp %412 : vector<8x384xf32>
    %cst_137 = arith.constant 1.000000e+00 : f32
    %414 = vector.broadcast %cst_137 : f32 to vector<8x384xf32>
    %415 = arith.addf %414, %413 : vector<8x384xf32>
    %416 = tpu.reciprocal %415 {approx = true} : vector<8x384xf32> -> vector<8x384xf32>
    %417 = vector.extract_strided_slice %416 {offsets = [0, 0], sizes = [8, 128], strides = [1, 1]} : vector<8x384xf32> to vector<8x128xf32>
    %418 = vector.extract_strided_slice %416 {offsets = [0, 128], sizes = [8, 128], strides = [1, 1]} : vector<8x384xf32> to vector<8x128xf32>
    %419 = vector.extract_strided_slice %416 {offsets = [0, 256], sizes = [8, 128], strides = [1, 1]} : vector<8x384xf32> to vector<8x128xf32>
    %420 = vector.extract_strided_slice %409 {offsets = [0, 384], sizes = [8, 128], strides = [1, 1]} : vector<8x512xf32> to vector<8x128xf32>
    %421 = math.tanh %420 : vector<8x128xf32>
    %422 = arith.mulf %418, %397 : vector<8x128xf32>
    %423 = arith.mulf %417, %421 : vector<8x128xf32>
    %424 = arith.addf %422, %423 : vector<8x128xf32>
    %425 = math.tanh %424 : vector<8x128xf32>
    %426 = arith.mulf %419, %425 : vector<8x128xf32>
    %427 = arith.index_cast %c6_i32_132 : i32 to index
    %c0_138 = arith.constant 0 : index
    %c0_139 = arith.constant 0 : index
    %428 = vector.load %arg13[%427, %c0_138, %c0_139] : memref<8x8x128xf32, #tpu.memory_space<vmem>>, vector<1x8x128xf32>
    %429 = vector.shape_cast %428 : vector<1x8x128xf32> to vector<8x128xf32>
    %430 = vector.shape_cast %426 : vector<8x128xf32> to vector<1x8x128xf32>
    tpu.vector_store %arg13[%427, %c0_138, %c0_139], %430 {strides = array<i32>} : memref<8x8x128xf32, #tpu.memory_space<vmem>>, vector<1x8x128xf32>,
    %c7_i32_140 = arith.constant 7 : i32
    %431 = arith.index_cast %c7_i32_140 : i32 to index
    %c0_141 = arith.constant 0 : index
    %c0_142 = arith.constant 0 : index
    %432 = vector.load %arg12[%431, %c0_141, %c0_142] : memref<8x8x512xf32, #tpu.memory_space<vmem>>, vector<1x8x512xf32>
    %433 = vector.shape_cast %432 : vector<1x8x512xf32> to vector<8x512xf32>
    %434 = arith.truncf %426 : vector<8x128xf32> to vector<8x128xbf16>
    %cst_143 = arith.constant dense<0.000000e+00> : vector<8x512xf32>
    %435 = tpu.matmul %434, %230, %cst_143 {dimension_numbers = #tpu.dot_dimension_numbers<[1], [0], [0], [1], [0, 0, 1, 1], [], []>} : vector<8x128xbf16>, vector<128x512xbf16>, vector<8x512xf32> -> vector<8x512xf32>
    %436 = arith.addf %433, %435 : vector<8x512xf32>
    %437 = vector.extract_strided_slice %436 {offsets = [0, 0], sizes = [8, 384], strides = [1, 1]} : vector<8x512xf32> to vector<8x384xf32>
    %cst_144 = arith.constant 0.000000e+00 : f32
    %438 = vector.broadcast %cst_144 : f32 to vector<8x384xf32>
    %439 = arith.subf %438, %437 : vector<8x384xf32>
    %440 = math.exp %439 : vector<8x384xf32>
    %cst_145 = arith.constant 1.000000e+00 : f32
    %441 = vector.broadcast %cst_145 : f32 to vector<8x384xf32>
    %442 = arith.addf %441, %440 : vector<8x384xf32>
    %443 = tpu.reciprocal %442 {approx = true} : vector<8x384xf32> -> vector<8x384xf32>
    %444 = vector.extract_strided_slice %443 {offsets = [0, 0], sizes = [8, 128], strides = [1, 1]} : vector<8x384xf32> to vector<8x128xf32>
    %445 = vector.extract_strided_slice %443 {offsets = [0, 128], sizes = [8, 128], strides = [1, 1]} : vector<8x384xf32> to vector<8x128xf32>
    %446 = vector.extract_strided_slice %443 {offsets = [0, 256], sizes = [8, 128], strides = [1, 1]} : vector<8x384xf32> to vector<8x128xf32>
    %447 = vector.extract_strided_slice %436 {offsets = [0, 384], sizes = [8, 128], strides = [1, 1]} : vector<8x512xf32> to vector<8x128xf32>
    %448 = math.tanh %447 : vector<8x128xf32>
    %449 = arith.mulf %445, %424 : vector<8x128xf32>
    %450 = arith.mulf %444, %448 : vector<8x128xf32>
    %451 = arith.addf %449, %450 : vector<8x128xf32>
    %452 = math.tanh %451 : vector<8x128xf32>
    %453 = arith.mulf %446, %452 : vector<8x128xf32>
    %454 = arith.index_cast %c7_i32_140 : i32 to index
    %c0_146 = arith.constant 0 : index
    %c0_147 = arith.constant 0 : index
    %455 = vector.load %arg13[%454, %c0_146, %c0_147] : memref<8x8x128xf32, #tpu.memory_space<vmem>>, vector<1x8x128xf32>
    %456 = vector.shape_cast %455 : vector<1x8x128xf32> to vector<8x128xf32>
    %457 = vector.shape_cast %453 : vector<8x128xf32> to vector<1x8x128xf32>
    tpu.vector_store %arg13[%454, %c0_146, %c0_147], %457 {strides = array<i32>} : memref<8x8x128xf32, #tpu.memory_space<vmem>>, vector<1x8x128xf32>,
    %c8_i32_148 = arith.constant 8 : i32
    %c0_149 = arith.constant 0 : index
    %c0_150 = arith.constant 0 : index
    %458 = vector.load %arg8[%c0_149, %c0_150] : memref<128x512xbf16, #tpu.memory_space<vmem>>, vector<128x512xbf16>
    %c0_151 = arith.constant 0 : index
    %c0_152 = arith.constant 0 : index
    %459 = vector.load %arg9[%c0_151, %c0_152] : memref<128x512xbf16, #tpu.memory_space<vmem>>, vector<128x512xbf16>
    %c0_153 = arith.constant 0 : index
    %c0_154 = arith.constant 0 : index
    %460 = vector.load %arg10[%c0_153, %c0_154] : memref<1x512xf32, #tpu.memory_space<vmem>>, vector<1x512xf32>
    %c0_155 = arith.constant 0 : index
    %c0_156 = arith.constant 0 : index
    %c0_157 = arith.constant 0 : index
    %461 = vector.load %arg13[%c0_155, %c0_156, %c0_157] : memref<8x8x128xf32, #tpu.memory_space<vmem>>, vector<8x8x128xf32>
    %462 = vector.shape_cast %461 : vector<8x8x128xf32> to vector<64x128xf32>
    %463 = arith.truncf %462 : vector<64x128xf32> to vector<64x128xbf16>
    %cst_158 = arith.constant dense<0.000000e+00> : vector<64x512xf32>
    %464 = tpu.matmul %463, %458, %cst_158 {dimension_numbers = #tpu.dot_dimension_numbers<[1], [0], [0], [1], [0, 0, 1, 1], [], []>} : vector<64x128xbf16>, vector<128x512xbf16>, vector<64x512xf32> -> vector<64x512xf32>
    %465 = vector.broadcast %460 : vector<1x512xf32> to vector<64x512xf32>
    %466 = arith.addf %464, %465 : vector<64x512xf32>
    %467 = vector.shape_cast %466 : vector<64x512xf32> to vector<8x8x512xf32>
    %c0_159 = arith.constant 0 : index
    %c0_160 = arith.constant 0 : index
    %c0_161 = arith.constant 0 : index
    %468 = vector.load %arg12[%c0_159, %c0_160, %c0_161] : memref<8x8x512xf32, #tpu.memory_space<vmem>>, vector<8x8x512xf32>
    tpu.vector_store %arg12[%c0_159, %c0_160, %c0_161], %467 {strides = array<i32>} : memref<8x8x512xf32, #tpu.memory_space<vmem>>, vector<8x8x512xf32>,
    %cst_162 = arith.constant 0.000000e+00 : f32
    %469 = vector.broadcast %cst_162 : f32 to vector<8x128xf32>
    %cst_163 = arith.constant 0.000000e+00 : f32
    %470 = vector.broadcast %cst_163 : f32 to vector<8x128xf32>
    %c0_i32_164 = arith.constant 0 : i32
    %471 = arith.index_cast %c0_i32_164 : i32 to index
    %c0_165 = arith.constant 0 : index
    %c0_166 = arith.constant 0 : index
    %472 = vector.load %arg12[%471, %c0_165, %c0_166] : memref<8x8x512xf32, #tpu.memory_space<vmem>>, vector<1x8x512xf32>
    %473 = vector.shape_cast %472 : vector<1x8x512xf32> to vector<8x512xf32>
    %474 = arith.truncf %469 : vector<8x128xf32> to vector<8x128xbf16>
    %cst_167 = arith.constant dense<0.000000e+00> : vector<8x512xf32>
    %475 = tpu.matmul %474, %459, %cst_167 {dimension_numbers = #tpu.dot_dimension_numbers<[1], [0], [0], [1], [0, 0, 1, 1], [], []>} : vector<8x128xbf16>, vector<128x512xbf16>, vector<8x512xf32> -> vector<8x512xf32>
    %476 = arith.addf %473, %475 : vector<8x512xf32>
    %477 = vector.extract_strided_slice %476 {offsets = [0, 0], sizes = [8, 384], strides = [1, 1]} : vector<8x512xf32> to vector<8x384xf32>
    %cst_168 = arith.constant 0.000000e+00 : f32
    %478 = vector.broadcast %cst_168 : f32 to vector<8x384xf32>
    %479 = arith.subf %478, %477 : vector<8x384xf32>
    %480 = math.exp %479 : vector<8x384xf32>
    %cst_169 = arith.constant 1.000000e+00 : f32
    %481 = vector.broadcast %cst_169 : f32 to vector<8x384xf32>
    %482 = arith.addf %481, %480 : vector<8x384xf32>
    %483 = tpu.reciprocal %482 {approx = true} : vector<8x384xf32> -> vector<8x384xf32>
    %484 = vector.extract_strided_slice %483 {offsets = [0, 0], sizes = [8, 128], strides = [1, 1]} : vector<8x384xf32> to vector<8x128xf32>
    %485 = vector.extract_strided_slice %483 {offsets = [0, 128], sizes = [8, 128], strides = [1, 1]} : vector<8x384xf32> to vector<8x128xf32>
    %486 = vector.extract_strided_slice %483 {offsets = [0, 256], sizes = [8, 128], strides = [1, 1]} : vector<8x384xf32> to vector<8x128xf32>
    %487 = vector.extract_strided_slice %476 {offsets = [0, 384], sizes = [8, 128], strides = [1, 1]} : vector<8x512xf32> to vector<8x128xf32>
    %488 = math.tanh %487 : vector<8x128xf32>
    %489 = arith.mulf %485, %470 : vector<8x128xf32>
    %490 = arith.mulf %484, %488 : vector<8x128xf32>
    %491 = arith.addf %489, %490 : vector<8x128xf32>
    %492 = math.tanh %491 : vector<8x128xf32>
    %493 = arith.mulf %486, %492 : vector<8x128xf32>
    %494 = arith.index_cast %c0_i32_164 : i32 to index
    %c0_170 = arith.constant 0 : index
    %c0_171 = arith.constant 0 : index
    %495 = vector.load %arg11[%494, %c0_170, %c0_171] : memref<8x8x128xf32, #tpu.memory_space<vmem>>, vector<1x8x128xf32>
    %496 = vector.shape_cast %495 : vector<1x8x128xf32> to vector<8x128xf32>
    %497 = vector.shape_cast %493 : vector<8x128xf32> to vector<1x8x128xf32>
    tpu.vector_store %arg11[%494, %c0_170, %c0_171], %497 {strides = array<i32>} : memref<8x8x128xf32, #tpu.memory_space<vmem>>, vector<1x8x128xf32>,
    %c1_i32_172 = arith.constant 1 : i32
    %498 = arith.index_cast %c1_i32_172 : i32 to index
    %c0_173 = arith.constant 0 : index
    %c0_174 = arith.constant 0 : index
    %499 = vector.load %arg12[%498, %c0_173, %c0_174] : memref<8x8x512xf32, #tpu.memory_space<vmem>>, vector<1x8x512xf32>
    %500 = vector.shape_cast %499 : vector<1x8x512xf32> to vector<8x512xf32>
    %501 = arith.truncf %493 : vector<8x128xf32> to vector<8x128xbf16>
    %cst_175 = arith.constant dense<0.000000e+00> : vector<8x512xf32>
    %502 = tpu.matmul %501, %459, %cst_175 {dimension_numbers = #tpu.dot_dimension_numbers<[1], [0], [0], [1], [0, 0, 1, 1], [], []>} : vector<8x128xbf16>, vector<128x512xbf16>, vector<8x512xf32> -> vector<8x512xf32>
    %503 = arith.addf %500, %502 : vector<8x512xf32>
    %504 = vector.extract_strided_slice %503 {offsets = [0, 0], sizes = [8, 384], strides = [1, 1]} : vector<8x512xf32> to vector<8x384xf32>
    %cst_176 = arith.constant 0.000000e+00 : f32
    %505 = vector.broadcast %cst_176 : f32 to vector<8x384xf32>
    %506 = arith.subf %505, %504 : vector<8x384xf32>
    %507 = math.exp %506 : vector<8x384xf32>
    %cst_177 = arith.constant 1.000000e+00 : f32
    %508 = vector.broadcast %cst_177 : f32 to vector<8x384xf32>
    %509 = arith.addf %508, %507 : vector<8x384xf32>
    %510 = tpu.reciprocal %509 {approx = true} : vector<8x384xf32> -> vector<8x384xf32>
    %511 = vector.extract_strided_slice %510 {offsets = [0, 0], sizes = [8, 128], strides = [1, 1]} : vector<8x384xf32> to vector<8x128xf32>
    %512 = vector.extract_strided_slice %510 {offsets = [0, 128], sizes = [8, 128], strides = [1, 1]} : vector<8x384xf32> to vector<8x128xf32>
    %513 = vector.extract_strided_slice %510 {offsets = [0, 256], sizes = [8, 128], strides = [1, 1]} : vector<8x384xf32> to vector<8x128xf32>
    %514 = vector.extract_strided_slice %503 {offsets = [0, 384], sizes = [8, 128], strides = [1, 1]} : vector<8x512xf32> to vector<8x128xf32>
    %515 = math.tanh %514 : vector<8x128xf32>
    %516 = arith.mulf %512, %491 : vector<8x128xf32>
    %517 = arith.mulf %511, %515 : vector<8x128xf32>
    %518 = arith.addf %516, %517 : vector<8x128xf32>
    %519 = math.tanh %518 : vector<8x128xf32>
    %520 = arith.mulf %513, %519 : vector<8x128xf32>
    %521 = arith.index_cast %c1_i32_172 : i32 to index
    %c0_178 = arith.constant 0 : index
    %c0_179 = arith.constant 0 : index
    %522 = vector.load %arg11[%521, %c0_178, %c0_179] : memref<8x8x128xf32, #tpu.memory_space<vmem>>, vector<1x8x128xf32>
    %523 = vector.shape_cast %522 : vector<1x8x128xf32> to vector<8x128xf32>
    %524 = vector.shape_cast %520 : vector<8x128xf32> to vector<1x8x128xf32>
    tpu.vector_store %arg11[%521, %c0_178, %c0_179], %524 {strides = array<i32>} : memref<8x8x128xf32, #tpu.memory_space<vmem>>, vector<1x8x128xf32>,
    %c2_i32_180 = arith.constant 2 : i32
    %525 = arith.index_cast %c2_i32_180 : i32 to index
    %c0_181 = arith.constant 0 : index
    %c0_182 = arith.constant 0 : index
    %526 = vector.load %arg12[%525, %c0_181, %c0_182] : memref<8x8x512xf32, #tpu.memory_space<vmem>>, vector<1x8x512xf32>
    %527 = vector.shape_cast %526 : vector<1x8x512xf32> to vector<8x512xf32>
    %528 = arith.truncf %520 : vector<8x128xf32> to vector<8x128xbf16>
    %cst_183 = arith.constant dense<0.000000e+00> : vector<8x512xf32>
    %529 = tpu.matmul %528, %459, %cst_183 {dimension_numbers = #tpu.dot_dimension_numbers<[1], [0], [0], [1], [0, 0, 1, 1], [], []>} : vector<8x128xbf16>, vector<128x512xbf16>, vector<8x512xf32> -> vector<8x512xf32>
    %530 = arith.addf %527, %529 : vector<8x512xf32>
    %531 = vector.extract_strided_slice %530 {offsets = [0, 0], sizes = [8, 384], strides = [1, 1]} : vector<8x512xf32> to vector<8x384xf32>
    %cst_184 = arith.constant 0.000000e+00 : f32
    %532 = vector.broadcast %cst_184 : f32 to vector<8x384xf32>
    %533 = arith.subf %532, %531 : vector<8x384xf32>
    %534 = math.exp %533 : vector<8x384xf32>
    %cst_185 = arith.constant 1.000000e+00 : f32
    %535 = vector.broadcast %cst_185 : f32 to vector<8x384xf32>
    %536 = arith.addf %535, %534 : vector<8x384xf32>
    %537 = tpu.reciprocal %536 {approx = true} : vector<8x384xf32> -> vector<8x384xf32>
    %538 = vector.extract_strided_slice %537 {offsets = [0, 0], sizes = [8, 128], strides = [1, 1]} : vector<8x384xf32> to vector<8x128xf32>
    %539 = vector.extract_strided_slice %537 {offsets = [0, 128], sizes = [8, 128], strides = [1, 1]} : vector<8x384xf32> to vector<8x128xf32>
    %540 = vector.extract_strided_slice %537 {offsets = [0, 256], sizes = [8, 128], strides = [1, 1]} : vector<8x384xf32> to vector<8x128xf32>
    %541 = vector.extract_strided_slice %530 {offsets = [0, 384], sizes = [8, 128], strides = [1, 1]} : vector<8x512xf32> to vector<8x128xf32>
    %542 = math.tanh %541 : vector<8x128xf32>
    %543 = arith.mulf %539, %518 : vector<8x128xf32>
    %544 = arith.mulf %538, %542 : vector<8x128xf32>
    %545 = arith.addf %543, %544 : vector<8x128xf32>
    %546 = math.tanh %545 : vector<8x128xf32>
    %547 = arith.mulf %540, %546 : vector<8x128xf32>
    %548 = arith.index_cast %c2_i32_180 : i32 to index
    %c0_186 = arith.constant 0 : index
    %c0_187 = arith.constant 0 : index
    %549 = vector.load %arg11[%548, %c0_186, %c0_187] : memref<8x8x128xf32, #tpu.memory_space<vmem>>, vector<1x8x128xf32>
    %550 = vector.shape_cast %549 : vector<1x8x128xf32> to vector<8x128xf32>
    %551 = vector.shape_cast %547 : vector<8x128xf32> to vector<1x8x128xf32>
    tpu.vector_store %arg11[%548, %c0_186, %c0_187], %551 {strides = array<i32>} : memref<8x8x128xf32, #tpu.memory_space<vmem>>, vector<1x8x128xf32>,
    %c3_i32_188 = arith.constant 3 : i32
    %552 = arith.index_cast %c3_i32_188 : i32 to index
    %c0_189 = arith.constant 0 : index
    %c0_190 = arith.constant 0 : index
    %553 = vector.load %arg12[%552, %c0_189, %c0_190] : memref<8x8x512xf32, #tpu.memory_space<vmem>>, vector<1x8x512xf32>
    %554 = vector.shape_cast %553 : vector<1x8x512xf32> to vector<8x512xf32>
    %555 = arith.truncf %547 : vector<8x128xf32> to vector<8x128xbf16>
    %cst_191 = arith.constant dense<0.000000e+00> : vector<8x512xf32>
    %556 = tpu.matmul %555, %459, %cst_191 {dimension_numbers = #tpu.dot_dimension_numbers<[1], [0], [0], [1], [0, 0, 1, 1], [], []>} : vector<8x128xbf16>, vector<128x512xbf16>, vector<8x512xf32> -> vector<8x512xf32>
    %557 = arith.addf %554, %556 : vector<8x512xf32>
    %558 = vector.extract_strided_slice %557 {offsets = [0, 0], sizes = [8, 384], strides = [1, 1]} : vector<8x512xf32> to vector<8x384xf32>
    %cst_192 = arith.constant 0.000000e+00 : f32
    %559 = vector.broadcast %cst_192 : f32 to vector<8x384xf32>
    %560 = arith.subf %559, %558 : vector<8x384xf32>
    %561 = math.exp %560 : vector<8x384xf32>
    %cst_193 = arith.constant 1.000000e+00 : f32
    %562 = vector.broadcast %cst_193 : f32 to vector<8x384xf32>
    %563 = arith.addf %562, %561 : vector<8x384xf32>
    %564 = tpu.reciprocal %563 {approx = true} : vector<8x384xf32> -> vector<8x384xf32>
    %565 = vector.extract_strided_slice %564 {offsets = [0, 0], sizes = [8, 128], strides = [1, 1]} : vector<8x384xf32> to vector<8x128xf32>
    %566 = vector.extract_strided_slice %564 {offsets = [0, 128], sizes = [8, 128], strides = [1, 1]} : vector<8x384xf32> to vector<8x128xf32>
    %567 = vector.extract_strided_slice %564 {offsets = [0, 256], sizes = [8, 128], strides = [1, 1]} : vector<8x384xf32> to vector<8x128xf32>
    %568 = vector.extract_strided_slice %557 {offsets = [0, 384], sizes = [8, 128], strides = [1, 1]} : vector<8x512xf32> to vector<8x128xf32>
    %569 = math.tanh %568 : vector<8x128xf32>
    %570 = arith.mulf %566, %545 : vector<8x128xf32>
    %571 = arith.mulf %565, %569 : vector<8x128xf32>
    %572 = arith.addf %570, %571 : vector<8x128xf32>
    %573 = math.tanh %572 : vector<8x128xf32>
    %574 = arith.mulf %567, %573 : vector<8x128xf32>
    %575 = arith.index_cast %c3_i32_188 : i32 to index
    %c0_194 = arith.constant 0 : index
    %c0_195 = arith.constant 0 : index
    %576 = vector.load %arg11[%575, %c0_194, %c0_195] : memref<8x8x128xf32, #tpu.memory_space<vmem>>, vector<1x8x128xf32>
    %577 = vector.shape_cast %576 : vector<1x8x128xf32> to vector<8x128xf32>
    %578 = vector.shape_cast %574 : vector<8x128xf32> to vector<1x8x128xf32>
    tpu.vector_store %arg11[%575, %c0_194, %c0_195], %578 {strides = array<i32>} : memref<8x8x128xf32, #tpu.memory_space<vmem>>, vector<1x8x128xf32>,
    %c4_i32_196 = arith.constant 4 : i32
    %579 = arith.index_cast %c4_i32_196 : i32 to index
    %c0_197 = arith.constant 0 : index
    %c0_198 = arith.constant 0 : index
    %580 = vector.load %arg12[%579, %c0_197, %c0_198] : memref<8x8x512xf32, #tpu.memory_space<vmem>>, vector<1x8x512xf32>
    %581 = vector.shape_cast %580 : vector<1x8x512xf32> to vector<8x512xf32>
    %582 = arith.truncf %574 : vector<8x128xf32> to vector<8x128xbf16>
    %cst_199 = arith.constant dense<0.000000e+00> : vector<8x512xf32>
    %583 = tpu.matmul %582, %459, %cst_199 {dimension_numbers = #tpu.dot_dimension_numbers<[1], [0], [0], [1], [0, 0, 1, 1], [], []>} : vector<8x128xbf16>, vector<128x512xbf16>, vector<8x512xf32> -> vector<8x512xf32>
    %584 = arith.addf %581, %583 : vector<8x512xf32>
    %585 = vector.extract_strided_slice %584 {offsets = [0, 0], sizes = [8, 384], strides = [1, 1]} : vector<8x512xf32> to vector<8x384xf32>
    %cst_200 = arith.constant 0.000000e+00 : f32
    %586 = vector.broadcast %cst_200 : f32 to vector<8x384xf32>
    %587 = arith.subf %586, %585 : vector<8x384xf32>
    %588 = math.exp %587 : vector<8x384xf32>
    %cst_201 = arith.constant 1.000000e+00 : f32
    %589 = vector.broadcast %cst_201 : f32 to vector<8x384xf32>
    %590 = arith.addf %589, %588 : vector<8x384xf32>
    %591 = tpu.reciprocal %590 {approx = true} : vector<8x384xf32> -> vector<8x384xf32>
    %592 = vector.extract_strided_slice %591 {offsets = [0, 0], sizes = [8, 128], strides = [1, 1]} : vector<8x384xf32> to vector<8x128xf32>
    %593 = vector.extract_strided_slice %591 {offsets = [0, 128], sizes = [8, 128], strides = [1, 1]} : vector<8x384xf32> to vector<8x128xf32>
    %594 = vector.extract_strided_slice %591 {offsets = [0, 256], sizes = [8, 128], strides = [1, 1]} : vector<8x384xf32> to vector<8x128xf32>
    %595 = vector.extract_strided_slice %584 {offsets = [0, 384], sizes = [8, 128], strides = [1, 1]} : vector<8x512xf32> to vector<8x128xf32>
    %596 = math.tanh %595 : vector<8x128xf32>
    %597 = arith.mulf %593, %572 : vector<8x128xf32>
    %598 = arith.mulf %592, %596 : vector<8x128xf32>
    %599 = arith.addf %597, %598 : vector<8x128xf32>
    %600 = math.tanh %599 : vector<8x128xf32>
    %601 = arith.mulf %594, %600 : vector<8x128xf32>
    %602 = arith.index_cast %c4_i32_196 : i32 to index
    %c0_202 = arith.constant 0 : index
    %c0_203 = arith.constant 0 : index
    %603 = vector.load %arg11[%602, %c0_202, %c0_203] : memref<8x8x128xf32, #tpu.memory_space<vmem>>, vector<1x8x128xf32>
    %604 = vector.shape_cast %603 : vector<1x8x128xf32> to vector<8x128xf32>
    %605 = vector.shape_cast %601 : vector<8x128xf32> to vector<1x8x128xf32>
    tpu.vector_store %arg11[%602, %c0_202, %c0_203], %605 {strides = array<i32>} : memref<8x8x128xf32, #tpu.memory_space<vmem>>, vector<1x8x128xf32>,
    %c5_i32_204 = arith.constant 5 : i32
    %606 = arith.index_cast %c5_i32_204 : i32 to index
    %c0_205 = arith.constant 0 : index
    %c0_206 = arith.constant 0 : index
    %607 = vector.load %arg12[%606, %c0_205, %c0_206] : memref<8x8x512xf32, #tpu.memory_space<vmem>>, vector<1x8x512xf32>
    %608 = vector.shape_cast %607 : vector<1x8x512xf32> to vector<8x512xf32>
    %609 = arith.truncf %601 : vector<8x128xf32> to vector<8x128xbf16>
    %cst_207 = arith.constant dense<0.000000e+00> : vector<8x512xf32>
    %610 = tpu.matmul %609, %459, %cst_207 {dimension_numbers = #tpu.dot_dimension_numbers<[1], [0], [0], [1], [0, 0, 1, 1], [], []>} : vector<8x128xbf16>, vector<128x512xbf16>, vector<8x512xf32> -> vector<8x512xf32>
    %611 = arith.addf %608, %610 : vector<8x512xf32>
    %612 = vector.extract_strided_slice %611 {offsets = [0, 0], sizes = [8, 384], strides = [1, 1]} : vector<8x512xf32> to vector<8x384xf32>
    %cst_208 = arith.constant 0.000000e+00 : f32
    %613 = vector.broadcast %cst_208 : f32 to vector<8x384xf32>
    %614 = arith.subf %613, %612 : vector<8x384xf32>
    %615 = math.exp %614 : vector<8x384xf32>
    %cst_209 = arith.constant 1.000000e+00 : f32
    %616 = vector.broadcast %cst_209 : f32 to vector<8x384xf32>
    %617 = arith.addf %616, %615 : vector<8x384xf32>
    %618 = tpu.reciprocal %617 {approx = true} : vector<8x384xf32> -> vector<8x384xf32>
    %619 = vector.extract_strided_slice %618 {offsets = [0, 0], sizes = [8, 128], strides = [1, 1]} : vector<8x384xf32> to vector<8x128xf32>
    %620 = vector.extract_strided_slice %618 {offsets = [0, 128], sizes = [8, 128], strides = [1, 1]} : vector<8x384xf32> to vector<8x128xf32>
    %621 = vector.extract_strided_slice %618 {offsets = [0, 256], sizes = [8, 128], strides = [1, 1]} : vector<8x384xf32> to vector<8x128xf32>
    %622 = vector.extract_strided_slice %611 {offsets = [0, 384], sizes = [8, 128], strides = [1, 1]} : vector<8x512xf32> to vector<8x128xf32>
    %623 = math.tanh %622 : vector<8x128xf32>
    %624 = arith.mulf %620, %599 : vector<8x128xf32>
    %625 = arith.mulf %619, %623 : vector<8x128xf32>
    %626 = arith.addf %624, %625 : vector<8x128xf32>
    %627 = math.tanh %626 : vector<8x128xf32>
    %628 = arith.mulf %621, %627 : vector<8x128xf32>
    %629 = arith.index_cast %c5_i32_204 : i32 to index
    %c0_210 = arith.constant 0 : index
    %c0_211 = arith.constant 0 : index
    %630 = vector.load %arg11[%629, %c0_210, %c0_211] : memref<8x8x128xf32, #tpu.memory_space<vmem>>, vector<1x8x128xf32>
    %631 = vector.shape_cast %630 : vector<1x8x128xf32> to vector<8x128xf32>
    %632 = vector.shape_cast %628 : vector<8x128xf32> to vector<1x8x128xf32>
    tpu.vector_store %arg11[%629, %c0_210, %c0_211], %632 {strides = array<i32>} : memref<8x8x128xf32, #tpu.memory_space<vmem>>, vector<1x8x128xf32>,
    %c6_i32_212 = arith.constant 6 : i32
    %633 = arith.index_cast %c6_i32_212 : i32 to index
    %c0_213 = arith.constant 0 : index
    %c0_214 = arith.constant 0 : index
    %634 = vector.load %arg12[%633, %c0_213, %c0_214] : memref<8x8x512xf32, #tpu.memory_space<vmem>>, vector<1x8x512xf32>
    %635 = vector.shape_cast %634 : vector<1x8x512xf32> to vector<8x512xf32>
    %636 = arith.truncf %628 : vector<8x128xf32> to vector<8x128xbf16>
    %cst_215 = arith.constant dense<0.000000e+00> : vector<8x512xf32>
    %637 = tpu.matmul %636, %459, %cst_215 {dimension_numbers = #tpu.dot_dimension_numbers<[1], [0], [0], [1], [0, 0, 1, 1], [], []>} : vector<8x128xbf16>, vector<128x512xbf16>, vector<8x512xf32> -> vector<8x512xf32>
    %638 = arith.addf %635, %637 : vector<8x512xf32>
    %639 = vector.extract_strided_slice %638 {offsets = [0, 0], sizes = [8, 384], strides = [1, 1]} : vector<8x512xf32> to vector<8x384xf32>
    %cst_216 = arith.constant 0.000000e+00 : f32
    %640 = vector.broadcast %cst_216 : f32 to vector<8x384xf32>
    %641 = arith.subf %640, %639 : vector<8x384xf32>
    %642 = math.exp %641 : vector<8x384xf32>
    %cst_217 = arith.constant 1.000000e+00 : f32
    %643 = vector.broadcast %cst_217 : f32 to vector<8x384xf32>
    %644 = arith.addf %643, %642 : vector<8x384xf32>
    %645 = tpu.reciprocal %644 {approx = true} : vector<8x384xf32> -> vector<8x384xf32>
    %646 = vector.extract_strided_slice %645 {offsets = [0, 0], sizes = [8, 128], strides = [1, 1]} : vector<8x384xf32> to vector<8x128xf32>
    %647 = vector.extract_strided_slice %645 {offsets = [0, 128], sizes = [8, 128], strides = [1, 1]} : vector<8x384xf32> to vector<8x128xf32>
    %648 = vector.extract_strided_slice %645 {offsets = [0, 256], sizes = [8, 128], strides = [1, 1]} : vector<8x384xf32> to vector<8x128xf32>
    %649 = vector.extract_strided_slice %638 {offsets = [0, 384], sizes = [8, 128], strides = [1, 1]} : vector<8x512xf32> to vector<8x128xf32>
    %650 = math.tanh %649 : vector<8x128xf32>
    %651 = arith.mulf %647, %626 : vector<8x128xf32>
    %652 = arith.mulf %646, %650 : vector<8x128xf32>
    %653 = arith.addf %651, %652 : vector<8x128xf32>
    %654 = math.tanh %653 : vector<8x128xf32>
    %655 = arith.mulf %648, %654 : vector<8x128xf32>
    %656 = arith.index_cast %c6_i32_212 : i32 to index
    %c0_218 = arith.constant 0 : index
    %c0_219 = arith.constant 0 : index
    %657 = vector.load %arg11[%656, %c0_218, %c0_219] : memref<8x8x128xf32, #tpu.memory_space<vmem>>, vector<1x8x128xf32>
    %658 = vector.shape_cast %657 : vector<1x8x128xf32> to vector<8x128xf32>
    %659 = vector.shape_cast %655 : vector<8x128xf32> to vector<1x8x128xf32>
    tpu.vector_store %arg11[%656, %c0_218, %c0_219], %659 {strides = array<i32>} : memref<8x8x128xf32, #tpu.memory_space<vmem>>, vector<1x8x128xf32>,
    %c7_i32_220 = arith.constant 7 : i32
    %660 = arith.index_cast %c7_i32_220 : i32 to index
    %c0_221 = arith.constant 0 : index
    %c0_222 = arith.constant 0 : index
    %661 = vector.load %arg12[%660, %c0_221, %c0_222] : memref<8x8x512xf32, #tpu.memory_space<vmem>>, vector<1x8x512xf32>
    %662 = vector.shape_cast %661 : vector<1x8x512xf32> to vector<8x512xf32>
    %663 = arith.truncf %655 : vector<8x128xf32> to vector<8x128xbf16>
    %cst_223 = arith.constant dense<0.000000e+00> : vector<8x512xf32>
    %664 = tpu.matmul %663, %459, %cst_223 {dimension_numbers = #tpu.dot_dimension_numbers<[1], [0], [0], [1], [0, 0, 1, 1], [], []>} : vector<8x128xbf16>, vector<128x512xbf16>, vector<8x512xf32> -> vector<8x512xf32>
    %665 = arith.addf %662, %664 : vector<8x512xf32>
    %666 = vector.extract_strided_slice %665 {offsets = [0, 0], sizes = [8, 384], strides = [1, 1]} : vector<8x512xf32> to vector<8x384xf32>
    %cst_224 = arith.constant 0.000000e+00 : f32
    %667 = vector.broadcast %cst_224 : f32 to vector<8x384xf32>
    %668 = arith.subf %667, %666 : vector<8x384xf32>
    %669 = math.exp %668 : vector<8x384xf32>
    %cst_225 = arith.constant 1.000000e+00 : f32
    %670 = vector.broadcast %cst_225 : f32 to vector<8x384xf32>
    %671 = arith.addf %670, %669 : vector<8x384xf32>
    %672 = tpu.reciprocal %671 {approx = true} : vector<8x384xf32> -> vector<8x384xf32>
    %673 = vector.extract_strided_slice %672 {offsets = [0, 0], sizes = [8, 128], strides = [1, 1]} : vector<8x384xf32> to vector<8x128xf32>
    %674 = vector.extract_strided_slice %672 {offsets = [0, 128], sizes = [8, 128], strides = [1, 1]} : vector<8x384xf32> to vector<8x128xf32>
    %675 = vector.extract_strided_slice %672 {offsets = [0, 256], sizes = [8, 128], strides = [1, 1]} : vector<8x384xf32> to vector<8x128xf32>
    %676 = vector.extract_strided_slice %665 {offsets = [0, 384], sizes = [8, 128], strides = [1, 1]} : vector<8x512xf32> to vector<8x128xf32>
    %677 = math.tanh %676 : vector<8x128xf32>
    %678 = arith.mulf %674, %653 : vector<8x128xf32>
    %679 = arith.mulf %673, %677 : vector<8x128xf32>
    %680 = arith.addf %678, %679 : vector<8x128xf32>
    %681 = math.tanh %680 : vector<8x128xf32>
    %682 = arith.mulf %675, %681 : vector<8x128xf32>
    %683 = arith.index_cast %c7_i32_220 : i32 to index
    %c0_226 = arith.constant 0 : index
    %c0_227 = arith.constant 0 : index
    %684 = vector.load %arg11[%683, %c0_226, %c0_227] : memref<8x8x128xf32, #tpu.memory_space<vmem>>, vector<1x8x128xf32>
    %685 = vector.shape_cast %684 : vector<1x8x128xf32> to vector<8x128xf32>
    %686 = vector.shape_cast %682 : vector<8x128xf32> to vector<1x8x128xf32>
    tpu.vector_store %arg11[%683, %c0_226, %c0_227], %686 {strides = array<i32>} : memref<8x8x128xf32, #tpu.memory_space<vmem>>, vector<1x8x128xf32>,
    %c8_i32_228 = arith.constant 8 : i32
    return
  }
  func.func @transform_0(%arg0: i32) -> (i32, i32, i32) {
    %c0_i32 = arith.constant 0 : i32
    %c0_i32_0 = arith.constant 0 : i32
    %c0_i32_1 = arith.constant 0 : i32
    return %c0_i32, %arg0, %c0_i32_0 : i32, i32, i32
  }
  func.func @transform_1(%arg0: i32) -> (i32, i32) {
    %c0_i32 = arith.constant 0 : i32
    %c0_i32_0 = arith.constant 0 : i32
    %c0_i32_1 = arith.constant 0 : i32
    return %c0_i32, %c0_i32_0 : i32, i32
  }
  func.func @transform_2(%arg0: i32) -> (i32, i32) {
    %c0_i32 = arith.constant 0 : i32
    %c0_i32_0 = arith.constant 0 : i32
    %c0_i32_1 = arith.constant 0 : i32
    return %c0_i32, %c0_i32_0 : i32, i32
  }
  func.func @transform_3(%arg0: i32) -> (i32, i32) {
    %c0_i32 = arith.constant 0 : i32
    %c0_i32_0 = arith.constant 0 : i32
    %c0_i32_1 = arith.constant 0 : i32
    return %c0_i32, %c0_i32_0 : i32, i32
  }
  func.func @transform_4(%arg0: i32) -> (i32, i32) {
    %c0_i32 = arith.constant 0 : i32
    %c0_i32_0 = arith.constant 0 : i32
    %c0_i32_1 = arith.constant 0 : i32
    return %c0_i32, %c0_i32_0 : i32, i32
  }
  func.func @transform_5(%arg0: i32) -> (i32, i32) {
    %c0_i32 = arith.constant 0 : i32
    %c0_i32_0 = arith.constant 0 : i32
    %c0_i32_1 = arith.constant 0 : i32
    return %c0_i32, %c0_i32_0 : i32, i32
  }
  func.func @transform_6(%arg0: i32) -> (i32, i32) {
    %c0_i32 = arith.constant 0 : i32
    %c0_i32_0 = arith.constant 0 : i32
    %c0_i32_1 = arith.constant 0 : i32
    return %c0_i32, %c0_i32_0 : i32, i32
  }
  func.func @transform_7(%arg0: i32) -> (i32, i32) {
    %c0_i32 = arith.constant 0 : i32
    %c0_i32_0 = arith.constant 0 : i32
    %c0_i32_1 = arith.constant 0 : i32
    return %c0_i32, %c0_i32_0 : i32, i32
  }
  func.func @transform_8(%arg0: i32) -> (i32, i32) {
    %c0_i32 = arith.constant 0 : i32
    %c0_i32_0 = arith.constant 0 : i32
    %c0_i32_1 = arith.constant 0 : i32
    return %c0_i32, %c0_i32_0 : i32, i32
  }
  func.func @transform_9(%arg0: i32) -> (i32, i32) {
    %c0_i32 = arith.constant 0 : i32
    %c0_i32_0 = arith.constant 0 : i32
    %c0_i32_1 = arith.constant 0 : i32
    return %c0_i32, %c0_i32_0 : i32, i32
  }
  func.func @transform_10(%arg0: i32) -> (i32, i32, i32) {
    %c0_i32 = arith.constant 0 : i32
    %c0_i32_0 = arith.constant 0 : i32
    %c0_i32_1 = arith.constant 0 : i32
    return %c0_i32, %arg0, %c0_i32_0 : i32, i32, i32
  }
}

</mosaic_0001>

<llo_original>
// kernel: tpu_custom_call.1
$region0: #{tpu_custom_call.1}
  #allocation0 [shape = 'u32[]', space=smem, size = 0x4, offset = 0x4, fixed_abs, tag = 'smem constant byte address 0x4 - core index']
  #allocation1 [shape = 'u32[144,128]{1,0:T(1,128)}', space=vmem, size = 0x12000, scoped, tag = 'internal scratch']
  #allocation2 [shape = 'f32[8,8,512]{2,1,0:T(8,128)}', space=vmem, size = 0x20000, scoped, tag = 'scratch operand']
  #allocation3 [shape = 'f32[8,8,128]{2,1,0:T(8,128)}', space=vmem, size = 0x8000, scoped, tag = 'scratch operand']
  %s0 = inlined_call_operand.hbm [shape: f32[8,16,16], index: 0, kind: input, shape index: {}]
  %s1 = inlined_call_operand.hbm [shape: bf16[16,512], index: 1, kind: input, shape index: {}]
  %s2 = inlined_call_operand.hbm [shape: bf16[128,512], index: 2, kind: input, shape index: {}]
  %s3 = inlined_call_operand.vmem [shape: f32[1,512], index: 3, kind: input, shape index: {}]
  %s4 = inlined_call_operand.hbm [shape: bf16[128,512], index: 4, kind: input, shape index: {}]
  %s5 = inlined_call_operand.hbm [shape: bf16[128,512], index: 5, kind: input, shape index: {}]
  %s6 = inlined_call_operand.vmem [shape: f32[1,512], index: 6, kind: input, shape index: {}]
  %s7 = inlined_call_operand.hbm [shape: bf16[128,512], index: 7, kind: input, shape index: {}]
  %s8 = inlined_call_operand.hbm [shape: bf16[128,512], index: 8, kind: input, shape index: {}]
  %s9 = inlined_call_operand.vmem [shape: f32[1,512], index: 9, kind: input, shape index: {}]
  %s10 = inlined_call_operand.hbm [shape: f32[8,16,128], index: 10, kind: output, shape index: {}]
  %s11 = sld [smem:[#allocation0]]
  $region101: #{tpu_custom_call.1} parent=0
    _
  %s13 = ssub.s32 1, %s11
  %s14 = scalar_select 0, %s13, %s11
  $region1: #{tpu_custom_call.1} parent=0
    #allocation4 [shape = 'u8[65536]{0}', space=vmem, size = 0x10000, scoped, tag = 'input window, operand 0']
    #allocation5 [shape = 's32[2]{0}', space=sflag, size = 0x8, scoped, tag = 'scoped memory for tpu_custom_call.1']
    #allocation6 [shape = 's32[2]{0}', space=sflag, size = 0x8, scoped, tag = 'scoped memory for tpu_custom_call.1']
    #allocation7 [shape = 'u8[16384]{0}', space=vmem, size = 0x4000, scoped, tag = 'input window, operand 1, single buffered']
    #allocation8 [shape = 's32[1]{0}', space=sflag, size = 0x4, scoped, tag = 'scoped memory for tpu_custom_call.1']
    #allocation9 [shape = 'u8[131072]{0}', space=vmem, size = 0x20000, scoped, tag = 'input window, operand 2, single buffered']
    #allocation10 [shape = 'u8[131072]{0}', space=vmem, size = 0x20000, scoped, tag = 'input window, operand 4, single buffered']
    #allocation11 [shape = 's32[1]{0}', space=sflag, size = 0x4, scoped, tag = 'scoped memory for tpu_custom_call.1']
    #allocation12 [shape = 'u8[131072]{0}', space=vmem, size = 0x20000, scoped, tag = 'input window, operand 5, single buffered']
    #allocation13 [shape = 'u8[131072]{0}', space=vmem, size = 0x20000, scoped, tag = 'input window, operand 7, single buffered']
    #allocation14 [shape = 's32[1]{0}', space=sflag, size = 0x4, scoped, tag = 'scoped memory for tpu_custom_call.1']
    #allocation15 [shape = 'u8[131072]{0}', space=vmem, size = 0x20000, scoped, tag = 'input window, operand 8, single buffered']
    #allocation16 [shape = 'u8[65536]{0}', space=vmem, size = 0x10000, scoped, tag = 'output window, operand 0']
    %15 = vsyncpa [#allocation5], 0
    %s16 = scalar_lea.sflag [#allocation5], 1
    %17 = vsyncpa %s16, 0
    %18 = vsyncpa [#allocation8], 0
    %19 = vsyncpa [#allocation11], 0
    %20 = vsyncpa [#allocation14], 0
    %21 = vsyncpa [#allocation6], 0
    %s22 = scalar_lea.sflag [#allocation6], 1
    %23 = vsyncpa %s22, 0
    loop: start=0, step=1, limit=4
    $region2: #{tpu_custom_call.1} parent=1 // loop_pre_header
      _
    $region3: #{tpu_custom_call.1} parent=1 // loop_header
      %s25 = sphi 0, %s29
      %p26 = scmp.ge.s32.totalorder %s25, 4
      %s35 = sphi 0, %s37
      %s38 = sphi 0, %s35
      %s39 = sphi 0, %s38
      %s55 = sphi 0, %s39
      %s59 = sphi 0, %s59
      %s61 = sphi 0, %s59
      %s62 = sphi 0, %s61
      %s76 = sphi 0, %s62
      %s80 = sphi 0, %s80
      %s82 = sphi 0, %s80
      %s83 = sphi 0, %s82
      %s97 = sphi 0, %s83
      %s101 = sphi 0, %s101
      %s103 = sphi 0, %s101
      %s104 = sphi 0, %s103
      %s118 = sphi 0, %s104
      %s122 = sphi 0, %s122
      %s124 = sphi 0, %s122
      %s125 = sphi 0, %s124
      %s139 = sphi 0, %s125
      %s143 = sphi 0, %s143
      %s145 = sphi 0, %s143
      %s146 = sphi 0, %s145
      %s160 = sphi 0, %s146
      %s164 = sphi 0, %s164
      %s166 = sphi 0, %s164
      %s167 = sphi 0, %s166
      %s181 = sphi 0, %s167
      %s185 = sphi 0, %s185
      %s187 = sphi 0, %s185
      %s188 = sphi 0, %s187
      %s202 = sphi 0, %s188
      %s206 = sphi 0, %s206
      %s208 = sphi 0, %s206
      %s209 = sphi 0, %s208
      %s223 = sphi 0, %s209
      %s227 = sphi 0, %s227
      %s229 = sphi 0, %s227
      %s230 = sphi 0, %s229
      %s244 = sphi 0, %s230
      %s250 = sphi 0, %s252
      %s253 = sphi 0, %s250
      %s254 = sphi 0, %s253
      %s270 = sphi 0, %s254
    $region4: #{tpu_custom_call.1} parent=1 // loop_header_branch
      %28 = sbr.rel (%p26) target = $region8
    $region5: #{tpu_custom_call.1} parent=1 // loop_body
      %s30 = ssub.s32 %s25, 1
      %s31 = ssub.s32 %s25, 2
      %s32 = sadd.s32 %s25, 1
      %s33 = ssub.s32 %s25, %s32
      %p34 = scmp.eq.s32.totalorder %s33, 0
      %s36 = sadd.s32 %s35, 1
      %s37 = scalar_select %p34, %s35, %s36
      %p40 = pneg %p34
      %p41 = scmp.eq.s32.totalorder %s25, 1
      %p42 = por %p40, %p41
      %p43 = scmp.ne.s32.totalorder %s35, %s38
      %p44 = scmp.eq.s32.totalorder %s25, 0
      %p45 = por %p43, %p44
      %p46 = scmp.ne.s32.totalorder %s35, %s38
      %p47 = scmp.eq.s32.totalorder %s30, 1
      %p48 = por %p46, %p47
      %p49 = scmp.ne.s32.totalorder %s38, %s39
      %p50 = scmp.eq.s32.totalorder %s30, 0
      %p51 = por %p49, %p50
      %p52 = scmp.ne.s32.totalorder %s38, %s39
      %p53 = scmp.eq.s32.totalorder %s31, 1
      %p54 = por %p52, %p53
      %p56 = scmp.ne.s32.totalorder %s39, %s55
      %p57 = scmp.eq.s32.totalorder %s31, 0
      %p58 = por %p56, %p57
      %s60 = sadd.s32 %s59, 1
      %p63 = scmp.eq.s32.totalorder %s25, 1
      %p64 = scmp.ne.s32.totalorder %s59, %s61
      %p65 = scmp.eq.s32.totalorder %s25, 0
      %p66 = por %p64, %p65
      %p67 = scmp.ne.s32.totalorder %s59, %s61
      %p68 = scmp.eq.s32.totalorder %s30, 1
      %p69 = por %p67, %p68
      %p70 = scmp.ne.s32.totalorder %s61, %s62
      %p71 = scmp.eq.s32.totalorder %s30, 0
      %p72 = por %p70, %p71
      %p73 = scmp.ne.s32.totalorder %s61, %s62
      %p74 = scmp.eq.s32.totalorder %s31, 1
      %p75 = por %p73, %p74
      %p77 = scmp.ne.s32.totalorder %s62, %s76
      %p78 = scmp.eq.s32.totalorder %s31, 0
      %p79 = por %p77, %p78
      %s81 = sadd.s32 %s80, 1
      %p84 = scmp.eq.s32.totalorder %s25, 1
      %p85 = scmp.ne.s32.totalorder %s80, %s82
      %p86 = scmp.eq.s32.totalorder %s25, 0
      %p87 = por %p85, %p86
      %p88 = scmp.ne.s32.totalorder %s80, %s82
      %p89 = scmp.eq.s32.totalorder %s30, 1
      %p90 = por %p88, %p89
      %p91 = scmp.ne.s32.totalorder %s82, %s83
      %p92 = scmp.eq.s32.totalorder %s30, 0
      %p93 = por %p91, %p92
      %p94 = scmp.ne.s32.totalorder %s82, %s83
      %p95 = scmp.eq.s32.totalorder %s31, 1
      %p96 = por %p94, %p95
      %p98 = scmp.ne.s32.totalorder %s83, %s97
      %p99 = scmp.eq.s32.totalorder %s31, 0
      %p100 = por %p98, %p99
      %s102 = sadd.s32 %s101, 1
      %p105 = scmp.eq.s32.totalorder %s25, 1
      %p106 = scmp.ne.s32.totalorder %s101, %s103
      %p107 = scmp.eq.s32.totalorder %s25, 0
      %p108 = por %p106, %p107
      %p109 = scmp.ne.s32.totalorder %s101, %s103
      %p110 = scmp.eq.s32.totalorder %s30, 1
      %p111 = por %p109, %p110
      %p112 = scmp.ne.s32.totalorder %s103, %s104
      %p113 = scmp.eq.s32.totalorder %s30, 0
      %p114 = por %p112, %p113
      %p115 = scmp.ne.s32.totalorder %s103, %s104
      %p116 = scmp.eq.s32.totalorder %s31, 1
      %p117 = por %p115, %p116
      %p119 = scmp.ne.s32.totalorder %s104, %s118
      %p120 = scmp.eq.s32.totalorder %s31, 0
      %p121 = por %p119, %p120
      %s123 = sadd.s32 %s122, 1
      %p126 = scmp.eq.s32.totalorder %s25, 1
      %p127 = scmp.ne.s32.totalorder %s122, %s124
      %p128 = scmp.eq.s32.totalorder %s25, 0
      %p129 = por %p127, %p128
      %p130 = scmp.ne.s32.totalorder %s122, %s124
      %p131 = scmp.eq.s32.totalorder %s30, 1
      %p132 = por %p130, %p131
      %p133 = scmp.ne.s32.totalorder %s124, %s125
      %p134 = scmp.eq.s32.totalorder %s30, 0
      %p135 = por %p133, %p134
      %p136 = scmp.ne.s32.totalorder %s124, %s125
      %p137 = scmp.eq.s32.totalorder %s31, 1
      %p138 = por %p136, %p137
      %p140 = scmp.ne.s32.totalorder %s125, %s139
      %p141 = scmp.eq.s32.totalorder %s31, 0
      %p142 = por %p140, %p141
      %s144 = sadd.s32 %s143, 1
      %p147 = scmp.eq.s32.totalorder %s25, 1
      %p148 = scmp.ne.s32.totalorder %s143, %s145
      %p149 = scmp.eq.s32.totalorder %s25, 0
      %p150 = por %p148, %p149
      %p151 = scmp.ne.s32.totalorder %s143, %s145
      %p152 = scmp.eq.s32.totalorder %s30, 1
      %p153 = por %p151, %p152
      %p154 = scmp.ne.s32.totalorder %s145, %s146
      %p155 = scmp.eq.s32.totalorder %s30, 0
      %p156 = por %p154, %p155
      %p157 = scmp.ne.s32.totalorder %s145, %s146
      %p158 = scmp.eq.s32.totalorder %s31, 1
      %p159 = por %p157, %p158
      %p161 = scmp.ne.s32.totalorder %s146, %s160
      %p162 = scmp.eq.s32.totalorder %s31, 0
      %p163 = por %p161, %p162
      %s165 = sadd.s32 %s164, 1
      %p168 = scmp.eq.s32.totalorder %s25, 1
      %p169 = scmp.ne.s32.totalorder %s164, %s166
      %p170 = scmp.eq.s32.totalorder %s25, 0
      %p171 = por %p169, %p170
      %p172 = scmp.ne.s32.totalorder %s164, %s166
      %p173 = scmp.eq.s32.totalorder %s30, 1
      %p174 = por %p172, %p173
      %p175 = scmp.ne.s32.totalorder %s166, %s167
      %p176 = scmp.eq.s32.totalorder %s30, 0
      %p177 = por %p175, %p176
      %p178 = scmp.ne.s32.totalorder %s166, %s167
      %p179 = scmp.eq.s32.totalorder %s31, 1
      %p180 = por %p178, %p179
      %p182 = scmp.ne.s32.totalorder %s167, %s181
      %p183 = scmp.eq.s32.totalorder %s31, 0
      %p184 = por %p182, %p183
      %s186 = sadd.s32 %s185, 1
      %p189 = scmp.eq.s32.totalorder %s25, 1
      %p190 = scmp.ne.s32.totalorder %s185, %s187
      %p191 = scmp.eq.s32.totalorder %s25, 0
      %p192 = por %p190, %p191
      %p193 = scmp.ne.s32.totalorder %s185, %s187
      %p194 = scmp.eq.s32.totalorder %s30, 1
      %p195 = por %p193, %p194
      %p196 = scmp.ne.s32.totalorder %s187, %s188
      %p197 = scmp.eq.s32.totalorder %s30, 0
      %p198 = por %p196, %p197
      %p199 = scmp.ne.s32.totalorder %s187, %s188
      %p200 = scmp.eq.s32.totalorder %s31, 1
      %p201 = por %p199, %p200
      %p203 = scmp.ne.s32.totalorder %s188, %s202
      %p204 = scmp.eq.s32.totalorder %s31, 0
      %p205 = por %p203, %p204
      %s207 = sadd.s32 %s206, 1
      %p210 = scmp.eq.s32.totalorder %s25, 1
      %p211 = scmp.ne.s32.totalorder %s206, %s208
      %p212 = scmp.eq.s32.totalorder %s25, 0
      %p213 = por %p211, %p212
      %p214 = scmp.ne.s32.totalorder %s206, %s208
      %p215 = scmp.eq.s32.totalorder %s30, 1
      %p216 = por %p214, %p215
      %p217 = scmp.ne.s32.totalorder %s208, %s209
      %p218 = scmp.eq.s32.totalorder %s30, 0
      %p219 = por %p217, %p218
      %p220 = scmp.ne.s32.totalorder %s208, %s209
      %p221 = scmp.eq.s32.totalorder %s31, 1
      %p222 = por %p220, %p221
      %p224 = scmp.ne.s32.totalorder %s209, %s223
      %p225 = scmp.eq.s32.totalorder %s31, 0
      %p226 = por %p224, %p225
      %s228 = sadd.s32 %s227, 1
      %p231 = scmp.eq.s32.totalorder %s25, 1
      %p232 = scmp.ne.s32.totalorder %s227, %s229
      %p233 = scmp.eq.s32.totalorder %s25, 0
      %p234 = por %p232, %p233
      %p235 = scmp.ne.s32.totalorder %s227, %s229
      %p236 = scmp.eq.s32.totalorder %s30, 1
      %p237 = por %p235, %p236
      %p238 = scmp.ne.s32.totalorder %s229, %s230
      %p239 = scmp.eq.s32.totalorder %s30, 0
      %p240 = por %p238, %p239
      %p241 = scmp.ne.s32.totalorder %s229, %s230
      %p242 = scmp.eq.s32.totalorder %s31, 1
      %p243 = por %p241, %p242
      %p245 = scmp.ne.s32.totalorder %s230, %s244
      %p246 = scmp.eq.s32.totalorder %s31, 0
      %p247 = por %p245, %p246
      %s248 = ssub.s32 %s25, %s32
      %p249 = scmp.eq.s32.totalorder %s248, 0
      %s251 = sadd.s32 %s250, 1
      %s252 = scalar_select %p249, %s250, %s251
      %p255 = pneg %p249
      %p256 = scmp.eq.s32.totalorder %s25, 1
      %p257 = por %p255, %p256
      %p258 = scmp.ne.s32.totalorder %s250, %s253
      %p259 = scmp.eq.s32.totalorder %s25, 0
      %p260 = por %p258, %p259
      %p261 = scmp.ne.s32.totalorder %s250, %s253
      %p262 = scmp.eq.s32.totalorder %s30, 1
      %p263 = por %p261, %p262
      %p264 = scmp.ne.s32.totalorder %s253, %s254
      %p265 = scmp.eq.s32.totalorder %s30, 0
      %p266 = por %p264, %p265
      %p267 = scmp.ne.s32.totalorder %s253, %s254
      %p268 = scmp.eq.s32.totalorder %s31, 1
      %p269 = por %p267, %p268
      %p271 = scmp.ne.s32.totalorder %s254, %s270
      %p272 = scmp.eq.s32.totalorder %s31, 0
      %p273 = por %p271, %p272
      %p274 = scmp.le.s32.totalorder 1, %s25
      %p275 = scmp.lt.s32.totalorder %s25, 3
      %p276 = pnand %p274, %p275
      %p277 = pneg %p276
      // Predicated region
      $region9: #{tpu_custom_call.1} parent=5 // pred_check
        _
      $region10: #{tpu_custom_call.1} parent=5 // pred_check_branch
        %279 = sbr.rel (%p276) target = $region12
      $region11: #{tpu_custom_call.1} parent=5 // pred_region
        %s280 = ssub.s32 %s25, 1
        // Predicated region
        $region13: #{tpu_custom_call.1} parent=11 // pred_check
          %p281 = pneg %p72
        $region14: #{tpu_custom_call.1} parent=11 // pred_check_branch
          %283 = sbr.rel (%p281) target = $region16
        $region15: #{tpu_custom_call.1} parent=11 // pred_region
          %s285 = ssub.s32 512, 512
          %286 = vsyncadd [#allocation8], %s285
          %s287 = sshll.u32 [#allocation7], 4
          %s288 = int_to_ptr.vmem [resolvable:$true] %s287
          %293 = dma.hbm_to_vmem [thread:$0]  %s1, 512, %s288, [#allocation8], 256, 256, 16
        $region16: #{tpu_custom_call.1} parent=11 // pred_fallthru
          _
        // Predicated region
        $region17: #{tpu_custom_call.1} parent=11 // pred_check
          %p294 = pneg %p93
        $region18: #{tpu_custom_call.1} parent=11 // pred_check_branch
          %296 = sbr.rel (%p294) target = $region20
        $region19: #{tpu_custom_call.1} parent=11 // pred_region
          %s298 = ssub.s32 4096, 4096
          %299 = vsyncadd [#allocation8], %s298
          %s300 = sshll.u32 [#allocation9], 4
          %s301 = int_to_ptr.vmem [resolvable:$true] %s300
          %306 = dma.hbm_to_vmem [thread:$0]  %s2, 4096, %s301, [#allocation8], 256, 256, 16
        $region20: #{tpu_custom_call.1} parent=11 // pred_fallthru
          _
        // Predicated region
        $region21: #{tpu_custom_call.1} parent=11 // pred_check
          %p307 = pneg %p114
        $region22: #{tpu_custom_call.1} parent=11 // pred_check_branch
          %309 = sbr.rel (%p307) target = $region24
        $region23: #{tpu_custom_call.1} parent=11 // pred_region
          _
        $region24: #{tpu_custom_call.1} parent=11 // pred_fallthru
          _
        // Predicated region
        $region25: #{tpu_custom_call.1} parent=11 // pred_check
          %p310 = pneg %p135
        $region26: #{tpu_custom_call.1} parent=11 // pred_check_branch
          %312 = sbr.rel (%p310) target = $region28
        $region27: #{tpu_custom_call.1} parent=11 // pred_region
          %s314 = ssub.s32 4096, 4096
          %315 = vsyncadd [#allocation11], %s314
          %s316 = sshll.u32 [#allocation10], 4
          %s317 = int_to_ptr.vmem [resolvable:$true] %s316
          %322 = dma.hbm_to_vmem [thread:$0]  %s4, 4096, %s317, [#allocation11], 256, 256, 16
        $region28: #{tpu_custom_call.1} parent=11 // pred_fallthru
          _
        // Predicated region
        $region29: #{tpu_custom_call.1} parent=11 // pred_check
          %p323 = pneg %p156
        $region30: #{tpu_custom_call.1} parent=11 // pred_check_branch
          %325 = sbr.rel (%p323) target = $region32
        $region31: #{tpu_custom_call.1} parent=11 // pred_region
          %s327 = ssub.s32 4096, 4096
          %328 = vsyncadd [#allocation11], %s327
          %s329 = sshll.u32 [#allocation12], 4
          %s330 = int_to_ptr.vmem [resolvable:$true] %s329
          %335 = dma.hbm_to_vmem [thread:$0]  %s5, 4096, %s330, [#allocation11], 256, 256, 16
        $region32: #{tpu_custom_call.1} parent=11 // pred_fallthru
          _
        // Predicated region
        $region33: #{tpu_custom_call.1} parent=11 // pred_check
          %p336 = pneg %p177
        $region34: #{tpu_custom_call.1} parent=11 // pred_check_branch
          %338 = sbr.rel (%p336) target = $region36
        $region35: #{tpu_custom_call.1} parent=11 // pred_region
          _
        $region36: #{tpu_custom_call.1} parent=11 // pred_fallthru
          _
        // Predicated region
        $region37: #{tpu_custom_call.1} parent=11 // pred_check
          %p339 = pneg %p198
        $region38: #{tpu_custom_call.1} parent=11 // pred_check_branch
          %341 = sbr.rel (%p339) target = $region40
        $region39: #{tpu_custom_call.1} parent=11 // pred_region
          %s343 = ssub.s32 4096, 4096
          %344 = vsyncadd [#allocation14], %s343
          %s345 = sshll.u32 [#allocation13], 4
          %s346 = int_to_ptr.vmem [resolvable:$true] %s345
          %351 = dma.hbm_to_vmem [thread:$0]  %s7, 4096, %s346, [#allocation14], 256, 256, 16
        $region40: #{tpu_custom_call.1} parent=11 // pred_fallthru
          _
        // Predicated region
        $region41: #{tpu_custom_call.1} parent=11 // pred_check
          %p352 = pneg %p219
        $region42: #{tpu_custom_call.1} parent=11 // pred_check_branch
          %354 = sbr.rel (%p352) target = $region44
        $region43: #{tpu_custom_call.1} parent=11 // pred_region
          %s356 = ssub.s32 4096, 4096
          %357 = vsyncadd [#allocation14], %s356
          %s358 = sshll.u32 [#allocation15], 4
          %s359 = int_to_ptr.vmem [resolvable:$true] %s358
          %364 = dma.hbm_to_vmem [thread:$0]  %s8, 4096, %s359, [#allocation14], 256, 256, 16
        $region44: #{tpu_custom_call.1} parent=11 // pred_fallthru
          _
        // Predicated region
        $region45: #{tpu_custom_call.1} parent=11 // pred_check
          %p365 = pneg %p240
        $region46: #{tpu_custom_call.1} parent=11 // pred_check_branch
          %367 = sbr.rel (%p365) target = $region48
        $region47: #{tpu_custom_call.1} parent=11 // pred_region
          _
        $region48: #{tpu_custom_call.1} parent=11 // pred_fallthru
          _
      $region12: #{tpu_custom_call.1} parent=5 // pred_fallthru
        _
      %p368 = scmp.lt.s32.totalorder %s25, 2
      // Predicated region
      $region49: #{tpu_custom_call.1} parent=5 // pred_check
        %p369 = pneg %p368
      $region50: #{tpu_custom_call.1} parent=5 // pred_check_branch
        %371 = sbr.rel (%p369) target = $region52
      $region51: #{tpu_custom_call.1} parent=5 // pred_region
        // Predicated region
        $region53: #{tpu_custom_call.1} parent=51 // pred_check
          %p372 = pneg %p45
        $region54: #{tpu_custom_call.1} parent=51 // pred_check_branch
          %374 = sbr.rel (%p372) target = $region56
        $region55: #{tpu_custom_call.1} parent=51 // pred_region
          %s375 = sand.u32 %s35, 1
          %s376 = scalar_lea.sflag [#allocation5], %s375
          %s377 = sand.u32 %s35, 1
          %s378 = smul.addr %s377, 64
          %s379 = scalar_lea.vmem [#allocation4], %s378
          %s381 = ssub.s32 1024, 1024
          %382 = vsyncadd %s376, %s381
          %s383 = smul.addr %s25, 128
          %s384 = scalar_lea.hbm %s0, %s383
          %s385 = sshll.u32 %s379, 4
          %s386 = int_to_ptr.vmem [resolvable:$true] %s385
          %391 = dma.hbm_to_vmem [thread:$0]  %s384, 1024, %s386, %s376, 256, 128, 8
        $region56: #{tpu_custom_call.1} parent=51 // pred_fallthru
          _
      $region52: #{tpu_custom_call.1} parent=5 // pred_fallthru
        _
      %p392 = scmp.le.s32.totalorder 1, %s25
      %p393 = scmp.lt.s32.totalorder %s25, 3
      %p394 = pnand %p392, %p393
      %p395 = pneg %p394
      // Predicated region
      $region57: #{tpu_custom_call.1} parent=5 // pred_check
        _
      $region58: #{tpu_custom_call.1} parent=5 // pred_check_branch
        %397 = sbr.rel (%p394) target = $region60
      $region59: #{tpu_custom_call.1} parent=5 // pred_region
        %s398 = ssub.s32 %s25, 1
        %s399 = sand.u32 %s38, 1
        %s400 = scalar_lea.sflag [#allocation5], %s399
        %s401 = sand.u32 %s38, 1
        %s402 = smul.addr %s401, 64
        %s403 = scalar_lea.vmem [#allocation4], %s402
        // Predicated region
        $region61: #{tpu_custom_call.1} parent=59 // pred_check
          %p404 = pneg %p51
        $region62: #{tpu_custom_call.1} parent=59 // pred_check_branch
          %406 = sbr.rel (%p404) target = $region64
        $region63: #{tpu_custom_call.1} parent=59 // pred_region
          %407 = dma.done %s400, 1024
        $region64: #{tpu_custom_call.1} parent=59 // pred_fallthru
          _
        // Predicated region
        $region65: #{tpu_custom_call.1} parent=59 // pred_check
          %p408 = pneg %p72
        $region66: #{tpu_custom_call.1} parent=59 // pred_check_branch
          %410 = sbr.rel (%p408) target = $region68
        $region67: #{tpu_custom_call.1} parent=59 // pred_region
          %411 = dma.done [#allocation8], 512
        $region68: #{tpu_custom_call.1} parent=59 // pred_fallthru
          _
        // Predicated region
        $region69: #{tpu_custom_call.1} parent=59 // pred_check
          %p412 = pneg %p93
        $region70: #{tpu_custom_call.1} parent=59 // pred_check_branch
          %414 = sbr.rel (%p412) target = $region72
        $region71: #{tpu_custom_call.1} parent=59 // pred_region
          %415 = dma.done [#allocation8], 4096
        $region72: #{tpu_custom_call.1} parent=59 // pred_fallthru
          _
        // Predicated region
        $region73: #{tpu_custom_call.1} parent=59 // pred_check
          %p416 = pneg %p135
        $region74: #{tpu_custom_call.1} parent=59 // pred_check_branch
          %418 = sbr.rel (%p416) target = $region76
        $region75: #{tpu_custom_call.1} parent=59 // pred_region
          %419 = dma.done [#allocation11], 4096
        $region76: #{tpu_custom_call.1} parent=59 // pred_fallthru
          _
        // Predicated region
        $region77: #{tpu_custom_call.1} parent=59 // pred_check
          %p420 = pneg %p156
        $region78: #{tpu_custom_call.1} parent=59 // pred_check_branch
          %422 = sbr.rel (%p420) target = $region80
        $region79: #{tpu_custom_call.1} parent=59 // pred_region
          %423 = dma.done [#allocation11], 4096
        $region80: #{tpu_custom_call.1} parent=59 // pred_fallthru
          _
        // Predicated region
        $region81: #{tpu_custom_call.1} parent=59 // pred_check
          %p424 = pneg %p198
        $region82: #{tpu_custom_call.1} parent=59 // pred_check_branch
          %426 = sbr.rel (%p424) target = $region84
        $region83: #{tpu_custom_call.1} parent=59 // pred_region
          %427 = dma.done [#allocation14], 4096
        $region84: #{tpu_custom_call.1} parent=59 // pred_fallthru
          _
        // Predicated region
        $region85: #{tpu_custom_call.1} parent=59 // pred_check
          %p428 = pneg %p219
        $region86: #{tpu_custom_call.1} parent=59 // pred_check_branch
          %430 = sbr.rel (%p428) target = $region88
        $region87: #{tpu_custom_call.1} parent=59 // pred_region
          %431 = dma.done [#allocation14], 4096
        $region88: #{tpu_custom_call.1} parent=59 // pred_fallthru
          _
        %s432 = sand.u32 %s38, 1
        %s433 = scalar_lea.sflag [#allocation5], %s432
        %s434 = sand.u32 %s38, 1
        %s435 = smul.addr %s434, 64
        %s436 = scalar_lea.vmem [#allocation4], %s435
        %p437 = pneg %p51
        %p438 = pneg %p48
        %p439 = pneg %p72
        %p440 = pneg %p69
        %p441 = pneg %p93
        %p442 = pneg %p90
        %p443 = pneg %p114
        %p444 = pneg %p111
        %p445 = pneg %p135
        %p446 = pneg %p132
        %p447 = pneg %p156
        %p448 = pneg %p153
        %p449 = pneg %p177
        %p450 = pneg %p174
        %p451 = pneg %p198
        %p452 = pneg %p195
        %p453 = pneg %p219
        %p454 = pneg %p216
        %p455 = pneg %p240
        %p456 = pneg %p237
        %p457 = pneg %p266
        %p458 = pneg %p263
        %s459 = sand.u32 %s253, 1
        %s460 = scalar_lea.sflag [#allocation6], %s459
        %s461 = sand.u32 %s253, 1
        %s462 = smul.addr %s461, 64
        %s463 = scalar_lea.vmem [#allocation16], %s462
        %v465 = vld [vmem:[#allocation7] sm:$0xff]
        %v466 = vld [vmem:[#allocation7 + $0x8] sm:$0xff]
        %v467 = vld [vmem:[#allocation7 + $0x10] sm:$0xff]
        %v468 = vld [vmem:[#allocation7 + $0x18] sm:$0xff]
        %v469 = vld [vmem:[#allocation9] sm:$0xff]
        %v470 = vld [vmem:[#allocation9 + $0x8] sm:$0xff]
        %v471 = vld [vmem:[#allocation9 + $0x10] sm:$0xff]
        %v472 = vld [vmem:[#allocation9 + $0x18] sm:$0xff]
        %v473 = vld [vmem:[#allocation9 + $0x20] sm:$0xff]
        %v474 = vld [vmem:[#allocation9 + $0x28] sm:$0xff]
        %v475 = vld [vmem:[#allocation9 + $0x30] sm:$0xff]
        %v476 = vld [vmem:[#allocation9 + $0x38] sm:$0xff]
        %v477 = vld [vmem:[#allocation9 + $0x40] sm:$0xff]
        %v478 = vld [vmem:[#allocation9 + $0x48] sm:$0xff]
        %v479 = vld [vmem:[#allocation9 + $0x50] sm:$0xff]
        %v480 = vld [vmem:[#allocation9 + $0x58] sm:$0xff]
        %v481 = vld [vmem:[#allocation9 + $0x60] sm:$0xff]
        %v482 = vld [vmem:[#allocation9 + $0x68] sm:$0xff]
        %v483 = vld [vmem:[#allocation9 + $0x70] sm:$0xff]
        %v484 = vld [vmem:[#allocation9 + $0x78] sm:$0xff]
        %v485 = vld [vmem:[#allocation9 + $0x80] sm:$0xff]
        %v486 = vld [vmem:[#allocation9 + $0x88] sm:$0xff]
        %v487 = vld [vmem:[#allocation9 + $0x90] sm:$0xff]
        %v488 = vld [vmem:[#allocation9 + $0x98] sm:$0xff]
        %v489 = vld [vmem:[#allocation9 + $0xa0] sm:$0xff]
        %v490 = vld [vmem:[#allocation9 + $0xa8] sm:$0xff]
        %v491 = vld [vmem:[#allocation9 + $0xb0] sm:$0xff]
        %v492 = vld [vmem:[#allocation9 + $0xb8] sm:$0xff]
        %v493 = vld [vmem:[#allocation9 + $0xc0] sm:$0xff]
        %v494 = vld [vmem:[#allocation9 + $0xc8] sm:$0xff]
        %v495 = vld [vmem:[#allocation9 + $0xd0] sm:$0xff]
        %v496 = vld [vmem:[#allocation9 + $0xd8] sm:$0xff]
        %v497 = vld [vmem:[#allocation9 + $0xe0] sm:$0xff]
        %v498 = vld [vmem:[#allocation9 + $0xe8] sm:$0xff]
        %v499 = vld [vmem:[#allocation9 + $0xf0] sm:$0xff]
        %v500 = vld [vmem:[#allocation9 + $0xf8] sm:$0xff]
        %v501 = vld [vmem:[%s3] sm:$0xf]
        %v502 = vld [vmem:[%s403] sm:$0xff]
        %v503 = vld [vmem:[%s403 + $0x8] sm:$0xff]
        %v504 = vld [vmem:[%s403 + $0x10] sm:$0xff]
        %v505 = vld [vmem:[%s403 + $0x18] sm:$0xff]
        %v506 = vld [vmem:[%s403 + $0x20] sm:$0xff]
        %v507 = vld [vmem:[%s403 + $0x28] sm:$0xff]
        %v508 = vld [vmem:[%s403 + $0x30] sm:$0xff]
        %v509 = vld [vmem:[%s403 + $0x38] sm:$0xff]
        %v510 = vpack.c.bf16 %v503, %v502
        %v511 = vpack.c.bf16 %v505, %v504
        %v512 = vpack.c.bf16 %v507, %v506
        %v513 = vpack.c.bf16 %v509, %v508
        %v515 = vlaneseq
        %v516 = vshrl.u32 %v515, 7
        %v517 = vsub.s32 0, %v516
        %v518 = vrot.slane %v501, %v517
        %v519 = vlaneseq
        %v520 = vshrl.u32 %v519, 7
        %v521 = vsub.s32 1, %v520
        %v522 = vrot.slane %v501, %v521
        %v523 = vlaneseq
        %v524 = vshrl.u32 %v523, 7
        %v525 = vsub.s32 2, %v524
        %v526 = vrot.slane %v501, %v525
        %v527 = vlaneseq
        %v528 = vshrl.u32 %v527, 7
        %v529 = vsub.s32 3, %v528
        %v530 = vrot.slane %v501, %v529
        %v539 = vunpack.c.l.b16 %v465
        %v540 = vunpack.c.h.b16 %v465
        %v541 = vunpack.c.l.b16 %v466
        %v542 = vunpack.c.h.b16 %v466
        %v543 = vunpack.c.l.b16 %v467
        %v544 = vunpack.c.h.b16 %v467
        %v545 = vunpack.c.l.b16 %v468
        %v546 = vunpack.c.h.b16 %v468
        %v547 = vpack.c.b16 %v543, %v539
        %v548 = vpack.c.b16 %v544, %v540
        %v549 = vpack.c.b16 %v545, %v541
        %v550 = vpack.c.b16 %v546, %v542
        %vm555 = vcmask 130048
        %v557 = vsel %vm555, %v510, 0
        %v560 = vsel %vm555, %v511, 0
        %v563 = vsel %vm555, %v512, 0
        %v566 = vsel %vm555, %v513, 0
        %568 = vmatprep.subr.bf16.mxu0 %v548
        %569 = vmatpush1.bf16.msra.mxu0 %v547
        %570 = vmatprep.subr.bf16.mxu0 0
        %571 = vmatpush1.bf16.msra.mxu0 0
        %572 = vmatprep.subr.bf16.mxu0 0
        %573 = vmatpush1.bf16.msra.mxu0 0
        %574 = vmatprep.subr.bf16.mxu0 0
        %575 = vmatpush1.bf16.msra.mxu0 0
        %576 = vmatprep.subr.bf16.mxu0 0
        %577 = vmatpush1.bf16.msra.mxu0 0
        %578 = vmatprep.subr.bf16.mxu0 0
        %579 = vmatpush1.bf16.msra.mxu0 0
        %580 = vmatprep.subr.bf16.mxu0 0
        %581 = vmatpush1.bf16.msra.mxu0 0
        %582 = vmatprep.subr.bf16.mxu0 0
        %583 = vmatpush1.bf16.msra.mxu0 0
        %584 = vmatprep.subr.bf16.mxu0 0
        %585 = vmatpush1.bf16.msra.mxu0 0
        %586 = vmatprep.subr.bf16.mxu0 0
        %587 = vmatpush1.bf16.msra.mxu0 0
        %588 = vmatprep.subr.bf16.mxu0 0
        %589 = vmatpush1.bf16.msra.mxu0 0
        %590 = vmatprep.subr.bf16.mxu0 0
        %591 = vmatpush1.bf16.msra.mxu0 0
        %592 = vmatprep.subr.bf16.mxu0 0
        %593 = vmatpush1.bf16.msra.mxu0 0
        %594 = vmatprep.subr.bf16.mxu0 0
        %595 = vmatpush1.bf16.msra.mxu0 0
        %596 = vmatprep.subr.bf16.mxu0 0
        %597 = vmatpush1.bf16.msra.mxu0 0
        %598 = vmatprep.subr.bf16.mxu0 0
        %599 = vmatpush1.bf16.msra.mxu0 0
        %600 = vmatprep.mubr.bf16.mxu0 0
        %601 = vmatmul.mubr.bf16.gmra.mrb[0].mxu0 %v557
        %v602 = vpop.f32.mrb[0].mxu0
        %v603 = vadd.f32 %v518, %v602
        %v604 = vpop.f32.mrb[0].mxu0
        %v605 = vadd.f32 %v522, %v604
        %v606 = vpop.f32.mrb[0].mxu0
        %v607 = vadd.f32 %v518, %v606
        %v608 = vpop.f32.mrb[0].mxu0
        %v609 = vadd.f32 %v522, %v608
        %610 = vmatprep.mubr.bf16.mxu0 0
        %611 = vmatmul.mubr.bf16.gmra.mrb[0].mxu0 %v560
        %v612 = vpop.f32.mrb[0].mxu0
        %v613 = vadd.f32 %v518, %v612
        %v614 = vpop.f32.mrb[0].mxu0
        %v615 = vadd.f32 %v522, %v614
        %v616 = vpop.f32.mrb[0].mxu0
        %v617 = vadd.f32 %v518, %v616
        %v618 = vpop.f32.mrb[0].mxu0
        %v619 = vadd.f32 %v522, %v618
        %620 = vmatprep.mubr.bf16.mxu0 0
        %621 = vmatmul.mubr.bf16.gmra.mrb[0].mxu0 %v563
        %v622 = vpop.f32.mrb[0].mxu0
        %v623 = vadd.f32 %v518, %v622
        %v624 = vpop.f32.mrb[0].mxu0
        %v625 = vadd.f32 %v522, %v624
        %v626 = vpop.f32.mrb[0].mxu0
        %v627 = vadd.f32 %v518, %v626
        %v628 = vpop.f32.mrb[0].mxu0
        %v629 = vadd.f32 %v522, %v628
        %630 = vmatprep.mubr.bf16.mxu0 0
        %631 = vmatmul.mubr.bf16.gmra.mrb[0].mxu0 %v566
        %v632 = vpop.f32.mrb[0].mxu0
        %v633 = vadd.f32 %v518, %v632
        %v634 = vpop.f32.mrb[0].mxu0
        %v635 = vadd.f32 %v522, %v634
        %v636 = vpop.f32.mrb[0].mxu0
        %v637 = vadd.f32 %v518, %v636
        %v638 = vpop.f32.mrb[0].mxu0
        %v639 = vadd.f32 %v522, %v638
        %640 = vdwg.mxu0
        %641 = vmatprep.subr.bf16.mxu0 %v550
        %642 = vmatpush1.bf16.msra.mxu0 %v549
        %643 = vmatprep.subr.bf16.mxu0 0
        %644 = vmatpush1.bf16.msra.mxu0 0
        %645 = vmatprep.subr.bf16.mxu0 0
        %646 = vmatpush1.bf16.msra.mxu0 0
        %647 = vmatprep.subr.bf16.mxu0 0
        %648 = vmatpush1.bf16.msra.mxu0 0
        %649 = vmatprep.subr.bf16.mxu0 0
        %650 = vmatpush1.bf16.msra.mxu0 0
        %651 = vmatprep.subr.bf16.mxu0 0
        %652 = vmatpush1.bf16.msra.mxu0 0
        %653 = vmatprep.subr.bf16.mxu0 0
        %654 = vmatpush1.bf16.msra.mxu0 0
        %655 = vmatprep.subr.bf16.mxu0 0
        %656 = vmatpush1.bf16.msra.mxu0 0
        %657 = vmatprep.subr.bf16.mxu0 0
        %658 = vmatpush1.bf16.msra.mxu0 0
        %659 = vmatprep.subr.bf16.mxu0 0
        %660 = vmatpush1.bf16.msra.mxu0 0
        %661 = vmatprep.subr.bf16.mxu0 0
        %662 = vmatpush1.bf16.msra.mxu0 0
        %663 = vmatprep.subr.bf16.mxu0 0
        %664 = vmatpush1.bf16.msra.mxu0 0
        %665 = vmatprep.subr.bf16.mxu0 0
        %666 = vmatpush1.bf16.msra.mxu0 0
        %667 = vmatprep.subr.bf16.mxu0 0
        %668 = vmatpush1.bf16.msra.mxu0 0
        %669 = vmatprep.subr.bf16.mxu0 0
        %670 = vmatpush1.bf16.msra.mxu0 0
        %671 = vmatprep.subr.bf16.mxu0 0
        %672 = vmatpush1.bf16.msra.mxu0 0
        %673 = vmatprep.mubr.bf16.mxu0 0
        %674 = vmatmul.mubr.bf16.gmra.mrb[0].mxu0 %v557
        %v675 = vpop.f32.mrb[0].mxu0
        %v676 = vadd.f32 %v526, %v675
        %v677 = vpop.f32.mrb[0].mxu0
        %v678 = vadd.f32 %v530, %v677
        %v679 = vpop.f32.mrb[0].mxu0
        %v680 = vadd.f32 %v526, %v679
        %v681 = vpop.f32.mrb[0].mxu0
        %v682 = vadd.f32 %v530, %v681
        %683 = vmatprep.mubr.bf16.mxu0 0
        %684 = vmatmul.mubr.bf16.gmra.mrb[0].mxu0 %v560
        %v685 = vpop.f32.mrb[0].mxu0
        %v686 = vadd.f32 %v526, %v685
        %v687 = vpop.f32.mrb[0].mxu0
        %v688 = vadd.f32 %v530, %v687
        %v689 = vpop.f32.mrb[0].mxu0
        %v690 = vadd.f32 %v526, %v689
        %v691 = vpop.f32.mrb[0].mxu0
        %v692 = vadd.f32 %v530, %v691
        %693 = vmatprep.mubr.bf16.mxu0 0
        %694 = vmatmul.mubr.bf16.gmra.mrb[0].mxu0 %v563
        %v695 = vpop.f32.mrb[0].mxu0
        %v696 = vadd.f32 %v526, %v695
        %v697 = vpop.f32.mrb[0].mxu0
        %v698 = vadd.f32 %v530, %v697
        %v699 = vpop.f32.mrb[0].mxu0
        %v700 = vadd.f32 %v526, %v699
        %v701 = vpop.f32.mrb[0].mxu0
        %v702 = vadd.f32 %v530, %v701
        %703 = vmatprep.mubr.bf16.mxu0 0
        %704 = vmatmul.mubr.bf16.gmra.mrb[0].mxu0 %v566
        %v705 = vpop.f32.mrb[0].mxu0
        %v706 = vadd.f32 %v526, %v705
        %v707 = vpop.f32.mrb[0].mxu0
        %v708 = vadd.f32 %v530, %v707
        %v709 = vpop.f32.mrb[0].mxu0
        %v710 = vadd.f32 %v526, %v709
        %v711 = vpop.f32.mrb[0].mxu0
        %v712 = vadd.f32 %v530, %v711
        %713 = vdwg.mxu0
        %714 = vst [vmem:[#allocation2] sm:$0xff] %v603
        %715 = vst [vmem:[#allocation2 + $0x8] sm:$0xff] %v605
        %716 = vst [vmem:[#allocation2 + $0x10] sm:$0xff] %v676
        %717 = vst [vmem:[#allocation2 + $0x18] sm:$0xff] %v678
        %718 = vst [vmem:[#allocation2 + $0x20] sm:$0xff] %v607
        %719 = vst [vmem:[#allocation2 + $0x28] sm:$0xff] %v609
        %720 = vst [vmem:[#allocation2 + $0x30] sm:$0xff] %v680
        %721 = vst [vmem:[#allocation2 + $0x38] sm:$0xff] %v682
        %722 = vst [vmem:[#allocation2 + $0x40] sm:$0xff] %v613
        %723 = vst [vmem:[#allocation2 + $0x48] sm:$0xff] %v615
        %724 = vst [vmem:[#allocation2 + $0x50] sm:$0xff] %v686
        %725 = vst [vmem:[#allocation2 + $0x58] sm:$0xff] %v688
        %726 = vst [vmem:[#allocation2 + $0x60] sm:$0xff] %v617
        %727 = vst [vmem:[#allocation2 + $0x68] sm:$0xff] %v619
        %728 = vst [vmem:[#allocation2 + $0x70] sm:$0xff] %v690
        %729 = vst [vmem:[#allocation2 + $0x78] sm:$0xff] %v692
        %730 = vst [vmem:[#allocation2 + $0x80] sm:$0xff] %v623
        %731 = vst [vmem:[#allocation2 + $0x88] sm:$0xff] %v625
        %732 = vst [vmem:[#allocation2 + $0x90] sm:$0xff] %v696
        %733 = vst [vmem:[#allocation2 + $0x98] sm:$0xff] %v698
        %734 = vst [vmem:[#allocation2 + $0xa0] sm:$0xff] %v627
        %735 = vst [vmem:[#allocation2 + $0xa8] sm:$0xff] %v629
        %736 = vst [vmem:[#allocation2 + $0xb0] sm:$0xff] %v700
        %737 = vst [vmem:[#allocation2 + $0xb8] sm:$0xff] %v702
        %738 = vst [vmem:[#allocation2 + $0xc0] sm:$0xff] %v633
        %739 = vst [vmem:[#allocation2 + $0xc8] sm:$0xff] %v635
        %740 = vst [vmem:[#allocation2 + $0xd0] sm:$0xff] %v706
        %741 = vst [vmem:[#allocation2 + $0xd8] sm:$0xff] %v708
        %742 = vst [vmem:[#allocation2 + $0xe0] sm:$0xff] %v637
        %743 = vst [vmem:[#allocation2 + $0xe8] sm:$0xff] %v639
        %744 = vst [vmem:[#allocation2 + $0xf0] sm:$0xff] %v710
        %745 = vst [vmem:[#allocation2 + $0xf8] sm:$0xff] %v712
        %v746 = vld [vmem:[#allocation2] sm:$0xff]
        %v747 = vld [vmem:[#allocation2 + $0x8] sm:$0xff]
        %v748 = vld [vmem:[#allocation2 + $0x10] sm:$0xff]
        %v749 = vld [vmem:[#allocation2 + $0x18] sm:$0xff]
        %v782 = vunpack.c.l.b16 %v469
        %v783 = vunpack.c.h.b16 %v469
        %v784 = vunpack.c.l.b16 %v470
        %v785 = vunpack.c.h.b16 %v470
        %v786 = vunpack.c.l.b16 %v471
        %v787 = vunpack.c.h.b16 %v471
        %v788 = vunpack.c.l.b16 %v472
        %v789 = vunpack.c.h.b16 %v472
        %v790 = vunpack.c.l.b16 %v473
        %v791 = vunpack.c.h.b16 %v473
        %v792 = vunpack.c.l.b16 %v474
        %v793 = vunpack.c.h.b16 %v474
        %v794 = vunpack.c.l.b16 %v475
        %v795 = vunpack.c.h.b16 %v475
        %v796 = vunpack.c.l.b16 %v476
        %v797 = vunpack.c.h.b16 %v476
        %v798 = vunpack.c.l.b16 %v477
        %v799 = vunpack.c.h.b16 %v477
        %v800 = vunpack.c.l.b16 %v478
        %v801 = vunpack.c.h.b16 %v478
        %v802 = vunpack.c.l.b16 %v479
        %v803 = vunpack.c.h.b16 %v479
        %v804 = vunpack.c.l.b16 %v480
        %v805 = vunpack.c.h.b16 %v480
        %v806 = vunpack.c.l.b16 %v481
        %v807 = vunpack.c.h.b16 %v481
        %v808 = vunpack.c.l.b16 %v482
        %v809 = vunpack.c.h.b16 %v482
        %v810 = vunpack.c.l.b16 %v483
        %v811 = vunpack.c.h.b16 %v483
        %v812 = vunpack.c.l.b16 %v484
        %v813 = vunpack.c.h.b16 %v484
        %v814 = vunpack.c.l.b16 %v485
        %v815 = vunpack.c.h.b16 %v485
        %v816 = vunpack.c.l.b16 %v486
        %v817 = vunpack.c.h.b16 %v486
        %v818 = vunpack.c.l.b16 %v487
        %v819 = vunpack.c.h.b16 %v487
        %v820 = vunpack.c.l.b16 %v488
        %v821 = vunpack.c.h.b16 %v488
        %v822 = vunpack.c.l.b16 %v489
        %v823 = vunpack.c.h.b16 %v489
        %v824 = vunpack.c.l.b16 %v490
        %v825 = vunpack.c.h.b16 %v490
        %v826 = vunpack.c.l.b16 %v491
        %v827 = vunpack.c.h.b16 %v491
        %v828 = vunpack.c.l.b16 %v492
        %v829 = vunpack.c.h.b16 %v492
        %v830 = vunpack.c.l.b16 %v493
        %v831 = vunpack.c.h.b16 %v493
        %v832 = vunpack.c.l.b16 %v494
        %v833 = vunpack.c.h.b16 %v494
        %v834 = vunpack.c.l.b16 %v495
        %v835 = vunpack.c.h.b16 %v495
        %v836 = vunpack.c.l.b16 %v496
        %v837 = vunpack.c.h.b16 %v496
        %v838 = vunpack.c.l.b16 %v497
        %v839 = vunpack.c.h.b16 %v497
        %v840 = vunpack.c.l.b16 %v498
        %v841 = vunpack.c.h.b16 %v498
        %v842 = vunpack.c.l.b16 %v499
        %v843 = vunpack.c.h.b16 %v499
        %v844 = vunpack.c.l.b16 %v500
        %v845 = vunpack.c.h.b16 %v500
        %v846 = vpack.c.b16 %v786, %v782
        %v847 = vpack.c.b16 %v787, %v783
        %v848 = vpack.c.b16 %v788, %v784
        %v849 = vpack.c.b16 %v789, %v785
        %v850 = vpack.c.b16 %v794, %v790
        %v851 = vpack.c.b16 %v795, %v791
        %v852 = vpack.c.b16 %v796, %v792
        %v853 = vpack.c.b16 %v797, %v793
        %v854 = vpack.c.b16 %v802, %v798
        %v855 = vpack.c.b16 %v803, %v799
        %v856 = vpack.c.b16 %v804, %v800
        %v857 = vpack.c.b16 %v805, %v801
        %v858 = vpack.c.b16 %v810, %v806
        %v859 = vpack.c.b16 %v811, %v807
        %v860 = vpack.c.b16 %v812, %v808
        %v861 = vpack.c.b16 %v813, %v809
        %v862 = vpack.c.b16 %v818, %v814
        %v863 = vpack.c.b16 %v819, %v815
        %v864 = vpack.c.b16 %v820, %v816
        %v865 = vpack.c.b16 %v821, %v817
        %v866 = vpack.c.b16 %v826, %v822
        %v867 = vpack.c.b16 %v827, %v823
        %v868 = vpack.c.b16 %v828, %v824
        %v869 = vpack.c.b16 %v829, %v825
        %v870 = vpack.c.b16 %v834, %v830
        %v871 = vpack.c.b16 %v835, %v831
        %v872 = vpack.c.b16 %v836, %v832
        %v873 = vpack.c.b16 %v837, %v833
        %v874 = vpack.c.b16 %v842, %v838
        %v875 = vpack.c.b16 %v843, %v839
        %v876 = vpack.c.b16 %v844, %v840
        %v877 = vpack.c.b16 %v845, %v841
        %910 = vmatprep.subr.bf16.mxu0 %v847
        %911 = vmatpush1.bf16.msra.mxu0 %v846
        %912 = vmatprep.subr.bf16.mxu0 %v851
        %913 = vmatpush1.bf16.msra.mxu0 %v850
        %914 = vmatprep.subr.bf16.mxu0 %v855
        %915 = vmatpush1.bf16.msra.mxu0 %v854
        %916 = vmatprep.subr.bf16.mxu0 %v859
        %917 = vmatpush1.bf16.msra.mxu0 %v858
        %918 = vmatprep.subr.bf16.mxu0 %v863
        %919 = vmatpush1.bf16.msra.mxu0 %v862
        %920 = vmatprep.subr.bf16.mxu0 %v867
        %921 = vmatpush1.bf16.msra.mxu0 %v866
        %922 = vmatprep.subr.bf16.mxu0 %v871
        %923 = vmatpush1.bf16.msra.mxu0 %v870
        %924 = vmatprep.subr.bf16.mxu0 %v875
        %925 = vmatpush1.bf16.msra.mxu0 %v874
        %926 = vmatprep.subr.bf16.mxu0 0
        %927 = vmatpush1.bf16.msra.mxu0 0
        %928 = vmatprep.subr.bf16.mxu0 0
        %929 = vmatpush1.bf16.msra.mxu0 0
        %930 = vmatprep.subr.bf16.mxu0 0
        %931 = vmatpush1.bf16.msra.mxu0 0
        %932 = vmatprep.subr.bf16.mxu0 0
        %933 = vmatpush1.bf16.msra.mxu0 0
        %934 = vmatprep.subr.bf16.mxu0 0
        %935 = vmatpush1.bf16.msra.mxu0 0
        %936 = vmatprep.subr.bf16.mxu0 0
        %937 = vmatpush1.bf16.msra.mxu0 0
        %938 = vmatprep.subr.bf16.mxu0 0
        %939 = vmatpush1.bf16.msra.mxu0 0
        %940 = vmatprep.subr.bf16.mxu0 0
        %941 = vmatpush1.bf16.msra.mxu0 0
        %942 = vmatprep.mubr.bf16.mxu0 0
        %943 = vmatmul.mubr.bf16.gmra.mrb[0].mxu0 0
        %v944 = vpop.f32.mrb[0].mxu0
        %v945 = vadd.f32 0.0, %v944
        %v946 = vpop.f32.mrb[0].mxu0
        %v947 = vadd.f32 0.0, %v946
        %v948 = vpop.f32.mrb[0].mxu0
        %v949 = vpop.f32.mrb[0].mxu0
        %950 = vdwg.mxu0
        %951 = vmatprep.subr.bf16.mxu0 %v849
        %952 = vmatpush1.bf16.msra.mxu0 %v848
        %953 = vmatprep.subr.bf16.mxu0 %v853
        %954 = vmatpush1.bf16.msra.mxu0 %v852
        %955 = vmatprep.subr.bf16.mxu0 %v857
        %956 = vmatpush1.bf16.msra.mxu0 %v856
        %957 = vmatprep.subr.bf16.mxu0 %v861
        %958 = vmatpush1.bf16.msra.mxu0 %v860
        %959 = vmatprep.subr.bf16.mxu0 %v865
        %960 = vmatpush1.bf16.msra.mxu0 %v864
        %961 = vmatprep.subr.bf16.mxu0 %v869
        %962 = vmatpush1.bf16.msra.mxu0 %v868
        %963 = vmatprep.subr.bf16.mxu0 %v873
        %964 = vmatpush1.bf16.msra.mxu0 %v872
        %965 = vmatprep.subr.bf16.mxu0 %v877
        %966 = vmatpush1.bf16.msra.mxu0 %v876
        %967 = vmatprep.subr.bf16.mxu0 0
        %968 = vmatpush1.bf16.msra.mxu0 0
        %969 = vmatprep.subr.bf16.mxu0 0
        %970 = vmatpush1.bf16.msra.mxu0 0
        %971 = vmatprep.subr.bf16.mxu0 0
        %972 = vmatpush1.bf16.msra.mxu0 0
        %973 = vmatprep.subr.bf16.mxu0 0
        %974 = vmatpush1.bf16.msra.mxu0 0
        %975 = vmatprep.subr.bf16.mxu0 0
        %976 = vmatpush1.bf16.msra.mxu0 0
        %977 = vmatprep.subr.bf16.mxu0 0
        %978 = vmatpush1.bf16.msra.mxu0 0
        %979 = vmatprep.subr.bf16.mxu0 0
        %980 = vmatpush1.bf16.msra.mxu0 0
        %981 = vmatprep.subr.bf16.mxu0 0
        %982 = vmatpush1.bf16.msra.mxu0 0
        %983 = vmatprep.mubr.bf16.mxu0 0
        %984 = vmatmul.mubr.bf16.gmra.mrb[0].mxu0 0
        %v985 = vpop.f32.mrb[0].mxu0
        %v986 = vadd.f32 0.0, %v985
        %v987 = vpop.f32.mrb[0].mxu0
        %v988 = vadd.f32 0.0, %v987
        %v989 = vpop.f32.mrb[0].mxu0
        %v990 = vpop.f32.mrb[0].mxu0
        %991 = vdwg.mxu0
        %v992 = vadd.f32 %v746, %v945
        %v993 = vadd.f32 %v747, %v947
        %v994 = vadd.f32 %v748, %v986
        %v995 = vadd.f32 %v749, %v988
        %v996 = vsub.f32 0.0, %v992
        %v997 = vsub.f32 0.0, %v993
        %v998 = vsub.f32 0.0, %v994
        %v999 = vmul.f32 %v996, 1.442695
        %v1000 = vpow.pop %v999
        %v1001 = vmul.f32 %v997, 1.442695
        %v1002 = vpow.pop %v1001
        %v1003 = vmul.f32 %v998, 1.442695
        %v1004 = vpow.pop %v1003
        %v1005 = vadd.f32 %v1000, 1.0
        %v1006 = vadd.f32 %v1002, 1.0
        %v1007 = vadd.f32 %v1004, 1.0
        %v1008 = vrcp.pop %v1005
        %v1009 = vrcp.pop %v1006
        %v1010 = vrcp.pop %v1007
        %v1011 = vtanh.pop %v995
        %v1012 = vmul.f32 %v1009, 0.0
        %v1013 = vmul.f32 %v1008, %v1011
        %v1014 = vadd.f32 %v1012, %v1013
        %v1015 = vtanh.pop %v1014
        %v1016 = vmul.f32 %v1010, %v1015
        %1017 = vst [vmem:[#allocation3] sm:$0xff] %v1016
        %s1018 = scalar_lea.vmem [#allocation2], 32
        %v1019 = vld [vmem:[%s1018] sm:$0xff]
        %v1020 = vld [vmem:[%s1018 + $0x8] sm:$0xff]
        %v1021 = vld [vmem:[%s1018 + $0x10] sm:$0xff]
        %v1022 = vld [vmem:[%s1018 + $0x18] sm:$0xff]
        %v1023 = vpack.c.bf16 %v1016, %v1016
        %1024 = vmatprep.subr.bf16.mxu0 %v847
        %1025 = vmatpush1.bf16.msra.mxu0 %v846
        %1026 = vmatprep.subr.bf16.mxu0 %v851
        %1027 = vmatpush1.bf16.msra.mxu0 %v850
        %1028 = vmatprep.subr.bf16.mxu0 %v855
        %1029 = vmatpush1.bf16.msra.mxu0 %v854
        %1030 = vmatprep.subr.bf16.mxu0 %v859
        %1031 = vmatpush1.bf16.msra.mxu0 %v858
        %1032 = vmatprep.subr.bf16.mxu0 %v863
        %1033 = vmatpush1.bf16.msra.mxu0 %v862
        %1034 = vmatprep.subr.bf16.mxu0 %v867
        %1035 = vmatpush1.bf16.msra.mxu0 %v866
        %1036 = vmatprep.subr.bf16.mxu0 %v871
        %1037 = vmatpush1.bf16.msra.mxu0 %v870
        %1038 = vmatprep.subr.bf16.mxu0 %v875
        %1039 = vmatpush1.bf16.msra.mxu0 %v874
        %1040 = vmatprep.subr.bf16.mxu0 0
        %1041 = vmatpush1.bf16.msra.mxu0 0
        %1042 = vmatprep.subr.bf16.mxu0 0
        %1043 = vmatpush1.bf16.msra.mxu0 0
        %1044 = vmatprep.subr.bf16.mxu0 0
        %1045 = vmatpush1.bf16.msra.mxu0 0
        %1046 = vmatprep.subr.bf16.mxu0 0
        %1047 = vmatpush1.bf16.msra.mxu0 0
        %1048 = vmatprep.subr.bf16.mxu0 0
        %1049 = vmatpush1.bf16.msra.mxu0 0
        %1050 = vmatprep.subr.bf16.mxu0 0
        %1051 = vmatpush1.bf16.msra.mxu0 0
        %1052 = vmatprep.subr.bf16.mxu0 0
        %1053 = vmatpush1.bf16.msra.mxu0 0
        %1054 = vmatprep.subr.bf16.mxu0 0
        %1055 = vmatpush1.bf16.msra.mxu0 0
        %1056 = vmatprep.mubr.bf16.mxu0 0
        %1057 = vmatmul.mubr.bf16.gmra.mrb[0].mxu0 %v1023
        %v1058 = vpop.f32.mrb[0].mxu0
        %v1059 = vadd.f32 0.0, %v1058
        %v1060 = vpop.f32.mrb[0].mxu0
        %v1061 = vadd.f32 0.0, %v1060
        %v1062 = vpop.f32.mrb[0].mxu0
        %v1063 = vpop.f32.mrb[0].mxu0
        %1064 = vdwg.mxu0
        %1065 = vmatprep.subr.bf16.mxu0 %v849
        %1066 = vmatpush1.bf16.msra.mxu0 %v848
        %1067 = vmatprep.subr.bf16.mxu0 %v853
        %1068 = vmatpush1.bf16.msra.mxu0 %v852
        %1069 = vmatprep.subr.bf16.mxu0 %v857
        %1070 = vmatpush1.bf16.msra.mxu0 %v856
        %1071 = vmatprep.subr.bf16.mxu0 %v861
        %1072 = vmatpush1.bf16.msra.mxu0 %v860
        %1073 = vmatprep.subr.bf16.mxu0 %v865
        %1074 = vmatpush1.bf16.msra.mxu0 %v864
        %1075 = vmatprep.subr.bf16.mxu0 %v869
        %1076 = vmatpush1.bf16.msra.mxu0 %v868
        %1077 = vmatprep.subr.bf16.mxu0 %v873
        %1078 = vmatpush1.bf16.msra.mxu0 %v872
        %1079 = vmatprep.subr.bf16.mxu0 %v877
        %1080 = vmatpush1.bf16.msra.mxu0 %v876
        %1081 = vmatprep.subr.bf16.mxu0 0
        %1082 = vmatpush1.bf16.msra.mxu0 0
        %1083 = vmatprep.subr.bf16.mxu0 0
        %1084 = vmatpush1.bf16.msra.mxu0 0
        %1085 = vmatprep.subr.bf16.mxu0 0
        %1086 = vmatpush1.bf16.msra.mxu0 0
        %1087 = vmatprep.subr.bf16.mxu0 0
        %1088 = vmatpush1.bf16.msra.mxu0 0
        %1089 = vmatprep.subr.bf16.mxu0 0
        %1090 = vmatpush1.bf16.msra.mxu0 0
        %1091 = vmatprep.subr.bf16.mxu0 0
        %1092 = vmatpush1.bf16.msra.mxu0 0
        %1093 = vmatprep.subr.bf16.mxu0 0
        %1094 = vmatpush1.bf16.msra.mxu0 0
        %1095 = vmatprep.subr.bf16.mxu0 0
        %1096 = vmatpush1.bf16.msra.mxu0 0
        %1097 = vmatprep.mubr.bf16.mxu0 0
        %1098 = vmatmul.mubr.bf16.gmra.mrb[0].mxu0 %v1023
        %v1099 = vpop.f32.mrb[0].mxu0
        %v1100 = vadd.f32 0.0, %v1099
        %v1101 = vpop.f32.mrb[0].mxu0
        %v1102 = vadd.f32 0.0, %v1101
        %v1103 = vpop.f32.mrb[0].mxu0
        %v1104 = vpop.f32.mrb[0].mxu0
        %1105 = vdwg.mxu0
        %v1106 = vadd.f32 %v1019, %v1059
        %v1107 = vadd.f32 %v1020, %v1061
        %v1108 = vadd.f32 %v1021, %v1100
        %v1109 = vadd.f32 %v1022, %v1102
        %v1110 = vsub.f32 0.0, %v1106
        %v1111 = vsub.f32 0.0, %v1107
        %v1112 = vsub.f32 0.0, %v1108
        %v1113 = vmul.f32 %v1110, 1.442695
        %v1114 = vpow.pop %v1113
        %v1115 = vmul.f32 %v1111, 1.442695
        %v1116 = vpow.pop %v1115
        %v1117 = vmul.f32 %v1112, 1.442695
        %v1118 = vpow.pop %v1117
        %v1119 = vadd.f32 %v1114, 1.0
        %v1120 = vadd.f32 %v1116, 1.0
        %v1121 = vadd.f32 %v1118, 1.0
        %v1122 = vrcp.pop %v1119
        %v1123 = vrcp.pop %v1120
        %v1124 = vrcp.pop %v1121
        %v1125 = vtanh.pop %v1109
        %v1126 = vmul.f32 %v1123, %v1014
        %v1127 = vmul.f32 %v1122, %v1125
        %v1128 = vadd.f32 %v1126, %v1127
        %v1129 = vtanh.pop %v1128
        %v1130 = vmul.f32 %v1124, %v1129
        %s1131 = scalar_lea.vmem [#allocation3], 8
        %1132 = vst [vmem:[%s1131] sm:$0xff] %v1130
        %s1133 = scalar_lea.vmem [#allocation2], 64
        %v1134 = vld [vmem:[%s1133] sm:$0xff]
        %v1135 = vld [vmem:[%s1133 + $0x8] sm:$0xff]
        %v1136 = vld [vmem:[%s1133 + $0x10] sm:$0xff]
        %v1137 = vld [vmem:[%s1133 + $0x18] sm:$0xff]
        %v1138 = vpack.c.bf16 %v1130, %v1130
        %1139 = vmatprep.subr.bf16.mxu0 %v847
        %1140 = vmatpush1.bf16.msra.mxu0 %v846
        %1141 = vmatprep.subr.bf16.mxu0 %v851
        %1142 = vmatpush1.bf16.msra.mxu0 %v850
        %1143 = vmatprep.subr.bf16.mxu0 %v855
        %1144 = vmatpush1.bf16.msra.mxu0 %v854
        %1145 = vmatprep.subr.bf16.mxu0 %v859
        %1146 = vmatpush1.bf16.msra.mxu0 %v858
        %1147 = vmatprep.subr.bf16.mxu0 %v863
        %1148 = vmatpush1.bf16.msra.mxu0 %v862
        %1149 = vmatprep.subr.bf16.mxu0 %v867
        %1150 = vmatpush1.bf16.msra.mxu0 %v866
        %1151 = vmatprep.subr.bf16.mxu0 %v871
        %1152 = vmatpush1.bf16.msra.mxu0 %v870
        %1153 = vmatprep.subr.bf16.mxu0 %v875
        %1154 = vmatpush1.bf16.msra.mxu0 %v874
        %1155 = vmatprep.subr.bf16.mxu0 0
        %1156 = vmatpush1.bf16.msra.mxu0 0
        %1157 = vmatprep.subr.bf16.mxu0 0
        %1158 = vmatpush1.bf16.msra.mxu0 0
        %1159 = vmatprep.subr.bf16.mxu0 0
        %1160 = vmatpush1.bf16.msra.mxu0 0
        %1161 = vmatprep.subr.bf16.mxu0 0
        %1162 = vmatpush1.bf16.msra.mxu0 0
        %1163 = vmatprep.subr.bf16.mxu0 0
        %1164 = vmatpush1.bf16.msra.mxu0 0
        %1165 = vmatprep.subr.bf16.mxu0 0
        %1166 = vmatpush1.bf16.msra.mxu0 0
        %1167 = vmatprep.subr.bf16.mxu0 0
        %1168 = vmatpush1.bf16.msra.mxu0 0
        %1169 = vmatprep.subr.bf16.mxu0 0
        %1170 = vmatpush1.bf16.msra.mxu0 0
        %1171 = vmatprep.mubr.bf16.mxu0 0
        %1172 = vmatmul.mubr.bf16.gmra.mrb[0].mxu0 %v1138
        %v1173 = vpop.f32.mrb[0].mxu0
        %v1174 = vadd.f32 0.0, %v1173
        %v1175 = vpop.f32.mrb[0].mxu0
        %v1176 = vadd.f32 0.0, %v1175
        %v1177 = vpop.f32.mrb[0].mxu0
        %v1178 = vpop.f32.mrb[0].mxu0
        %1179 = vdwg.mxu0
        %1180 = vmatprep.subr.bf16.mxu0 %v849
        %1181 = vmatpush1.bf16.msra.mxu0 %v848
        %1182 = vmatprep.subr.bf16.mxu0 %v853
        %1183 = vmatpush1.bf16.msra.mxu0 %v852
        %1184 = vmatprep.subr.bf16.mxu0 %v857
        %1185 = vmatpush1.bf16.msra.mxu0 %v856
        %1186 = vmatprep.subr.bf16.mxu0 %v861
        %1187 = vmatpush1.bf16.msra.mxu0 %v860
        %1188 = vmatprep.subr.bf16.mxu0 %v865
        %1189 = vmatpush1.bf16.msra.mxu0 %v864
        %1190 = vmatprep.subr.bf16.mxu0 %v869
        %1191 = vmatpush1.bf16.msra.mxu0 %v868
        %1192 = vmatprep.subr.bf16.mxu0 %v873
        %1193 = vmatpush1.bf16.msra.mxu0 %v872
        %1194 = vmatprep.subr.bf16.mxu0 %v877
        %1195 = vmatpush1.bf16.msra.mxu0 %v876
        %1196 = vmatprep.subr.bf16.mxu0 0
        %1197 = vmatpush1.bf16.msra.mxu0 0
        %1198 = vmatprep.subr.bf16.mxu0 0
        %1199 = vmatpush1.bf16.msra.mxu0 0
        %1200 = vmatprep.subr.bf16.mxu0 0
        %1201 = vmatpush1.bf16.msra.mxu0 0
        %1202 = vmatprep.subr.bf16.mxu0 0
        %1203 = vmatpush1.bf16.msra.mxu0 0
        %1204 = vmatprep.subr.bf16.mxu0 0
        %1205 = vmatpush1.bf16.msra.mxu0 0
        %1206 = vmatprep.subr.bf16.mxu0 0
        %1207 = vmatpush1.bf16.msra.mxu0 0
        %1208 = vmatprep.subr.bf16.mxu0 0
        %1209 = vmatpush1.bf16.msra.mxu0 0
        %1210 = vmatprep.subr.bf16.mxu0 0
        %1211 = vmatpush1.bf16.msra.mxu0 0
        %1212 = vmatprep.mubr.bf16.mxu0 0
        %1213 = vmatmul.mubr.bf16.gmra.mrb[0].mxu0 %v1138
        %v1214 = vpop.f32.mrb[0].mxu0
        %v1215 = vadd.f32 0.0, %v1214
        %v1216 = vpop.f32.mrb[0].mxu0
        %v1217 = vadd.f32 0.0, %v1216
        %v1218 = vpop.f32.mrb[0].mxu0
        %v1219 = vpop.f32.mrb[0].mxu0
        %1220 = vdwg.mxu0
        %v1221 = vadd.f32 %v1134, %v1174
        %v1222 = vadd.f32 %v1135, %v1176
        %v1223 = vadd.f32 %v1136, %v1215
        %v1224 = vadd.f32 %v1137, %v1217
        %v1225 = vsub.f32 0.0, %v1221
        %v1226 = vsub.f32 0.0, %v1222
        %v1227 = vsub.f32 0.0, %v1223
        %v1228 = vmul.f32 %v1225, 1.442695
        %v1229 = vpow.pop %v1228
        %v1230 = vmul.f32 %v1226, 1.442695
        %v1231 = vpow.pop %v1230
        %v1232 = vmul.f32 %v1227, 1.442695
        %v1233 = vpow.pop %v1232
        %v1234 = vadd.f32 %v1229, 1.0
        %v1235 = vadd.f32 %v1231, 1.0
        %v1236 = vadd.f32 %v1233, 1.0
        %v1237 = vrcp.pop %v1234
        %v1238 = vrcp.pop %v1235
        %v1239 = vrcp.pop %v1236
        %v1240 = vtanh.pop %v1224
        %v1241 = vmul.f32 %v1238, %v1128
        %v1242 = vmul.f32 %v1237, %v1240
        %v1243 = vadd.f32 %v1241, %v1242
        %v1244 = vtanh.pop %v1243
        %v1245 = vmul.f32 %v1239, %v1244
        %s1246 = scalar_lea.vmem [#allocation3], 16
        %1247 = vst [vmem:[%s1246] sm:$0xff] %v1245
        %s1248 = scalar_lea.vmem [#allocation2], 96
        %v1249 = vld [vmem:[%s1248] sm:$0xff]
        %v1250 = vld [vmem:[%s1248 + $0x8] sm:$0xff]
        %v1251 = vld [vmem:[%s1248 + $0x10] sm:$0xff]
        %v1252 = vld [vmem:[%s1248 + $0x18] sm:$0xff]
        %v1253 = vpack.c.bf16 %v1245, %v1245
        %1254 = vmatprep.subr.bf16.mxu0 %v847
        %1255 = vmatpush1.bf16.msra.mxu0 %v846
        %1256 = vmatprep.subr.bf16.mxu0 %v851
        %1257 = vmatpush1.bf16.msra.mxu0 %v850
        %1258 = vmatprep.subr.bf16.mxu0 %v855
        %1259 = vmatpush1.bf16.msra.mxu0 %v854
        %1260 = vmatprep.subr.bf16.mxu0 %v859
        %1261 = vmatpush1.bf16.msra.mxu0 %v858
        %1262 = vmatprep.subr.bf16.mxu0 %v863
        %1263 = vmatpush1.bf16.msra.mxu0 %v862
        %1264 = vmatprep.subr.bf16.mxu0 %v867
        %1265 = vmatpush1.bf16.msra.mxu0 %v866
        %1266 = vmatprep.subr.bf16.mxu0 %v871
        %1267 = vmatpush1.bf16.msra.mxu0 %v870
        %1268 = vmatprep.subr.bf16.mxu0 %v875
        %1269 = vmatpush1.bf16.msra.mxu0 %v874
        %1270 = vmatprep.subr.bf16.mxu0 0
        %1271 = vmatpush1.bf16.msra.mxu0 0
        %1272 = vmatprep.subr.bf16.mxu0 0
        %1273 = vmatpush1.bf16.msra.mxu0 0
        %1274 = vmatprep.subr.bf16.mxu0 0
        %1275 = vmatpush1.bf16.msra.mxu0 0
        %1276 = vmatprep.subr.bf16.mxu0 0
        %1277 = vmatpush1.bf16.msra.mxu0 0
        %1278 = vmatprep.subr.bf16.mxu0 0
        %1279 = vmatpush1.bf16.msra.mxu0 0
        %1280 = vmatprep.subr.bf16.mxu0 0
        %1281 = vmatpush1.bf16.msra.mxu0 0
        %1282 = vmatprep.subr.bf16.mxu0 0
        %1283 = vmatpush1.bf16.msra.mxu0 0
        %1284 = vmatprep.subr.bf16.mxu0 0
        %1285 = vmatpush1.bf16.msra.mxu0 0
        %1286 = vmatprep.mubr.bf16.mxu0 0
        %1287 = vmatmul.mubr.bf16.gmra.mrb[0].mxu0 %v1253
        %v1288 = vpop.f32.mrb[0].mxu0
        %v1289 = vadd.f32 0.0, %v1288
        %v1290 = vpop.f32.mrb[0].mxu0
        %v1291 = vadd.f32 0.0, %v1290
        %v1292 = vpop.f32.mrb[0].mxu0
        %v1293 = vpop.f32.mrb[0].mxu0
        %1294 = vdwg.mxu0
        %1295 = vmatprep.subr.bf16.mxu0 %v849
        %1296 = vmatpush1.bf16.msra.mxu0 %v848
        %1297 = vmatprep.subr.bf16.mxu0 %v853
        %1298 = vmatpush1.bf16.msra.mxu0 %v852
        %1299 = vmatprep.subr.bf16.mxu0 %v857
        %1300 = vmatpush1.bf16.msra.mxu0 %v856
        %1301 = vmatprep.subr.bf16.mxu0 %v861
        %1302 = vmatpush1.bf16.msra.mxu0 %v860
        %1303 = vmatprep.subr.bf16.mxu0 %v865
        %1304 = vmatpush1.bf16.msra.mxu0 %v864
        %1305 = vmatprep.subr.bf16.mxu0 %v869
        %1306 = vmatpush1.bf16.msra.mxu0 %v868
        %1307 = vmatprep.subr.bf16.mxu0 %v873
        %1308 = vmatpush1.bf16.msra.mxu0 %v872
        %1309 = vmatprep.subr.bf16.mxu0 %v877
        %1310 = vmatpush1.bf16.msra.mxu0 %v876
        %1311 = vmatprep.subr.bf16.mxu0 0
        %1312 = vmatpush1.bf16.msra.mxu0 0
        %1313 = vmatprep.subr.bf16.mxu0 0
        %1314 = vmatpush1.bf16.msra.mxu0 0
        %1315 = vmatprep.subr.bf16.mxu0 0
        %1316 = vmatpush1.bf16.msra.mxu0 0
        %1317 = vmatprep.subr.bf16.mxu0 0
        %1318 = vmatpush1.bf16.msra.mxu0 0
        %1319 = vmatprep.subr.bf16.mxu0 0
        %1320 = vmatpush1.bf16.msra.mxu0 0
        %1321 = vmatprep.subr.bf16.mxu0 0
        %1322 = vmatpush1.bf16.msra.mxu0 0
        %1323 = vmatprep.subr.bf16.mxu0 0
        %1324 = vmatpush1.bf16.msra.mxu0 0
        %1325 = vmatprep.subr.bf16.mxu0 0
        %1326 = vmatpush1.bf16.msra.mxu0 0
        %1327 = vmatprep.mubr.bf16.mxu0 0
        %1328 = vmatmul.mubr.bf16.gmra.mrb[0].mxu0 %v1253
        %v1329 = vpop.f32.mrb[0].mxu0
        %v1330 = vadd.f32 0.0, %v1329
        %v1331 = vpop.f32.mrb[0].mxu0
        %v1332 = vadd.f32 0.0, %v1331
        %v1333 = vpop.f32.mrb[0].mxu0
        %v1334 = vpop.f32.mrb[0].mxu0
        %1335 = vdwg.mxu0
        %v1336 = vadd.f32 %v1249, %v1289
        %v1337 = vadd.f32 %v1250, %v1291
        %v1338 = vadd.f32 %v1251, %v1330
        %v1339 = vadd.f32 %v1252, %v1332
        %v1340 = vsub.f32 0.0, %v1336
        %v1341 = vsub.f32 0.0, %v1337
        %v1342 = vsub.f32 0.0, %v1338
        %v1343 = vmul.f32 %v1340, 1.442695
        %v1344 = vpow.pop %v1343
        %v1345 = vmul.f32 %v1341, 1.442695
        %v1346 = vpow.pop %v1345
        %v1347 = vmul.f32 %v1342, 1.442695
        %v1348 = vpow.pop %v1347
        %v1349 = vadd.f32 %v1344, 1.0
        %v1350 = vadd.f32 %v1346, 1.0
        %v1351 = vadd.f32 %v1348, 1.0
        %v1352 = vrcp.pop %v1349
        %v1353 = vrcp.pop %v1350
        %v1354 = vrcp.pop %v1351
        %v1355 = vtanh.pop %v1339
        %v1356 = vmul.f32 %v1353, %v1243
        %v1357 = vmul.f32 %v1352, %v1355
        %v1358 = vadd.f32 %v1356, %v1357
        %v1359 = vtanh.pop %v1358
        %v1360 = vmul.f32 %v1354, %v1359
        %s1361 = scalar_lea.vmem [#allocation3], 24
        %1362 = vst [vmem:[%s1361] sm:$0xff] %v1360
        %s1363 = scalar_lea.vmem [#allocation2], 128
        %v1364 = vld [vmem:[%s1363] sm:$0xff]
        %v1365 = vld [vmem:[%s1363 + $0x8] sm:$0xff]
        %v1366 = vld [vmem:[%s1363 + $0x10] sm:$0xff]
        %v1367 = vld [vmem:[%s1363 + $0x18] sm:$0xff]
        %v1368 = vpack.c.bf16 %v1360, %v1360
        %1369 = vmatprep.subr.bf16.mxu0 %v847
        %1370 = vmatpush1.bf16.msra.mxu0 %v846
        %1371 = vmatprep.subr.bf16.mxu0 %v851
        %1372 = vmatpush1.bf16.msra.mxu0 %v850
        %1373 = vmatprep.subr.bf16.mxu0 %v855
        %1374 = vmatpush1.bf16.msra.mxu0 %v854
        %1375 = vmatprep.subr.bf16.mxu0 %v859
        %1376 = vmatpush1.bf16.msra.mxu0 %v858
        %1377 = vmatprep.subr.bf16.mxu0 %v863
        %1378 = vmatpush1.bf16.msra.mxu0 %v862
        %1379 = vmatprep.subr.bf16.mxu0 %v867
        %1380 = vmatpush1.bf16.msra.mxu0 %v866
        %1381 = vmatprep.subr.bf16.mxu0 %v871
        %1382 = vmatpush1.bf16.msra.mxu0 %v870
        %1383 = vmatprep.subr.bf16.mxu0 %v875
        %1384 = vmatpush1.bf16.msra.mxu0 %v874
        %1385 = vmatprep.subr.bf16.mxu0 0
        %1386 = vmatpush1.bf16.msra.mxu0 0
        %1387 = vmatprep.subr.bf16.mxu0 0
        %1388 = vmatpush1.bf16.msra.mxu0 0
        %1389 = vmatprep.subr.bf16.mxu0 0
        %1390 = vmatpush1.bf16.msra.mxu0 0
        %1391 = vmatprep.subr.bf16.mxu0 0
        %1392 = vmatpush1.bf16.msra.mxu0 0
        %1393 = vmatprep.subr.bf16.mxu0 0
        %1394 = vmatpush1.bf16.msra.mxu0 0
        %1395 = vmatprep.subr.bf16.mxu0 0
        %1396 = vmatpush1.bf16.msra.mxu0 0
        %1397 = vmatprep.subr.bf16.mxu0 0
        %1398 = vmatpush1.bf16.msra.mxu0 0
        %1399 = vmatprep.subr.bf16.mxu0 0
        %1400 = vmatpush1.bf16.msra.mxu0 0
        %1401 = vmatprep.mubr.bf16.mxu0 0
        %1402 = vmatmul.mubr.bf16.gmra.mrb[0].mxu0 %v1368
        %v1403 = vpop.f32.mrb[0].mxu0
        %v1404 = vadd.f32 0.0, %v1403
        %v1405 = vpop.f32.mrb[0].mxu0
        %v1406 = vadd.f32 0.0, %v1405
        %v1407 = vpop.f32.mrb[0].mxu0
        %v1408 = vpop.f32.mrb[0].mxu0
        %1409 = vdwg.mxu0
        %1410 = vmatprep.subr.bf16.mxu0 %v849
        %1411 = vmatpush1.bf16.msra.mxu0 %v848
        %1412 = vmatprep.subr.bf16.mxu0 %v853
        %1413 = vmatpush1.bf16.msra.mxu0 %v852
        %1414 = vmatprep.subr.bf16.mxu0 %v857
        %1415 = vmatpush1.bf16.msra.mxu0 %v856
        %1416 = vmatprep.subr.bf16.mxu0 %v861
        %1417 = vmatpush1.bf16.msra.mxu0 %v860
        %1418 = vmatprep.subr.bf16.mxu0 %v865
        %1419 = vmatpush1.bf16.msra.mxu0 %v864
        %1420 = vmatprep.subr.bf16.mxu0 %v869
        %1421 = vmatpush1.bf16.msra.mxu0 %v868
        %1422 = vmatprep.subr.bf16.mxu0 %v873
        %1423 = vmatpush1.bf16.msra.mxu0 %v872
        %1424 = vmatprep.subr.bf16.mxu0 %v877
        %1425 = vmatpush1.bf16.msra.mxu0 %v876
        %1426 = vmatprep.subr.bf16.mxu0 0
        %1427 = vmatpush1.bf16.msra.mxu0 0
        %1428 = vmatprep.subr.bf16.mxu0 0
        %1429 = vmatpush1.bf16.msra.mxu0 0
        %1430 = vmatprep.subr.bf16.mxu0 0
        %1431 = vmatpush1.bf16.msra.mxu0 0
        %1432 = vmatprep.subr.bf16.mxu0 0
        %1433 = vmatpush1.bf16.msra.mxu0 0
        %1434 = vmatprep.subr.bf16.mxu0 0
        %1435 = vmatpush1.bf16.msra.mxu0 0
        %1436 = vmatprep.subr.bf16.mxu0 0
        %1437 = vmatpush1.bf16.msra.mxu0 0
        %1438 = vmatprep.subr.bf16.mxu0 0
        %1439 = vmatpush1.bf16.msra.mxu0 0
        %1440 = vmatprep.subr.bf16.mxu0 0
        %1441 = vmatpush1.bf16.msra.mxu0 0
        %1442 = vmatprep.mubr.bf16.mxu0 0
        %1443 = vmatmul.mubr.bf16.gmra.mrb[0].mxu0 %v1368
        %v1444 = vpop.f32.mrb[0].mxu0
        %v1445 = vadd.f32 0.0, %v1444
        %v1446 = vpop.f32.mrb[0].mxu0
        %v1447 = vadd.f32 0.0, %v1446
        %v1448 = vpop.f32.mrb[0].mxu0
        %v1449 = vpop.f32.mrb[0].mxu0
        %1450 = vdwg.mxu0
        %v1451 = vadd.f32 %v1364, %v1404
        %v1452 = vadd.f32 %v1365, %v1406
        %v1453 = vadd.f32 %v1366, %v1445
        %v1454 = vadd.f32 %v1367, %v1447
        %v1455 = vsub.f32 0.0, %v1451
        %v1456 = vsub.f32 0.0, %v1452
        %v1457 = vsub.f32 0.0, %v1453
        %v1458 = vmul.f32 %v1455, 1.442695
        %v1459 = vpow.pop %v1458
        %v1460 = vmul.f32 %v1456, 1.442695
        %v1461 = vpow.pop %v1460
        %v1462 = vmul.f32 %v1457, 1.442695
        %v1463 = vpow.pop %v1462
        %v1464 = vadd.f32 %v1459, 1.0
        %v1465 = vadd.f32 %v1461, 1.0
        %v1466 = vadd.f32 %v1463, 1.0
        %v1467 = vrcp.pop %v1464
        %v1468 = vrcp.pop %v1465
        %v1469 = vrcp.pop %v1466
        %v1470 = vtanh.pop %v1454
        %v1471 = vmul.f32 %v1468, %v1358
        %v1472 = vmul.f32 %v1467, %v1470
        %v1473 = vadd.f32 %v1471, %v1472
        %v1474 = vtanh.pop %v1473
        %v1475 = vmul.f32 %v1469, %v1474
        %s1476 = scalar_lea.vmem [#allocation3], 32
        %1477 = vst [vmem:[%s1476] sm:$0xff] %v1475
        %s1478 = scalar_lea.vmem [#allocation2], 160
        %v1479 = vld [vmem:[%s1478] sm:$0xff]
        %v1480 = vld [vmem:[%s1478 + $0x8] sm:$0xff]
        %v1481 = vld [vmem:[%s1478 + $0x10] sm:$0xff]
        %v1482 = vld [vmem:[%s1478 + $0x18] sm:$0xff]
        %v1483 = vpack.c.bf16 %v1475, %v1475
        %1484 = vmatprep.subr.bf16.mxu0 %v847
        %1485 = vmatpush1.bf16.msra.mxu0 %v846
        %1486 = vmatprep.subr.bf16.mxu0 %v851
        %1487 = vmatpush1.bf16.msra.mxu0 %v850
        %1488 = vmatprep.subr.bf16.mxu0 %v855
        %1489 = vmatpush1.bf16.msra.mxu0 %v854
        %1490 = vmatprep.subr.bf16.mxu0 %v859
        %1491 = vmatpush1.bf16.msra.mxu0 %v858
        %1492 = vmatprep.subr.bf16.mxu0 %v863
        %1493 = vmatpush1.bf16.msra.mxu0 %v862
        %1494 = vmatprep.subr.bf16.mxu0 %v867
        %1495 = vmatpush1.bf16.msra.mxu0 %v866
        %1496 = vmatprep.subr.bf16.mxu0 %v871
        %1497 = vmatpush1.bf16.msra.mxu0 %v870
        %1498 = vmatprep.subr.bf16.mxu0 %v875
        %1499 = vmatpush1.bf16.msra.mxu0 %v874
        %1500 = vmatprep.subr.bf16.mxu0 0
        %1501 = vmatpush1.bf16.msra.mxu0 0
        %1502 = vmatprep.subr.bf16.mxu0 0
        %1503 = vmatpush1.bf16.msra.mxu0 0
        %1504 = vmatprep.subr.bf16.mxu0 0
        %1505 = vmatpush1.bf16.msra.mxu0 0
        %1506 = vmatprep.subr.bf16.mxu0 0
        %1507 = vmatpush1.bf16.msra.mxu0 0
        %1508 = vmatprep.subr.bf16.mxu0 0
        %1509 = vmatpush1.bf16.msra.mxu0 0
        %1510 = vmatprep.subr.bf16.mxu0 0
        %1511 = vmatpush1.bf16.msra.mxu0 0
        %1512 = vmatprep.subr.bf16.mxu0 0
        %1513 = vmatpush1.bf16.msra.mxu0 0
        %1514 = vmatprep.subr.bf16.mxu0 0
        %1515 = vmatpush1.bf16.msra.mxu0 0
        %1516 = vmatprep.mubr.bf16.mxu0 0
        %1517 = vmatmul.mubr.bf16.gmra.mrb[0].mxu0 %v1483
        %v1518 = vpop.f32.mrb[0].mxu0
        %v1519 = vadd.f32 0.0, %v1518
        %v1520 = vpop.f32.mrb[0].mxu0
        %v1521 = vadd.f32 0.0, %v1520
        %v1522 = vpop.f32.mrb[0].mxu0
        %v1523 = vpop.f32.mrb[0].mxu0
        %1524 = vdwg.mxu0
        %1525 = vmatprep.subr.bf16.mxu0 %v849
        %1526 = vmatpush1.bf16.msra.mxu0 %v848
        %1527 = vmatprep.subr.bf16.mxu0 %v853
        %1528 = vmatpush1.bf16.msra.mxu0 %v852
        %1529 = vmatprep.subr.bf16.mxu0 %v857
        %1530 = vmatpush1.bf16.msra.mxu0 %v856
        %1531 = vmatprep.subr.bf16.mxu0 %v861
        %1532 = vmatpush1.bf16.msra.mxu0 %v860
        %1533 = vmatprep.subr.bf16.mxu0 %v865
        %1534 = vmatpush1.bf16.msra.mxu0 %v864
        %1535 = vmatprep.subr.bf16.mxu0 %v869
        %1536 = vmatpush1.bf16.msra.mxu0 %v868
        %1537 = vmatprep.subr.bf16.mxu0 %v873
        %1538 = vmatpush1.bf16.msra.mxu0 %v872
        %1539 = vmatprep.subr.bf16.mxu0 %v877
        %1540 = vmatpush1.bf16.msra.mxu0 %v876
        %1541 = vmatprep.subr.bf16.mxu0 0
        %1542 = vmatpush1.bf16.msra.mxu0 0
        %1543 = vmatprep.subr.bf16.mxu0 0
        %1544 = vmatpush1.bf16.msra.mxu0 0
        %1545 = vmatprep.subr.bf16.mxu0 0
        %1546 = vmatpush1.bf16.msra.mxu0 0
        %1547 = vmatprep.subr.bf16.mxu0 0
        %1548 = vmatpush1.bf16.msra.mxu0 0
        %1549 = vmatprep.subr.bf16.mxu0 0
        %1550 = vmatpush1.bf16.msra.mxu0 0
        %1551 = vmatprep.subr.bf16.mxu0 0
        %1552 = vmatpush1.bf16.msra.mxu0 0
        %1553 = vmatprep.subr.bf16.mxu0 0
        %1554 = vmatpush1.bf16.msra.mxu0 0
        %1555 = vmatprep.subr.bf16.mxu0 0
        %1556 = vmatpush1.bf16.msra.mxu0 0
        %1557 = vmatprep.mubr.bf16.mxu0 0
        %1558 = vmatmul.mubr.bf16.gmra.mrb[0].mxu0 %v1483
        %v1559 = vpop.f32.mrb[0].mxu0
        %v1560 = vadd.f32 0.0, %v1559
        %v1561 = vpop.f32.mrb[0].mxu0
        %v1562 = vadd.f32 0.0, %v1561
        %v1563 = vpop.f32.mrb[0].mxu0
        %v1564 = vpop.f32.mrb[0].mxu0
        %1565 = vdwg.mxu0
        %v1566 = vadd.f32 %v1479, %v1519
        %v1567 = vadd.f32 %v1480, %v1521
        %v1568 = vadd.f32 %v1481, %v1560
        %v1569 = vadd.f32 %v1482, %v1562
        %v1570 = vsub.f32 0.0, %v1566
        %v1571 = vsub.f32 0.0, %v1567
        %v1572 = vsub.f32 0.0, %v1568
        %v1573 = vmul.f32 %v1570, 1.442695
        %v1574 = vpow.pop %v1573
        %v1575 = vmul.f32 %v1571, 1.442695
        %v1576 = vpow.pop %v1575
        %v1577 = vmul.f32 %v1572, 1.442695
        %v1578 = vpow.pop %v1577
        %v1579 = vadd.f32 %v1574, 1.0
        %v1580 = vadd.f32 %v1576, 1.0
        %v1581 = vadd.f32 %v1578, 1.0
        %v1582 = vrcp.pop %v1579
        %v1583 = vrcp.pop %v1580
        %v1584 = vrcp.pop %v1581
        %v1585 = vtanh.pop %v1569
        %v1586 = vmul.f32 %v1583, %v1473
        %v1587 = vmul.f32 %v1582, %v1585
        %v1588 = vadd.f32 %v1586, %v1587
        %v1589 = vtanh.pop %v1588
        %v1590 = vmul.f32 %v1584, %v1589
        %s1591 = scalar_lea.vmem [#allocation3], 40
        %1592 = vst [vmem:[%s1591] sm:$0xff] %v1590
        %s1593 = scalar_lea.vmem [#allocation2], 192
        %v1594 = vld [vmem:[%s1593] sm:$0xff]
        %v1595 = vld [vmem:[%s1593 + $0x8] sm:$0xff]
        %v1596 = vld [vmem:[%s1593 + $0x10] sm:$0xff]
        %v1597 = vld [vmem:[%s1593 + $0x18] sm:$0xff]
        %v1598 = vpack.c.bf16 %v1590, %v1590
        %1599 = vmatprep.subr.bf16.mxu0 %v847
        %1600 = vmatpush1.bf16.msra.mxu0 %v846
        %1601 = vmatprep.subr.bf16.mxu0 %v851
        %1602 = vmatpush1.bf16.msra.mxu0 %v850
        %1603 = vmatprep.subr.bf16.mxu0 %v855
        %1604 = vmatpush1.bf16.msra.mxu0 %v854
        %1605 = vmatprep.subr.bf16.mxu0 %v859
        %1606 = vmatpush1.bf16.msra.mxu0 %v858
        %1607 = vmatprep.subr.bf16.mxu0 %v863
        %1608 = vmatpush1.bf16.msra.mxu0 %v862
        %1609 = vmatprep.subr.bf16.mxu0 %v867
        %1610 = vmatpush1.bf16.msra.mxu0 %v866
        %1611 = vmatprep.subr.bf16.mxu0 %v871
        %1612 = vmatpush1.bf16.msra.mxu0 %v870
        %1613 = vmatprep.subr.bf16.mxu0 %v875
        %1614 = vmatpush1.bf16.msra.mxu0 %v874
        %1615 = vmatprep.subr.bf16.mxu0 0
        %1616 = vmatpush1.bf16.msra.mxu0 0
        %1617 = vmatprep.subr.bf16.mxu0 0
        %1618 = vmatpush1.bf16.msra.mxu0 0
        %1619 = vmatprep.subr.bf16.mxu0 0
        %1620 = vmatpush1.bf16.msra.mxu0 0
        %1621 = vmatprep.subr.bf16.mxu0 0
        %1622 = vmatpush1.bf16.msra.mxu0 0
        %1623 = vmatprep.subr.bf16.mxu0 0
        %1624 = vmatpush1.bf16.msra.mxu0 0
        %1625 = vmatprep.subr.bf16.mxu0 0
        %1626 = vmatpush1.bf16.msra.mxu0 0
        %1627 = vmatprep.subr.bf16.mxu0 0
        %1628 = vmatpush1.bf16.msra.mxu0 0
        %1629 = vmatprep.subr.bf16.mxu0 0
        %1630 = vmatpush1.bf16.msra.mxu0 0
        %1631 = vmatprep.mubr.bf16.mxu0 0
        %1632 = vmatmul.mubr.bf16.gmra.mrb[0].mxu0 %v1598
        %v1633 = vpop.f32.mrb[0].mxu0
        %v1634 = vadd.f32 0.0, %v1633
        %v1635 = vpop.f32.mrb[0].mxu0
        %v1636 = vadd.f32 0.0, %v1635
        %v1637 = vpop.f32.mrb[0].mxu0
        %v1638 = vpop.f32.mrb[0].mxu0
        %1639 = vdwg.mxu0
        %1640 = vmatprep.subr.bf16.mxu0 %v849
        %1641 = vmatpush1.bf16.msra.mxu0 %v848
        %1642 = vmatprep.subr.bf16.mxu0 %v853
        %1643 = vmatpush1.bf16.msra.mxu0 %v852
        %1644 = vmatprep.subr.bf16.mxu0 %v857
        %1645 = vmatpush1.bf16.msra.mxu0 %v856
        %1646 = vmatprep.subr.bf16.mxu0 %v861
        %1647 = vmatpush1.bf16.msra.mxu0 %v860
        %1648 = vmatprep.subr.bf16.mxu0 %v865
        %1649 = vmatpush1.bf16.msra.mxu0 %v864
        %1650 = vmatprep.subr.bf16.mxu0 %v869
        %1651 = vmatpush1.bf16.msra.mxu0 %v868
        %1652 = vmatprep.subr.bf16.mxu0 %v873
        %1653 = vmatpush1.bf16.msra.mxu0 %v872
        %1654 = vmatprep.subr.bf16.mxu0 %v877
        %1655 = vmatpush1.bf16.msra.mxu0 %v876
        %1656 = vmatprep.subr.bf16.mxu0 0
        %1657 = vmatpush1.bf16.msra.mxu0 0
        %1658 = vmatprep.subr.bf16.mxu0 0
        %1659 = vmatpush1.bf16.msra.mxu0 0
        %1660 = vmatprep.subr.bf16.mxu0 0
        %1661 = vmatpush1.bf16.msra.mxu0 0
        %1662 = vmatprep.subr.bf16.mxu0 0
        %1663 = vmatpush1.bf16.msra.mxu0 0
        %1664 = vmatprep.subr.bf16.mxu0 0
        %1665 = vmatpush1.bf16.msra.mxu0 0
        %1666 = vmatprep.subr.bf16.mxu0 0
        %1667 = vmatpush1.bf16.msra.mxu0 0
        %1668 = vmatprep.subr.bf16.mxu0 0
        %1669 = vmatpush1.bf16.msra.mxu0 0
        %1670 = vmatprep.subr.bf16.mxu0 0
        %1671 = vmatpush1.bf16.msra.mxu0 0
        %1672 = vmatprep.mubr.bf16.mxu0 0
        %1673 = vmatmul.mubr.bf16.gmra.mrb[0].mxu0 %v1598
        %v1674 = vpop.f32.mrb[0].mxu0
        %v1675 = vadd.f32 0.0, %v1674
        %v1676 = vpop.f32.mrb[0].mxu0
        %v1677 = vadd.f32 0.0, %v1676
        %v1678 = vpop.f32.mrb[0].mxu0
        %v1679 = vpop.f32.mrb[0].mxu0
        %1680 = vdwg.mxu0
        %v1681 = vadd.f32 %v1594, %v1634
        %v1682 = vadd.f32 %v1595, %v1636
        %v1683 = vadd.f32 %v1596, %v1675
        %v1684 = vadd.f32 %v1597, %v1677
        %v1685 = vsub.f32 0.0, %v1681
        %v1686 = vsub.f32 0.0, %v1682
        %v1687 = vsub.f32 0.0, %v1683
        %v1688 = vmul.f32 %v1685, 1.442695
        %v1689 = vpow.pop %v1688
        %v1690 = vmul.f32 %v1686, 1.442695
        %v1691 = vpow.pop %v1690
        %v1692 = vmul.f32 %v1687, 1.442695
        %v1693 = vpow.pop %v1692
        %v1694 = vadd.f32 %v1689, 1.0
        %v1695 = vadd.f32 %v1691, 1.0
        %v1696 = vadd.f32 %v1693, 1.0
        %v1697 = vrcp.pop %v1694
        %v1698 = vrcp.pop %v1695
        %v1699 = vrcp.pop %v1696
        %v1700 = vtanh.pop %v1684
        %v1701 = vmul.f32 %v1698, %v1588
        %v1702 = vmul.f32 %v1697, %v1700
        %v1703 = vadd.f32 %v1701, %v1702
        %v1704 = vtanh.pop %v1703
        %v1705 = vmul.f32 %v1699, %v1704
        %s1706 = scalar_lea.vmem [#allocation3], 48
        %1707 = vst [vmem:[%s1706] sm:$0xff] %v1705
        %s1708 = scalar_lea.vmem [#allocation2], 224
        %v1709 = vld [vmem:[%s1708] sm:$0xff]
        %v1710 = vld [vmem:[%s1708 + $0x8] sm:$0xff]
        %v1711 = vld [vmem:[%s1708 + $0x10] sm:$0xff]
        %v1712 = vld [vmem:[%s1708 + $0x18] sm:$0xff]
        %v1713 = vpack.c.bf16 %v1705, %v1705
        %1714 = vmatprep.subr.bf16.mxu0 %v847
        %1715 = vmatpush1.bf16.msra.mxu0 %v846
        %1716 = vmatprep.subr.bf16.mxu0 %v851
        %1717 = vmatpush1.bf16.msra.mxu0 %v850
        %1718 = vmatprep.subr.bf16.mxu0 %v855
        %1719 = vmatpush1.bf16.msra.mxu0 %v854
        %1720 = vmatprep.subr.bf16.mxu0 %v859
        %1721 = vmatpush1.bf16.msra.mxu0 %v858
        %1722 = vmatprep.subr.bf16.mxu0 %v863
        %1723 = vmatpush1.bf16.msra.mxu0 %v862
        %1724 = vmatprep.subr.bf16.mxu0 %v867
        %1725 = vmatpush1.bf16.msra.mxu0 %v866
        %1726 = vmatprep.subr.bf16.mxu0 %v871
        %1727 = vmatpush1.bf16.msra.mxu0 %v870
        %1728 = vmatprep.subr.bf16.mxu0 %v875
        %1729 = vmatpush1.bf16.msra.mxu0 %v874
        %1730 = vmatprep.subr.bf16.mxu0 0
        %1731 = vmatpush1.bf16.msra.mxu0 0
        %1732 = vmatprep.subr.bf16.mxu0 0
        %1733 = vmatpush1.bf16.msra.mxu0 0
        %1734 = vmatprep.subr.bf16.mxu0 0
        %1735 = vmatpush1.bf16.msra.mxu0 0
        %1736 = vmatprep.subr.bf16.mxu0 0
        %1737 = vmatpush1.bf16.msra.mxu0 0
        %1738 = vmatprep.subr.bf16.mxu0 0
        %1739 = vmatpush1.bf16.msra.mxu0 0
        %1740 = vmatprep.subr.bf16.mxu0 0
        %1741 = vmatpush1.bf16.msra.mxu0 0
        %1742 = vmatprep.subr.bf16.mxu0 0
        %1743 = vmatpush1.bf16.msra.mxu0 0
        %1744 = vmatprep.subr.bf16.mxu0 0
        %1745 = vmatpush1.bf16.msra.mxu0 0
        %1746 = vmatprep.mubr.bf16.mxu0 0
        %1747 = vmatmul.mubr.bf16.gmra.mrb[0].mxu0 %v1713
        %v1748 = vpop.f32.mrb[0].mxu0
        %v1749 = vadd.f32 0.0, %v1748
        %v1750 = vpop.f32.mrb[0].mxu0
        %v1751 = vadd.f32 0.0, %v1750
        %v1752 = vpop.f32.mrb[0].mxu0
        %v1753 = vpop.f32.mrb[0].mxu0
        %1754 = vdwg.mxu0
        %1755 = vmatprep.subr.bf16.mxu0 %v849
        %1756 = vmatpush1.bf16.msra.mxu0 %v848
        %1757 = vmatprep.subr.bf16.mxu0 %v853
        %1758 = vmatpush1.bf16.msra.mxu0 %v852
        %1759 = vmatprep.subr.bf16.mxu0 %v857
        %1760 = vmatpush1.bf16.msra.mxu0 %v856
        %1761 = vmatprep.subr.bf16.mxu0 %v861
        %1762 = vmatpush1.bf16.msra.mxu0 %v860
        %1763 = vmatprep.subr.bf16.mxu0 %v865
        %1764 = vmatpush1.bf16.msra.mxu0 %v864
        %1765 = vmatprep.subr.bf16.mxu0 %v869
        %1766 = vmatpush1.bf16.msra.mxu0 %v868
        %1767 = vmatprep.subr.bf16.mxu0 %v873
        %1768 = vmatpush1.bf16.msra.mxu0 %v872
        %1769 = vmatprep.subr.bf16.mxu0 %v877
        %1770 = vmatpush1.bf16.msra.mxu0 %v876
        %1771 = vmatprep.subr.bf16.mxu0 0
        %1772 = vmatpush1.bf16.msra.mxu0 0
        %1773 = vmatprep.subr.bf16.mxu0 0
        %1774 = vmatpush1.bf16.msra.mxu0 0
        %1775 = vmatprep.subr.bf16.mxu0 0
        %1776 = vmatpush1.bf16.msra.mxu0 0
        %1777 = vmatprep.subr.bf16.mxu0 0
        %1778 = vmatpush1.bf16.msra.mxu0 0
        %1779 = vmatprep.subr.bf16.mxu0 0
        %1780 = vmatpush1.bf16.msra.mxu0 0
        %1781 = vmatprep.subr.bf16.mxu0 0
        %1782 = vmatpush1.bf16.msra.mxu0 0
        %1783 = vmatprep.subr.bf16.mxu0 0
        %1784 = vmatpush1.bf16.msra.mxu0 0
        %1785 = vmatprep.subr.bf16.mxu0 0
        %1786 = vmatpush1.bf16.msra.mxu0 0
        %1787 = vmatprep.mubr.bf16.mxu0 0
        %1788 = vmatmul.mubr.bf16.gmra.mrb[0].mxu0 %v1713
        %v1789 = vpop.f32.mrb[0].mxu0
        %v1790 = vadd.f32 0.0, %v1789
        %v1791 = vpop.f32.mrb[0].mxu0
        %v1792 = vadd.f32 0.0, %v1791
        %v1793 = vpop.f32.mrb[0].mxu0
        %v1794 = vpop.f32.mrb[0].mxu0
        %1795 = vdwg.mxu0
        %v1796 = vadd.f32 %v1709, %v1749
        %v1797 = vadd.f32 %v1710, %v1751
        %v1798 = vadd.f32 %v1711, %v1790
        %v1799 = vadd.f32 %v1712, %v1792
        %v1800 = vsub.f32 0.0, %v1796
        %v1801 = vsub.f32 0.0, %v1797
        %v1802 = vsub.f32 0.0, %v1798
        %v1803 = vmul.f32 %v1800, 1.442695
        %v1804 = vpow.pop %v1803
        %v1805 = vmul.f32 %v1801, 1.442695
        %v1806 = vpow.pop %v1805
        %v1807 = vmul.f32 %v1802, 1.442695
        %v1808 = vpow.pop %v1807
        %v1809 = vadd.f32 %v1804, 1.0
        %v1810 = vadd.f32 %v1806, 1.0
        %v1811 = vadd.f32 %v1808, 1.0
        %v1812 = vrcp.pop %v1809
        %v1813 = vrcp.pop %v1810
        %v1814 = vrcp.pop %v1811
        %v1815 = vtanh.pop %v1799
        %v1816 = vmul.f32 %v1813, %v1703
        %v1817 = vmul.f32 %v1812, %v1815
        %v1818 = vadd.f32 %v1816, %v1817
        %v1819 = vtanh.pop %v1818
        %v1820 = vmul.f32 %v1814, %v1819
        %s1821 = scalar_lea.vmem [#allocation3], 56
        %1822 = vst [vmem:[%s1821] sm:$0xff] %v1820
        %v1823 = vld [vmem:[#allocation10] sm:$0xff]
        %v1824 = vld [vmem:[#allocation10 + $0x8] sm:$0xff]
        %v1825 = vld [vmem:[#allocation10 + $0x10] sm:$0xff]
        %v1826 = vld [vmem:[#allocation10 + $0x18] sm:$0xff]
        %v1827 = vld [vmem:[#allocation10 + $0x20] sm:$0xff]
        %v1828 = vld [vmem:[#allocation10 + $0x28] sm:$0xff]
        %v1829 = vld [vmem:[#allocation10 + $0x30] sm:$0xff]
        %v1830 = vld [vmem:[#allocation10 + $0x38] sm:$0xff]
        %v1831 = vld [vmem:[#allocation10 + $0x40] sm:$0xff]
        %v1832 = vld [vmem:[#allocation10 + $0x48] sm:$0xff]
        %v1833 = vld [vmem:[#allocation10 + $0x50] sm:$0xff]
        %v1834 = vld [vmem:[#allocation10 + $0x58] sm:$0xff]
        %v1835 = vld [vmem:[#allocation10 + $0x60] sm:$0xff]
        %v1836 = vld [vmem:[#allocation10 + $0x68] sm:$0xff]
        %v1837 = vld [vmem:[#allocation10 + $0x70] sm:$0xff]
        %v1838 = vld [vmem:[#allocation10 + $0x78] sm:$0xff]
        %v1839 = vld [vmem:[#allocation10 + $0x80] sm:$0xff]
        %v1840 = vld [vmem:[#allocation10 + $0x88] sm:$0xff]
        %v1841 = vld [vmem:[#allocation10 + $0x90] sm:$0xff]
        %v1842 = vld [vmem:[#allocation10 + $0x98] sm:$0xff]
        %v1843 = vld [vmem:[#allocation10 + $0xa0] sm:$0xff]
        %v1844 = vld [vmem:[#allocation10 + $0xa8] sm:$0xff]
        %v1845 = vld [vmem:[#allocation10 + $0xb0] sm:$0xff]
        %v1846 = vld [vmem:[#allocation10 + $0xb8] sm:$0xff]
        %v1847 = vld [vmem:[#allocation10 + $0xc0] sm:$0xff]
        %v1848 = vld [vmem:[#allocation10 + $0xc8] sm:$0xff]
        %v1849 = vld [vmem:[#allocation10 + $0xd0] sm:$0xff]
        %v1850 = vld [vmem:[#allocation10 + $0xd8] sm:$0xff]
        %v1851 = vld [vmem:[#allocation10 + $0xe0] sm:$0xff]
        %v1852 = vld [vmem:[#allocation10 + $0xe8] sm:$0xff]
        %v1853 = vld [vmem:[#allocation10 + $0xf0] sm:$0xff]
        %v1854 = vld [vmem:[#allocation10 + $0xf8] sm:$0xff]
        %v1855 = vld [vmem:[#allocation12] sm:$0xff]
        %v1856 = vld [vmem:[#allocation12 + $0x8] sm:$0xff]
        %v1857 = vld [vmem:[#allocation12 + $0x10] sm:$0xff]
        %v1858 = vld [vmem:[#allocation12 + $0x18] sm:$0xff]
        %v1859 = vld [vmem:[#allocation12 + $0x20] sm:$0xff]
        %v1860 = vld [vmem:[#allocation12 + $0x28] sm:$0xff]
        %v1861 = vld [vmem:[#allocation12 + $0x30] sm:$0xff]
        %v1862 = vld [vmem:[#allocation12 + $0x38] sm:$0xff]
        %v1863 = vld [vmem:[#allocation12 + $0x40] sm:$0xff]
        %v1864 = vld [vmem:[#allocation12 + $0x48] sm:$0xff]
        %v1865 = vld [vmem:[#allocation12 + $0x50] sm:$0xff]
        %v1866 = vld [vmem:[#allocation12 + $0x58] sm:$0xff]
        %v1867 = vld [vmem:[#allocation12 + $0x60] sm:$0xff]
        %v1868 = vld [vmem:[#allocation12 + $0x68] sm:$0xff]
        %v1869 = vld [vmem:[#allocation12 + $0x70] sm:$0xff]
        %v1870 = vld [vmem:[#allocation12 + $0x78] sm:$0xff]
        %v1871 = vld [vmem:[#allocation12 + $0x80] sm:$0xff]
        %v1872 = vld [vmem:[#allocation12 + $0x88] sm:$0xff]
        %v1873 = vld [vmem:[#allocation12 + $0x90] sm:$0xff]
        %v1874 = vld [vmem:[#allocation12 + $0x98] sm:$0xff]
        %v1875 = vld [vmem:[#allocation12 + $0xa0] sm:$0xff]
        %v1876 = vld [vmem:[#allocation12 + $0xa8] sm:$0xff]
        %v1877 = vld [vmem:[#allocation12 + $0xb0] sm:$0xff]
        %v1878 = vld [vmem:[#allocation12 + $0xb8] sm:$0xff]
        %v1879 = vld [vmem:[#allocation12 + $0xc0] sm:$0xff]
        %v1880 = vld [vmem:[#allocation12 + $0xc8] sm:$0xff]
        %v1881 = vld [vmem:[#allocation12 + $0xd0] sm:$0xff]
        %v1882 = vld [vmem:[#allocation12 + $0xd8] sm:$0xff]
        %v1883 = vld [vmem:[#allocation12 + $0xe0] sm:$0xff]
        %v1884 = vld [vmem:[#allocation12 + $0xe8] sm:$0xff]
        %v1885 = vld [vmem:[#allocation12 + $0xf0] sm:$0xff]
        %v1886 = vld [vmem:[#allocation12 + $0xf8] sm:$0xff]
        %v1887 = vld [vmem:[%s6] sm:$0xf]
        %v1888 = vld [vmem:[#allocation3] sm:$0xff]
        %v1889 = vld [vmem:[#allocation3 + $0x8] sm:$0xff]
        %v1890 = vld [vmem:[#allocation3 + $0x10] sm:$0xff]
        %v1891 = vld [vmem:[#allocation3 + $0x18] sm:$0xff]
        %v1892 = vld [vmem:[#allocation3 + $0x20] sm:$0xff]
        %v1893 = vld [vmem:[#allocation3 + $0x28] sm:$0xff]
        %v1894 = vld [vmem:[#allocation3 + $0x30] sm:$0xff]
        %v1895 = vld [vmem:[#allocation3 + $0x38] sm:$0xff]
        %v1896 = vpack.c.bf16 %v1889, %v1888
        %v1897 = vpack.c.bf16 %v1891, %v1890
        %v1898 = vpack.c.bf16 %v1893, %v1892
        %v1899 = vpack.c.bf16 %v1895, %v1894
        %v1901 = vlaneseq
        %v1902 = vshrl.u32 %v1901, 7
        %v1903 = vsub.s32 0, %v1902
        %v1904 = vrot.slane %v1887, %v1903
        %v1905 = vlaneseq
        %v1906 = vshrl.u32 %v1905, 7
        %v1907 = vsub.s32 1, %v1906
        %v1908 = vrot.slane %v1887, %v1907
        %v1909 = vlaneseq
        %v1910 = vshrl.u32 %v1909, 7
        %v1911 = vsub.s32 2, %v1910
        %v1912 = vrot.slane %v1887, %v1911
        %v1913 = vlaneseq
        %v1914 = vshrl.u32 %v1913, 7
        %v1915 = vsub.s32 3, %v1914
        %v1916 = vrot.slane %v1887, %v1915
        %v1953 = vunpack.c.l.b16 %v1823
        %v1954 = vunpack.c.h.b16 %v1823
        %v1955 = vunpack.c.l.b16 %v1824
        %v1956 = vunpack.c.h.b16 %v1824
        %v1957 = vunpack.c.l.b16 %v1825
        %v1958 = vunpack.c.h.b16 %v1825
        %v1959 = vunpack.c.l.b16 %v1826
        %v1960 = vunpack.c.h.b16 %v1826
        %v1961 = vunpack.c.l.b16 %v1827
        %v1962 = vunpack.c.h.b16 %v1827
        %v1963 = vunpack.c.l.b16 %v1828
        %v1964 = vunpack.c.h.b16 %v1828
        %v1965 = vunpack.c.l.b16 %v1829
        %v1966 = vunpack.c.h.b16 %v1829
        %v1967 = vunpack.c.l.b16 %v1830
        %v1968 = vunpack.c.h.b16 %v1830
        %v1969 = vunpack.c.l.b16 %v1831
        %v1970 = vunpack.c.h.b16 %v1831
        %v1971 = vunpack.c.l.b16 %v1832
        %v1972 = vunpack.c.h.b16 %v1832
        %v1973 = vunpack.c.l.b16 %v1833
        %v1974 = vunpack.c.h.b16 %v1833
        %v1975 = vunpack.c.l.b16 %v1834
        %v1976 = vunpack.c.h.b16 %v1834
        %v1977 = vunpack.c.l.b16 %v1835
        %v1978 = vunpack.c.h.b16 %v1835
        %v1979 = vunpack.c.l.b16 %v1836
        %v1980 = vunpack.c.h.b16 %v1836
        %v1981 = vunpack.c.l.b16 %v1837
        %v1982 = vunpack.c.h.b16 %v1837
        %v1983 = vunpack.c.l.b16 %v1838
        %v1984 = vunpack.c.h.b16 %v1838
        %v1985 = vunpack.c.l.b16 %v1839
        %v1986 = vunpack.c.h.b16 %v1839
        %v1987 = vunpack.c.l.b16 %v1840
        %v1988 = vunpack.c.h.b16 %v1840
        %v1989 = vunpack.c.l.b16 %v1841
        %v1990 = vunpack.c.h.b16 %v1841
        %v1991 = vunpack.c.l.b16 %v1842
        %v1992 = vunpack.c.h.b16 %v1842
        %v1993 = vunpack.c.l.b16 %v1843
        %v1994 = vunpack.c.h.b16 %v1843
        %v1995 = vunpack.c.l.b16 %v1844
        %v1996 = vunpack.c.h.b16 %v1844
        %v1997 = vunpack.c.l.b16 %v1845
        %v1998 = vunpack.c.h.b16 %v1845
        %v1999 = vunpack.c.l.b16 %v1846
        %v2000 = vunpack.c.h.b16 %v1846
        %v2001 = vunpack.c.l.b16 %v1847
        %v2002 = vunpack.c.h.b16 %v1847
        %v2003 = vunpack.c.l.b16 %v1848
        %v2004 = vunpack.c.h.b16 %v1848
        %v2005 = vunpack.c.l.b16 %v1849
        %v2006 = vunpack.c.h.b16 %v1849
        %v2007 = vunpack.c.l.b16 %v1850
        %v2008 = vunpack.c.h.b16 %v1850
        %v2009 = vunpack.c.l.b16 %v1851
        %v2010 = vunpack.c.h.b16 %v1851
        %v2011 = vunpack.c.l.b16 %v1852
        %v2012 = vunpack.c.h.b16 %v1852
        %v2013 = vunpack.c.l.b16 %v1853
        %v2014 = vunpack.c.h.b16 %v1853
        %v2015 = vunpack.c.l.b16 %v1854
        %v2016 = vunpack.c.h.b16 %v1854
        %v2017 = vpack.c.b16 %v1957, %v1953
        %v2018 = vpack.c.b16 %v1958, %v1954
        %v2019 = vpack.c.b16 %v1959, %v1955
        %v2020 = vpack.c.b16 %v1960, %v1956
        %v2021 = vpack.c.b16 %v1965, %v1961
        %v2022 = vpack.c.b16 %v1966, %v1962
        %v2023 = vpack.c.b16 %v1967, %v1963
        %v2024 = vpack.c.b16 %v1968, %v1964
        %v2025 = vpack.c.b16 %v1973, %v1969
        %v2026 = vpack.c.b16 %v1974, %v1970
        %v2027 = vpack.c.b16 %v1975, %v1971
        %v2028 = vpack.c.b16 %v1976, %v1972
        %v2029 = vpack.c.b16 %v1981, %v1977
        %v2030 = vpack.c.b16 %v1982, %v1978
        %v2031 = vpack.c.b16 %v1983, %v1979
        %v2032 = vpack.c.b16 %v1984, %v1980
        %v2033 = vpack.c.b16 %v1989, %v1985
        %v2034 = vpack.c.b16 %v1990, %v1986
        %v2035 = vpack.c.b16 %v1991, %v1987
        %v2036 = vpack.c.b16 %v1992, %v1988
        %v2037 = vpack.c.b16 %v1997, %v1993
        %v2038 = vpack.c.b16 %v1998, %v1994
        %v2039 = vpack.c.b16 %v1999, %v1995
        %v2040 = vpack.c.b16 %v2000, %v1996
        %v2041 = vpack.c.b16 %v2005, %v2001
        %v2042 = vpack.c.b16 %v2006, %v2002
        %v2043 = vpack.c.b16 %v2007, %v2003
        %v2044 = vpack.c.b16 %v2008, %v2004
        %v2045 = vpack.c.b16 %v2013, %v2009
        %v2046 = vpack.c.b16 %v2014, %v2010
        %v2047 = vpack.c.b16 %v2015, %v2011
        %v2048 = vpack.c.b16 %v2016, %v2012
        %2081 = vmatprep.subr.bf16.mxu0 %v2018
        %2082 = vmatpush1.bf16.msra.mxu0 %v2017
        %2083 = vmatprep.subr.bf16.mxu0 %v2022
        %2084 = vmatpush1.bf16.msra.mxu0 %v2021
        %2085 = vmatprep.subr.bf16.mxu0 %v2026
        %2086 = vmatpush1.bf16.msra.mxu0 %v2025
        %2087 = vmatprep.subr.bf16.mxu0 %v2030
        %2088 = vmatpush1.bf16.msra.mxu0 %v2029
        %2089 = vmatprep.subr.bf16.mxu0 %v2034
        %2090 = vmatpush1.bf16.msra.mxu0 %v2033
        %2091 = vmatprep.subr.bf16.mxu0 %v2038
        %2092 = vmatpush1.bf16.msra.mxu0 %v2037
        %2093 = vmatprep.subr.bf16.mxu0 %v2042
        %2094 = vmatpush1.bf16.msra.mxu0 %v2041
        %2095 = vmatprep.subr.bf16.mxu0 %v2046
        %2096 = vmatpush1.bf16.msra.mxu0 %v2045
        %2097 = vmatprep.subr.bf16.mxu0 0
        %2098 = vmatpush1.bf16.msra.mxu0 0
        %2099 = vmatprep.subr.bf16.mxu0 0
        %2100 = vmatpush1.bf16.msra.mxu0 0
        %2101 = vmatprep.subr.bf16.mxu0 0
        %2102 = vmatpush1.bf16.msra.mxu0 0
        %2103 = vmatprep.subr.bf16.mxu0 0
        %2104 = vmatpush1.bf16.msra.mxu0 0
        %2105 = vmatprep.subr.bf16.mxu0 0
        %2106 = vmatpush1.bf16.msra.mxu0 0
        %2107 = vmatprep.subr.bf16.mxu0 0
        %2108 = vmatpush1.bf16.msra.mxu0 0
        %2109 = vmatprep.subr.bf16.mxu0 0
        %2110 = vmatpush1.bf16.msra.mxu0 0
        %2111 = vmatprep.subr.bf16.mxu0 0
        %2112 = vmatpush1.bf16.msra.mxu0 0
        %2113 = vmatprep.mubr.bf16.mxu0 0
        %2114 = vmatmul.mubr.bf16.gmra.mrb[0].mxu0 %v1896
        %v2115 = vpop.f32.mrb[0].mxu0
        %v2116 = vadd.f32 %v1904, %v2115
        %v2117 = vpop.f32.mrb[0].mxu0
        %v2118 = vadd.f32 %v1908, %v2117
        %v2119 = vpop.f32.mrb[0].mxu0
        %v2120 = vadd.f32 %v1904, %v2119
        %v2121 = vpop.f32.mrb[0].mxu0
        %v2122 = vadd.f32 %v1908, %v2121
        %2123 = vmatprep.mubr.bf16.mxu0 0
        %2124 = vmatmul.mubr.bf16.gmra.mrb[0].mxu0 %v1897
        %v2125 = vpop.f32.mrb[0].mxu0
        %v2126 = vadd.f32 %v1904, %v2125
        %v2127 = vpop.f32.mrb[0].mxu0
        %v2128 = vadd.f32 %v1908, %v2127
        %v2129 = vpop.f32.mrb[0].mxu0
        %v2130 = vadd.f32 %v1904, %v2129
        %v2131 = vpop.f32.mrb[0].mxu0
        %v2132 = vadd.f32 %v1908, %v2131
        %2133 = vmatprep.mubr.bf16.mxu0 0
        %2134 = vmatmul.mubr.bf16.gmra.mrb[0].mxu0 %v1898
        %v2135 = vpop.f32.mrb[0].mxu0
        %v2136 = vadd.f32 %v1904, %v2135
        %v2137 = vpop.f32.mrb[0].mxu0
        %v2138 = vadd.f32 %v1908, %v2137
        %v2139 = vpop.f32.mrb[0].mxu0
        %v2140 = vadd.f32 %v1904, %v2139
        %v2141 = vpop.f32.mrb[0].mxu0
        %v2142 = vadd.f32 %v1908, %v2141
        %2143 = vmatprep.mubr.bf16.mxu0 0
        %2144 = vmatmul.mubr.bf16.gmra.mrb[0].mxu0 %v1899
        %v2145 = vpop.f32.mrb[0].mxu0
        %v2146 = vadd.f32 %v1904, %v2145
        %v2147 = vpop.f32.mrb[0].mxu0
        %v2148 = vadd.f32 %v1908, %v2147
        %v2149 = vpop.f32.mrb[0].mxu0
        %v2150 = vadd.f32 %v1904, %v2149
        %v2151 = vpop.f32.mrb[0].mxu0
        %v2152 = vadd.f32 %v1908, %v2151
        %2153 = vdwg.mxu0
        %2154 = vmatprep.subr.bf16.mxu0 %v2020
        %2155 = vmatpush1.bf16.msra.mxu0 %v2019
        %2156 = vmatprep.subr.bf16.mxu0 %v2024
        %2157 = vmatpush1.bf16.msra.mxu0 %v2023
        %2158 = vmatprep.subr.bf16.mxu0 %v2028
        %2159 = vmatpush1.bf16.msra.mxu0 %v2027
        %2160 = vmatprep.subr.bf16.mxu0 %v2032
        %2161 = vmatpush1.bf16.msra.mxu0 %v2031
        %2162 = vmatprep.subr.bf16.mxu0 %v2036
        %2163 = vmatpush1.bf16.msra.mxu0 %v2035
        %2164 = vmatprep.subr.bf16.mxu0 %v2040
        %2165 = vmatpush1.bf16.msra.mxu0 %v2039
        %2166 = vmatprep.subr.bf16.mxu0 %v2044
        %2167 = vmatpush1.bf16.msra.mxu0 %v2043
        %2168 = vmatprep.subr.bf16.mxu0 %v2048
        %2169 = vmatpush1.bf16.msra.mxu0 %v2047
        %2170 = vmatprep.subr.bf16.mxu0 0
        %2171 = vmatpush1.bf16.msra.mxu0 0
        %2172 = vmatprep.subr.bf16.mxu0 0
        %2173 = vmatpush1.bf16.msra.mxu0 0
        %2174 = vmatprep.subr.bf16.mxu0 0
        %2175 = vmatpush1.bf16.msra.mxu0 0
        %2176 = vmatprep.subr.bf16.mxu0 0
        %2177 = vmatpush1.bf16.msra.mxu0 0
        %2178 = vmatprep.subr.bf16.mxu0 0
        %2179 = vmatpush1.bf16.msra.mxu0 0
        %2180 = vmatprep.subr.bf16.mxu0 0
        %2181 = vmatpush1.bf16.msra.mxu0 0
        %2182 = vmatprep.subr.bf16.mxu0 0
        %2183 = vmatpush1.bf16.msra.mxu0 0
        %2184 = vmatprep.subr.bf16.mxu0 0
        %2185 = vmatpush1.bf16.msra.mxu0 0
        %2186 = vmatprep.mubr.bf16.mxu0 0
        %2187 = vmatmul.mubr.bf16.gmra.mrb[0].mxu0 %v1896
        %v2188 = vpop.f32.mrb[0].mxu0
        %v2189 = vadd.f32 %v1912, %v2188
        %v2190 = vpop.f32.mrb[0].mxu0
        %v2191 = vadd.f32 %v1916, %v2190
        %v2192 = vpop.f32.mrb[0].mxu0
        %v2193 = vadd.f32 %v1912, %v2192
        %v2194 = vpop.f32.mrb[0].mxu0
        %v2195 = vadd.f32 %v1916, %v2194
        %2196 = vmatprep.mubr.bf16.mxu0 0
        %2197 = vmatmul.mubr.bf16.gmra.mrb[0].mxu0 %v1897
        %v2198 = vpop.f32.mrb[0].mxu0
        %v2199 = vadd.f32 %v1912, %v2198
        %v2200 = vpop.f32.mrb[0].mxu0
        %v2201 = vadd.f32 %v1916, %v2200
        %v2202 = vpop.f32.mrb[0].mxu0
        %v2203 = vadd.f32 %v1912, %v2202
        %v2204 = vpop.f32.mrb[0].mxu0
        %v2205 = vadd.f32 %v1916, %v2204
        %2206 = vmatprep.mubr.bf16.mxu0 0
        %2207 = vmatmul.mubr.bf16.gmra.mrb[0].mxu0 %v1898
        %v2208 = vpop.f32.mrb[0].mxu0
        %v2209 = vadd.f32 %v1912, %v2208
        %v2210 = vpop.f32.mrb[0].mxu0
        %v2211 = vadd.f32 %v1916, %v2210
        %v2212 = vpop.f32.mrb[0].mxu0
        %v2213 = vadd.f32 %v1912, %v2212
        %v2214 = vpop.f32.mrb[0].mxu0
        %v2215 = vadd.f32 %v1916, %v2214
        %2216 = vmatprep.mubr.bf16.mxu0 0
        %2217 = vmatmul.mubr.bf16.gmra.mrb[0].mxu0 %v1899
        %v2218 = vpop.f32.mrb[0].mxu0
        %v2219 = vadd.f32 %v1912, %v2218
        %v2220 = vpop.f32.mrb[0].mxu0
        %v2221 = vadd.f32 %v1916, %v2220
        %v2222 = vpop.f32.mrb[0].mxu0
        %v2223 = vadd.f32 %v1912, %v2222
        %v2224 = vpop.f32.mrb[0].mxu0
        %v2225 = vadd.f32 %v1916, %v2224
        %2226 = vdwg.mxu0
        %2227 = vst [vmem:[#allocation2] sm:$0xff] %v2116
        %2228 = vst [vmem:[#allocation2 + $0x8] sm:$0xff] %v2118
        %2229 = vst [vmem:[#allocation2 + $0x10] sm:$0xff] %v2189
        %2230 = vst [vmem:[#allocation2 + $0x18] sm:$0xff] %v2191
        %2231 = vst [vmem:[#allocation2 + $0x20] sm:$0xff] %v2120
        %2232 = vst [vmem:[#allocation2 + $0x28] sm:$0xff] %v2122
        %2233 = vst [vmem:[#allocation2 + $0x30] sm:$0xff] %v2193
        %2234 = vst [vmem:[#allocation2 + $0x38] sm:$0xff] %v2195
        %2235 = vst [vmem:[#allocation2 + $0x40] sm:$0xff] %v2126
        %2236 = vst [vmem:[#allocation2 + $0x48] sm:$0xff] %v2128
        %2237 = vst [vmem:[#allocation2 + $0x50] sm:$0xff] %v2199
        %2238 = vst [vmem:[#allocation2 + $0x58] sm:$0xff] %v2201
        %2239 = vst [vmem:[#allocation2 + $0x60] sm:$0xff] %v2130
        %2240 = vst [vmem:[#allocation2 + $0x68] sm:$0xff] %v2132
        %2241 = vst [vmem:[#allocation2 + $0x70] sm:$0xff] %v2203
        %2242 = vst [vmem:[#allocation2 + $0x78] sm:$0xff] %v2205
        %2243 = vst [vmem:[#allocation2 + $0x80] sm:$0xff] %v2136
        %2244 = vst [vmem:[#allocation2 + $0x88] sm:$0xff] %v2138
        %2245 = vst [vmem:[#allocation2 + $0x90] sm:$0xff] %v2209
        %2246 = vst [vmem:[#allocation2 + $0x98] sm:$0xff] %v2211
        %2247 = vst [vmem:[#allocation2 + $0xa0] sm:$0xff] %v2140
        %2248 = vst [vmem:[#allocation2 + $0xa8] sm:$0xff] %v2142
        %2249 = vst [vmem:[#allocation2 + $0xb0] sm:$0xff] %v2213
        %2250 = vst [vmem:[#allocation2 + $0xb8] sm:$0xff] %v2215
        %2251 = vst [vmem:[#allocation2 + $0xc0] sm:$0xff] %v2146
        %2252 = vst [vmem:[#allocation2 + $0xc8] sm:$0xff] %v2148
        %2253 = vst [vmem:[#allocation2 + $0xd0] sm:$0xff] %v2219
        %2254 = vst [vmem:[#allocation2 + $0xd8] sm:$0xff] %v2221
        %2255 = vst [vmem:[#allocation2 + $0xe0] sm:$0xff] %v2150
        %2256 = vst [vmem:[#allocation2 + $0xe8] sm:$0xff] %v2152
        %2257 = vst [vmem:[#allocation2 + $0xf0] sm:$0xff] %v2223
        %2258 = vst [vmem:[#allocation2 + $0xf8] sm:$0xff] %v2225
        %v2259 = vld [vmem:[#allocation2] sm:$0xff]
        %v2260 = vld [vmem:[#allocation2 + $0x8] sm:$0xff]
        %v2261 = vld [vmem:[#allocation2 + $0x10] sm:$0xff]
        %v2262 = vld [vmem:[#allocation2 + $0x18] sm:$0xff]
        %v2295 = vunpack.c.l.b16 %v1855
        %v2296 = vunpack.c.h.b16 %v1855
        %v2297 = vunpack.c.l.b16 %v1856
        %v2298 = vunpack.c.h.b16 %v1856
        %v2299 = vunpack.c.l.b16 %v1857
        %v2300 = vunpack.c.h.b16 %v1857
        %v2301 = vunpack.c.l.b16 %v1858
        %v2302 = vunpack.c.h.b16 %v1858
        %v2303 = vunpack.c.l.b16 %v1859
        %v2304 = vunpack.c.h.b16 %v1859
        %v2305 = vunpack.c.l.b16 %v1860
        %v2306 = vunpack.c.h.b16 %v1860
        %v2307 = vunpack.c.l.b16 %v1861
        %v2308 = vunpack.c.h.b16 %v1861
        %v2309 = vunpack.c.l.b16 %v1862
        %v2310 = vunpack.c.h.b16 %v1862
        %v2311 = vunpack.c.l.b16 %v1863
        %v2312 = vunpack.c.h.b16 %v1863
        %v2313 = vunpack.c.l.b16 %v1864
        %v2314 = vunpack.c.h.b16 %v1864
        %v2315 = vunpack.c.l.b16 %v1865
        %v2316 = vunpack.c.h.b16 %v1865
        %v2317 = vunpack.c.l.b16 %v1866
        %v2318 = vunpack.c.h.b16 %v1866
        %v2319 = vunpack.c.l.b16 %v1867
        %v2320 = vunpack.c.h.b16 %v1867
        %v2321 = vunpack.c.l.b16 %v1868
        %v2322 = vunpack.c.h.b16 %v1868
        %v2323 = vunpack.c.l.b16 %v1869
        %v2324 = vunpack.c.h.b16 %v1869
        %v2325 = vunpack.c.l.b16 %v1870
        %v2326 = vunpack.c.h.b16 %v1870
        %v2327 = vunpack.c.l.b16 %v1871
        %v2328 = vunpack.c.h.b16 %v1871
        %v2329 = vunpack.c.l.b16 %v1872
        %v2330 = vunpack.c.h.b16 %v1872
        %v2331 = vunpack.c.l.b16 %v1873
        %v2332 = vunpack.c.h.b16 %v1873
        %v2333 = vunpack.c.l.b16 %v1874
        %v2334 = vunpack.c.h.b16 %v1874
        %v2335 = vunpack.c.l.b16 %v1875
        %v2336 = vunpack.c.h.b16 %v1875
        %v2337 = vunpack.c.l.b16 %v1876
        %v2338 = vunpack.c.h.b16 %v1876
        %v2339 = vunpack.c.l.b16 %v1877
        %v2340 = vunpack.c.h.b16 %v1877
        %v2341 = vunpack.c.l.b16 %v1878
        %v2342 = vunpack.c.h.b16 %v1878
        %v2343 = vunpack.c.l.b16 %v1879
        %v2344 = vunpack.c.h.b16 %v1879
        %v2345 = vunpack.c.l.b16 %v1880
        %v2346 = vunpack.c.h.b16 %v1880
        %v2347 = vunpack.c.l.b16 %v1881
        %v2348 = vunpack.c.h.b16 %v1881
        %v2349 = vunpack.c.l.b16 %v1882
        %v2350 = vunpack.c.h.b16 %v1882
        %v2351 = vunpack.c.l.b16 %v1883
        %v2352 = vunpack.c.h.b16 %v1883
        %v2353 = vunpack.c.l.b16 %v1884
        %v2354 = vunpack.c.h.b16 %v1884
        %v2355 = vunpack.c.l.b16 %v1885
        %v2356 = vunpack.c.h.b16 %v1885
        %v2357 = vunpack.c.l.b16 %v1886
        %v2358 = vunpack.c.h.b16 %v1886
        %v2359 = vpack.c.b16 %v2299, %v2295
        %v2360 = vpack.c.b16 %v2300, %v2296
        %v2361 = vpack.c.b16 %v2301, %v2297
        %v2362 = vpack.c.b16 %v2302, %v2298
        %v2363 = vpack.c.b16 %v2307, %v2303
        %v2364 = vpack.c.b16 %v2308, %v2304
        %v2365 = vpack.c.b16 %v2309, %v2305
        %v2366 = vpack.c.b16 %v2310, %v2306
        %v2367 = vpack.c.b16 %v2315, %v2311
        %v2368 = vpack.c.b16 %v2316, %v2312
        %v2369 = vpack.c.b16 %v2317, %v2313
        %v2370 = vpack.c.b16 %v2318, %v2314
        %v2371 = vpack.c.b16 %v2323, %v2319
        %v2372 = vpack.c.b16 %v2324, %v2320
        %v2373 = vpack.c.b16 %v2325, %v2321
        %v2374 = vpack.c.b16 %v2326, %v2322
        %v2375 = vpack.c.b16 %v2331, %v2327
        %v2376 = vpack.c.b16 %v2332, %v2328
        %v2377 = vpack.c.b16 %v2333, %v2329
        %v2378 = vpack.c.b16 %v2334, %v2330
        %v2379 = vpack.c.b16 %v2339, %v2335
        %v2380 = vpack.c.b16 %v2340, %v2336
        %v2381 = vpack.c.b16 %v2341, %v2337
        %v2382 = vpack.c.b16 %v2342, %v2338
        %v2383 = vpack.c.b16 %v2347, %v2343
        %v2384 = vpack.c.b16 %v2348, %v2344
        %v2385 = vpack.c.b16 %v2349, %v2345
        %v2386 = vpack.c.b16 %v2350, %v2346
        %v2387 = vpack.c.b16 %v2355, %v2351
        %v2388 = vpack.c.b16 %v2356, %v2352
        %v2389 = vpack.c.b16 %v2357, %v2353
        %v2390 = vpack.c.b16 %v2358, %v2354
        %2423 = vmatprep.subr.bf16.mxu0 %v2360
        %2424 = vmatpush1.bf16.msra.mxu0 %v2359
        %2425 = vmatprep.subr.bf16.mxu0 %v2364
        %2426 = vmatpush1.bf16.msra.mxu0 %v2363
        %2427 = vmatprep.subr.bf16.mxu0 %v2368
        %2428 = vmatpush1.bf16.msra.mxu0 %v2367
        %2429 = vmatprep.subr.bf16.mxu0 %v2372
        %2430 = vmatpush1.bf16.msra.mxu0 %v2371
        %2431 = vmatprep.subr.bf16.mxu0 %v2376
        %2432 = vmatpush1.bf16.msra.mxu0 %v2375
        %2433 = vmatprep.subr.bf16.mxu0 %v2380
        %2434 = vmatpush1.bf16.msra.mxu0 %v2379
        %2435 = vmatprep.subr.bf16.mxu0 %v2384
        %2436 = vmatpush1.bf16.msra.mxu0 %v2383
        %2437 = vmatprep.subr.bf16.mxu0 %v2388
        %2438 = vmatpush1.bf16.msra.mxu0 %v2387
        %2439 = vmatprep.subr.bf16.mxu0 0
        %2440 = vmatpush1.bf16.msra.mxu0 0
        %2441 = vmatprep.subr.bf16.mxu0 0
        %2442 = vmatpush1.bf16.msra.mxu0 0
        %2443 = vmatprep.subr.bf16.mxu0 0
        %2444 = vmatpush1.bf16.msra.mxu0 0
        %2445 = vmatprep.subr.bf16.mxu0 0
        %2446 = vmatpush1.bf16.msra.mxu0 0
        %2447 = vmatprep.subr.bf16.mxu0 0
        %2448 = vmatpush1.bf16.msra.mxu0 0
        %2449 = vmatprep.subr.bf16.mxu0 0
        %2450 = vmatpush1.bf16.msra.mxu0 0
        %2451 = vmatprep.subr.bf16.mxu0 0
        %2452 = vmatpush1.bf16.msra.mxu0 0
        %2453 = vmatprep.subr.bf16.mxu0 0
        %2454 = vmatpush1.bf16.msra.mxu0 0
        %2455 = vmatprep.mubr.bf16.mxu0 0
        %2456 = vmatmul.mubr.bf16.gmra.mrb[0].mxu0 0
        %v2457 = vpop.f32.mrb[0].mxu0
        %v2458 = vadd.f32 0.0, %v2457
        %v2459 = vpop.f32.mrb[0].mxu0
        %v2460 = vadd.f32 0.0, %v2459
        %v2461 = vpop.f32.mrb[0].mxu0
        %v2462 = vpop.f32.mrb[0].mxu0
        %2463 = vdwg.mxu0
        %2464 = vmatprep.subr.bf16.mxu0 %v2362
        %2465 = vmatpush1.bf16.msra.mxu0 %v2361
        %2466 = vmatprep.subr.bf16.mxu0 %v2366
        %2467 = vmatpush1.bf16.msra.mxu0 %v2365
        %2468 = vmatprep.subr.bf16.mxu0 %v2370
        %2469 = vmatpush1.bf16.msra.mxu0 %v2369
        %2470 = vmatprep.subr.bf16.mxu0 %v2374
        %2471 = vmatpush1.bf16.msra.mxu0 %v2373
        %2472 = vmatprep.subr.bf16.mxu0 %v2378
        %2473 = vmatpush1.bf16.msra.mxu0 %v2377
        %2474 = vmatprep.subr.bf16.mxu0 %v2382
        %2475 = vmatpush1.bf16.msra.mxu0 %v2381
        %2476 = vmatprep.subr.bf16.mxu0 %v2386
        %2477 = vmatpush1.bf16.msra.mxu0 %v2385
        %2478 = vmatprep.subr.bf16.mxu0 %v2390
        %2479 = vmatpush1.bf16.msra.mxu0 %v2389
        %2480 = vmatprep.subr.bf16.mxu0 0
        %2481 = vmatpush1.bf16.msra.mxu0 0
        %2482 = vmatprep.subr.bf16.mxu0 0
        %2483 = vmatpush1.bf16.msra.mxu0 0
        %2484 = vmatprep.subr.bf16.mxu0 0
        %2485 = vmatpush1.bf16.msra.mxu0 0
        %2486 = vmatprep.subr.bf16.mxu0 0
        %2487 = vmatpush1.bf16.msra.mxu0 0
        %2488 = vmatprep.subr.bf16.mxu0 0
        %2489 = vmatpush1.bf16.msra.mxu0 0
        %2490 = vmatprep.subr.bf16.mxu0 0
        %2491 = vmatpush1.bf16.msra.mxu0 0
        %2492 = vmatprep.subr.bf16.mxu0 0
        %2493 = vmatpush1.bf16.msra.mxu0 0
        %2494 = vmatprep.subr.bf16.mxu0 0
        %2495 = vmatpush1.bf16.msra.mxu0 0
        %2496 = vmatprep.mubr.bf16.mxu0 0
        %2497 = vmatmul.mubr.bf16.gmra.mrb[0].mxu0 0
        %v2498 = vpop.f32.mrb[0].mxu0
        %v2499 = vadd.f32 0.0, %v2498
        %v2500 = vpop.f32.mrb[0].mxu0
        %v2501 = vadd.f32 0.0, %v2500
        %v2502 = vpop.f32.mrb[0].mxu0
        %v2503 = vpop.f32.mrb[0].mxu0
        %2504 = vdwg.mxu0
        %v2505 = vadd.f32 %v2259, %v2458
        %v2506 = vadd.f32 %v2260, %v2460
        %v2507 = vadd.f32 %v2261, %v2499
        %v2508 = vadd.f32 %v2262, %v2501
        %v2509 = vsub.f32 0.0, %v2505
        %v2510 = vsub.f32 0.0, %v2506
        %v2511 = vsub.f32 0.0, %v2507
        %v2512 = vmul.f32 %v2509, 1.442695
        %v2513 = vpow.pop %v2512
        %v2514 = vmul.f32 %v2510, 1.442695
        %v2515 = vpow.pop %v2514
        %v2516 = vmul.f32 %v2511, 1.442695
        %v2517 = vpow.pop %v2516
        %v2518 = vadd.f32 %v2513, 1.0
        %v2519 = vadd.f32 %v2515, 1.0
        %v2520 = vadd.f32 %v2517, 1.0
        %v2521 = vrcp.pop %v2518
        %v2522 = vrcp.pop %v2519
        %v2523 = vrcp.pop %v2520
        %v2524 = vtanh.pop %v2508
        %v2525 = vmul.f32 %v2522, 0.0
        %v2526 = vmul.f32 %v2521, %v2524
        %v2527 = vadd.f32 %v2525, %v2526
        %v2528 = vtanh.pop %v2527
        %v2529 = vmul.f32 %v2523, %v2528
        %2530 = vst [vmem:[#allocation3] sm:$0xff] %v2529
        %v2531 = vld [vmem:[%s1018] sm:$0xff]
        %v2532 = vld [vmem:[%s1018 + $0x8] sm:$0xff]
        %v2533 = vld [vmem:[%s1018 + $0x10] sm:$0xff]
        %v2534 = vld [vmem:[%s1018 + $0x18] sm:$0xff]
        %v2535 = vpack.c.bf16 %v2529, %v2529
        %2536 = vmatprep.subr.bf16.mxu0 %v2360
        %2537 = vmatpush1.bf16.msra.mxu0 %v2359
        %2538 = vmatprep.subr.bf16.mxu0 %v2364
        %2539 = vmatpush1.bf16.msra.mxu0 %v2363
        %2540 = vmatprep.subr.bf16.mxu0 %v2368
        %2541 = vmatpush1.bf16.msra.mxu0 %v2367
        %2542 = vmatprep.subr.bf16.mxu0 %v2372
        %2543 = vmatpush1.bf16.msra.mxu0 %v2371
        %2544 = vmatprep.subr.bf16.mxu0 %v2376
        %2545 = vmatpush1.bf16.msra.mxu0 %v2375
        %2546 = vmatprep.subr.bf16.mxu0 %v2380
        %2547 = vmatpush1.bf16.msra.mxu0 %v2379
        %2548 = vmatprep.subr.bf16.mxu0 %v2384
        %2549 = vmatpush1.bf16.msra.mxu0 %v2383
        %2550 = vmatprep.subr.bf16.mxu0 %v2388
        %2551 = vmatpush1.bf16.msra.mxu0 %v2387
        %2552 = vmatprep.subr.bf16.mxu0 0
        %2553 = vmatpush1.bf16.msra.mxu0 0
        %2554 = vmatprep.subr.bf16.mxu0 0
        %2555 = vmatpush1.bf16.msra.mxu0 0
        %2556 = vmatprep.subr.bf16.mxu0 0
        %2557 = vmatpush1.bf16.msra.mxu0 0
        %2558 = vmatprep.subr.bf16.mxu0 0
        %2559 = vmatpush1.bf16.msra.mxu0 0
        %2560 = vmatprep.subr.bf16.mxu0 0
        %2561 = vmatpush1.bf16.msra.mxu0 0
        %2562 = vmatprep.subr.bf16.mxu0 0
        %2563 = vmatpush1.bf16.msra.mxu0 0
        %2564 = vmatprep.subr.bf16.mxu0 0
        %2565 = vmatpush1.bf16.msra.mxu0 0
        %2566 = vmatprep.subr.bf16.mxu0 0
        %2567 = vmatpush1.bf16.msra.mxu0 0
        %2568 = vmatprep.mubr.bf16.mxu0 0
        %2569 = vmatmul.mubr.bf16.gmra.mrb[0].mxu0 %v2535
        %v2570 = vpop.f32.mrb[0].mxu0
        %v2571 = vadd.f32 0.0, %v2570
        %v2572 = vpop.f32.mrb[0].mxu0
        %v2573 = vadd.f32 0.0, %v2572
        %v2574 = vpop.f32.mrb[0].mxu0
        %v2575 = vpop.f32.mrb[0].mxu0
        %2576 = vdwg.mxu0
        %2577 = vmatprep.subr.bf16.mxu0 %v2362
        %2578 = vmatpush1.bf16.msra.mxu0 %v2361
        %2579 = vmatprep.subr.bf16.mxu0 %v2366
        %2580 = vmatpush1.bf16.msra.mxu0 %v2365
        %2581 = vmatprep.subr.bf16.mxu0 %v2370
        %2582 = vmatpush1.bf16.msra.mxu0 %v2369
        %2583 = vmatprep.subr.bf16.mxu0 %v2374
        %2584 = vmatpush1.bf16.msra.mxu0 %v2373
        %2585 = vmatprep.subr.bf16.mxu0 %v2378
        %2586 = vmatpush1.bf16.msra.mxu0 %v2377
        %2587 = vmatprep.subr.bf16.mxu0 %v2382
        %2588 = vmatpush1.bf16.msra.mxu0 %v2381
        %2589 = vmatprep.subr.bf16.mxu0 %v2386
        %2590 = vmatpush1.bf16.msra.mxu0 %v2385
        %2591 = vmatprep.subr.bf16.mxu0 %v2390
        %2592 = vmatpush1.bf16.msra.mxu0 %v2389
        %2593 = vmatprep.subr.bf16.mxu0 0
        %2594 = vmatpush1.bf16.msra.mxu0 0
        %2595 = vmatprep.subr.bf16.mxu0 0
        %2596 = vmatpush1.bf16.msra.mxu0 0
        %2597 = vmatprep.subr.bf16.mxu0 0
        %2598 = vmatpush1.bf16.msra.mxu0 0
        %2599 = vmatprep.subr.bf16.mxu0 0
        %2600 = vmatpush1.bf16.msra.mxu0 0
        %2601 = vmatprep.subr.bf16.mxu0 0
        %2602 = vmatpush1.bf16.msra.mxu0 0
        %2603 = vmatprep.subr.bf16.mxu0 0
        %2604 = vmatpush1.bf16.msra.mxu0 0
        %2605 = vmatprep.subr.bf16.mxu0 0
        %2606 = vmatpush1.bf16.msra.mxu0 0
        %2607 = vmatprep.subr.bf16.mxu0 0
        %2608 = vmatpush1.bf16.msra.mxu0 0
        %2609 = vmatprep.mubr.bf16.mxu0 0
        %2610 = vmatmul.mubr.bf16.gmra.mrb[0].mxu0 %v2535
        %v2611 = vpop.f32.mrb[0].mxu0
        %v2612 = vadd.f32 0.0, %v2611
        %v2613 = vpop.f32.mrb[0].mxu0
        %v2614 = vadd.f32 0.0, %v2613
        %v2615 = vpop.f32.mrb[0].mxu0
        %v2616 = vpop.f32.mrb[0].mxu0
        %2617 = vdwg.mxu0
        %v2618 = vadd.f32 %v2531, %v2571
        %v2619 = vadd.f32 %v2532, %v2573
        %v2620 = vadd.f32 %v2533, %v2612
        %v2621 = vadd.f32 %v2534, %v2614
        %v2622 = vsub.f32 0.0, %v2618
        %v2623 = vsub.f32 0.0, %v2619
        %v2624 = vsub.f32 0.0, %v2620
        %v2625 = vmul.f32 %v2622, 1.442695
        %v2626 = vpow.pop %v2625
        %v2627 = vmul.f32 %v2623, 1.442695
        %v2628 = vpow.pop %v2627
        %v2629 = vmul.f32 %v2624, 1.442695
        %v2630 = vpow.pop %v2629
        %v2631 = vadd.f32 %v2626, 1.0
        %v2632 = vadd.f32 %v2628, 1.0
        %v2633 = vadd.f32 %v2630, 1.0
        %v2634 = vrcp.pop %v2631
        %v2635 = vrcp.pop %v2632
        %v2636 = vrcp.pop %v2633
        %v2637 = vtanh.pop %v2621
        %v2638 = vmul.f32 %v2635, %v2527
        %v2639 = vmul.f32 %v2634, %v2637
        %v2640 = vadd.f32 %v2638, %v2639
        %v2641 = vtanh.pop %v2640
        %v2642 = vmul.f32 %v2636, %v2641
        %2643 = vst [vmem:[%s1131] sm:$0xff] %v2642
        %v2644 = vld [vmem:[%s1133] sm:$0xff]
        %v2645 = vld [vmem:[%s1133 + $0x8] sm:$0xff]
        %v2646 = vld [vmem:[%s1133 + $0x10] sm:$0xff]
        %v2647 = vld [vmem:[%s1133 + $0x18] sm:$0xff]
        %v2648 = vpack.c.bf16 %v2642, %v2642
        %2649 = vmatprep.subr.bf16.mxu0 %v2360
        %2650 = vmatpush1.bf16.msra.mxu0 %v2359
        %2651 = vmatprep.subr.bf16.mxu0 %v2364
        %2652 = vmatpush1.bf16.msra.mxu0 %v2363
        %2653 = vmatprep.subr.bf16.mxu0 %v2368
        %2654 = vmatpush1.bf16.msra.mxu0 %v2367
        %2655 = vmatprep.subr.bf16.mxu0 %v2372
        %2656 = vmatpush1.bf16.msra.mxu0 %v2371
        %2657 = vmatprep.subr.bf16.mxu0 %v2376
        %2658 = vmatpush1.bf16.msra.mxu0 %v2375
        %2659 = vmatprep.subr.bf16.mxu0 %v2380
        %2660 = vmatpush1.bf16.msra.mxu0 %v2379
        %2661 = vmatprep.subr.bf16.mxu0 %v2384
        %2662 = vmatpush1.bf16.msra.mxu0 %v2383
        %2663 = vmatprep.subr.bf16.mxu0 %v2388
        %2664 = vmatpush1.bf16.msra.mxu0 %v2387
        %2665 = vmatprep.subr.bf16.mxu0 0
        %2666 = vmatpush1.bf16.msra.mxu0 0
        %2667 = vmatprep.subr.bf16.mxu0 0
        %2668 = vmatpush1.bf16.msra.mxu0 0
        %2669 = vmatprep.subr.bf16.mxu0 0
        %2670 = vmatpush1.bf16.msra.mxu0 0
        %2671 = vmatprep.subr.bf16.mxu0 0
        %2672 = vmatpush1.bf16.msra.mxu0 0
        %2673 = vmatprep.subr.bf16.mxu0 0
        %2674 = vmatpush1.bf16.msra.mxu0 0
        %2675 = vmatprep.subr.bf16.mxu0 0
        %2676 = vmatpush1.bf16.msra.mxu0 0
        %2677 = vmatprep.subr.bf16.mxu0 0
        %2678 = vmatpush1.bf16.msra.mxu0 0
        %2679 = vmatprep.subr.bf16.mxu0 0
        %2680 = vmatpush1.bf16.msra.mxu0 0
        %2681 = vmatprep.mubr.bf16.mxu0 0
        %2682 = vmatmul.mubr.bf16.gmra.mrb[0].mxu0 %v2648
        %v2683 = vpop.f32.mrb[0].mxu0
        %v2684 = vadd.f32 0.0, %v2683
        %v2685 = vpop.f32.mrb[0].mxu0
        %v2686 = vadd.f32 0.0, %v2685
        %v2687 = vpop.f32.mrb[0].mxu0
        %v2688 = vpop.f32.mrb[0].mxu0
        %2689 = vdwg.mxu0
        %2690 = vmatprep.subr.bf16.mxu0 %v2362
        %2691 = vmatpush1.bf16.msra.mxu0 %v2361
        %2692 = vmatprep.subr.bf16.mxu0 %v2366
        %2693 = vmatpush1.bf16.msra.mxu0 %v2365
        %2694 = vmatprep.subr.bf16.mxu0 %v2370
        %2695 = vmatpush1.bf16.msra.mxu0 %v2369
        %2696 = vmatprep.subr.bf16.mxu0 %v2374
        %2697 = vmatpush1.bf16.msra.mxu0 %v2373
        %2698 = vmatprep.subr.bf16.mxu0 %v2378
        %2699 = vmatpush1.bf16.msra.mxu0 %v2377
        %2700 = vmatprep.subr.bf16.mxu0 %v2382
        %2701 = vmatpush1.bf16.msra.mxu0 %v2381
        %2702 = vmatprep.subr.bf16.mxu0 %v2386
        %2703 = vmatpush1.bf16.msra.mxu0 %v2385
        %2704 = vmatprep.subr.bf16.mxu0 %v2390
        %2705 = vmatpush1.bf16.msra.mxu0 %v2389
        %2706 = vmatprep.subr.bf16.mxu0 0
        %2707 = vmatpush1.bf16.msra.mxu0 0
        %2708 = vmatprep.subr.bf16.mxu0 0
        %2709 = vmatpush1.bf16.msra.mxu0 0
        %2710 = vmatprep.subr.bf16.mxu0 0
        %2711 = vmatpush1.bf16.msra.mxu0 0
        %2712 = vmatprep.subr.bf16.mxu0 0
        %2713 = vmatpush1.bf16.msra.mxu0 0
        %2714 = vmatprep.subr.bf16.mxu0 0
        %2715 = vmatpush1.bf16.msra.mxu0 0
        %2716 = vmatprep.subr.bf16.mxu0 0
        %2717 = vmatpush1.bf16.msra.mxu0 0
        %2718 = vmatprep.subr.bf16.mxu0 0
        %2719 = vmatpush1.bf16.msra.mxu0 0
        %2720 = vmatprep.subr.bf16.mxu0 0
        %2721 = vmatpush1.bf16.msra.mxu0 0
        %2722 = vmatprep.mubr.bf16.mxu0 0
        %2723 = vmatmul.mubr.bf16.gmra.mrb[0].mxu0 %v2648
        %v2724 = vpop.f32.mrb[0].mxu0
        %v2725 = vadd.f32 0.0, %v2724
        %v2726 = vpop.f32.mrb[0].mxu0
        %v2727 = vadd.f32 0.0, %v2726
        %v2728 = vpop.f32.mrb[0].mxu0
        %v2729 = vpop.f32.mrb[0].mxu0
        %2730 = vdwg.mxu0
        %v2731 = vadd.f32 %v2644, %v2684
        %v2732 = vadd.f32 %v2645, %v2686
        %v2733 = vadd.f32 %v2646, %v2725
        %v2734 = vadd.f32 %v2647, %v2727
        %v2735 = vsub.f32 0.0, %v2731
        %v2736 = vsub.f32 0.0, %v2732
        %v2737 = vsub.f32 0.0, %v2733
        %v2738 = vmul.f32 %v2735, 1.442695
        %v2739 = vpow.pop %v2738
        %v2740 = vmul.f32 %v2736, 1.442695
        %v2741 = vpow.pop %v2740
        %v2742 = vmul.f32 %v2737, 1.442695
        %v2743 = vpow.pop %v2742
        %v2744 = vadd.f32 %v2739, 1.0
        %v2745 = vadd.f32 %v2741, 1.0
        %v2746 = vadd.f32 %v2743, 1.0
        %v2747 = vrcp.pop %v2744
        %v2748 = vrcp.pop %v2745
        %v2749 = vrcp.pop %v2746
        %v2750 = vtanh.pop %v2734
        %v2751 = vmul.f32 %v2748, %v2640
        %v2752 = vmul.f32 %v2747, %v2750
        %v2753 = vadd.f32 %v2751, %v2752
        %v2754 = vtanh.pop %v2753
        %v2755 = vmul.f32 %v2749, %v2754
        %2756 = vst [vmem:[%s1246] sm:$0xff] %v2755
        %v2757 = vld [vmem:[%s1248] sm:$0xff]
        %v2758 = vld [vmem:[%s1248 + $0x8] sm:$0xff]
        %v2759 = vld [vmem:[%s1248 + $0x10] sm:$0xff]
        %v2760 = vld [vmem:[%s1248 + $0x18] sm:$0xff]
        %v2761 = vpack.c.bf16 %v2755, %v2755
        %2762 = vmatprep.subr.bf16.mxu0 %v2360
        %2763 = vmatpush1.bf16.msra.mxu0 %v2359
        %2764 = vmatprep.subr.bf16.mxu0 %v2364
        %2765 = vmatpush1.bf16.msra.mxu0 %v2363
        %2766 = vmatprep.subr.bf16.mxu0 %v2368
        %2767 = vmatpush1.bf16.msra.mxu0 %v2367
        %2768 = vmatprep.subr.bf16.mxu0 %v2372
        %2769 = vmatpush1.bf16.msra.mxu0 %v2371
        %2770 = vmatprep.subr.bf16.mxu0 %v2376
        %2771 = vmatpush1.bf16.msra.mxu0 %v2375
        %2772 = vmatprep.subr.bf16.mxu0 %v2380
        %2773 = vmatpush1.bf16.msra.mxu0 %v2379
        %2774 = vmatprep.subr.bf16.mxu0 %v2384
        %2775 = vmatpush1.bf16.msra.mxu0 %v2383
        %2776 = vmatprep.subr.bf16.mxu0 %v2388
        %2777 = vmatpush1.bf16.msra.mxu0 %v2387
        %2778 = vmatprep.subr.bf16.mxu0 0
        %2779 = vmatpush1.bf16.msra.mxu0 0
        %2780 = vmatprep.subr.bf16.mxu0 0
        %2781 = vmatpush1.bf16.msra.mxu0 0
        %2782 = vmatprep.subr.bf16.mxu0 0
        %2783 = vmatpush1.bf16.msra.mxu0 0
        %2784 = vmatprep.subr.bf16.mxu0 0
        %2785 = vmatpush1.bf16.msra.mxu0 0
        %2786 = vmatprep.subr.bf16.mxu0 0
        %2787 = vmatpush1.bf16.msra.mxu0 0
        %2788 = vmatprep.subr.bf16.mxu0 0
        %2789 = vmatpush1.bf16.msra.mxu0 0
        %2790 = vmatprep.subr.bf16.mxu0 0
        %2791 = vmatpush1.bf16.msra.mxu0 0
        %2792 = vmatprep.subr.bf16.mxu0 0
        %2793 = vmatpush1.bf16.msra.mxu0 0
        %2794 = vmatprep.mubr.bf16.mxu0 0
        %2795 = vmatmul.mubr.bf16.gmra.mrb[0].mxu0 %v2761
        %v2796 = vpop.f32.mrb[0].mxu0
        %v2797 = vadd.f32 0.0, %v2796
        %v2798 = vpop.f32.mrb[0].mxu0
        %v2799 = vadd.f32 0.0, %v2798
        %v2800 = vpop.f32.mrb[0].mxu0
        %v2801 = vpop.f32.mrb[0].mxu0
        %2802 = vdwg.mxu0
        %2803 = vmatprep.subr.bf16.mxu0 %v2362
        %2804 = vmatpush1.bf16.msra.mxu0 %v2361
        %2805 = vmatprep.subr.bf16.mxu0 %v2366
        %2806 = vmatpush1.bf16.msra.mxu0 %v2365
        %2807 = vmatprep.subr.bf16.mxu0 %v2370
        %2808 = vmatpush1.bf16.msra.mxu0 %v2369
        %2809 = vmatprep.subr.bf16.mxu0 %v2374
        %2810 = vmatpush1.bf16.msra.mxu0 %v2373
        %2811 = vmatprep.subr.bf16.mxu0 %v2378
        %2812 = vmatpush1.bf16.msra.mxu0 %v2377
        %2813 = vmatprep.subr.bf16.mxu0 %v2382
        %2814 = vmatpush1.bf16.msra.mxu0 %v2381
        %2815 = vmatprep.subr.bf16.mxu0 %v2386
        %2816 = vmatpush1.bf16.msra.mxu0 %v2385
        %2817 = vmatprep.subr.bf16.mxu0 %v2390
        %2818 = vmatpush1.bf16.msra.mxu0 %v2389
        %2819 = vmatprep.subr.bf16.mxu0 0
        %2820 = vmatpush1.bf16.msra.mxu0 0
        %2821 = vmatprep.subr.bf16.mxu0 0
        %2822 = vmatpush1.bf16.msra.mxu0 0
        %2823 = vmatprep.subr.bf16.mxu0 0
        %2824 = vmatpush1.bf16.msra.mxu0 0
        %2825 = vmatprep.subr.bf16.mxu0 0
        %2826 = vmatpush1.bf16.msra.mxu0 0
        %2827 = vmatprep.subr.bf16.mxu0 0
        %2828 = vmatpush1.bf16.msra.mxu0 0
        %2829 = vmatprep.subr.bf16.mxu0 0
        %2830 = vmatpush1.bf16.msra.mxu0 0
        %2831 = vmatprep.subr.bf16.mxu0 0
        %2832 = vmatpush1.bf16.msra.mxu0 0
        %2833 = vmatprep.subr.bf16.mxu0 0
        %2834 = vmatpush1.bf16.msra.mxu0 0
        %2835 = vmatprep.mubr.bf16.mxu0 0
        %2836 = vmatmul.mubr.bf16.gmra.mrb[0].mxu0 %v2761
        %v2837 = vpop.f32.mrb[0].mxu0
        %v2838 = vadd.f32 0.0, %v2837
        %v2839 = vpop.f32.mrb[0].mxu0
        %v2840 = vadd.f32 0.0, %v2839
        %v2841 = vpop.f32.mrb[0].mxu0
        %v2842 = vpop.f32.mrb[0].mxu0
        %2843 = vdwg.mxu0
        %v2844 = vadd.f32 %v2757, %v2797
        %v2845 = vadd.f32 %v2758, %v2799
        %v2846 = vadd.f32 %v2759, %v2838
        %v2847 = vadd.f32 %v2760, %v2840
        %v2848 = vsub.f32 0.0, %v2844
        %v2849 = vsub.f32 0.0, %v2845
        %v2850 = vsub.f32 0.0, %v2846
        %v2851 = vmul.f32 %v2848, 1.442695
        %v2852 = vpow.pop %v2851
        %v2853 = vmul.f32 %v2849, 1.442695
        %v2854 = vpow.pop %v2853
        %v2855 = vmul.f32 %v2850, 1.442695
        %v2856 = vpow.pop %v2855
        %v2857 = vadd.f32 %v2852, 1.0
        %v2858 = vadd.f32 %v2854, 1.0
        %v2859 = vadd.f32 %v2856, 1.0
        %v2860 = vrcp.pop %v2857
        %v2861 = vrcp.pop %v2858
        %v2862 = vrcp.pop %v2859
        %v2863 = vtanh.pop %v2847
        %v2864 = vmul.f32 %v2861, %v2753
        %v2865 = vmul.f32 %v2860, %v2863
        %v2866 = vadd.f32 %v2864, %v2865
        %v2867 = vtanh.pop %v2866
        %v2868 = vmul.f32 %v2862, %v2867
        %2869 = vst [vmem:[%s1361] sm:$0xff] %v2868
        %v2870 = vld [vmem:[%s1363] sm:$0xff]
        %v2871 = vld [vmem:[%s1363 + $0x8] sm:$0xff]
        %v2872 = vld [vmem:[%s1363 + $0x10] sm:$0xff]
        %v2873 = vld [vmem:[%s1363 + $0x18] sm:$0xff]
        %v2874 = vpack.c.bf16 %v2868, %v2868
        %2875 = vmatprep.subr.bf16.mxu0 %v2360
        %2876 = vmatpush1.bf16.msra.mxu0 %v2359
        %2877 = vmatprep.subr.bf16.mxu0 %v2364
        %2878 = vmatpush1.bf16.msra.mxu0 %v2363
        %2879 = vmatprep.subr.bf16.mxu0 %v2368
        %2880 = vmatpush1.bf16.msra.mxu0 %v2367
        %2881 = vmatprep.subr.bf16.mxu0 %v2372
        %2882 = vmatpush1.bf16.msra.mxu0 %v2371
        %2883 = vmatprep.subr.bf16.mxu0 %v2376
        %2884 = vmatpush1.bf16.msra.mxu0 %v2375
        %2885 = vmatprep.subr.bf16.mxu0 %v2380
        %2886 = vmatpush1.bf16.msra.mxu0 %v2379
        %2887 = vmatprep.subr.bf16.mxu0 %v2384
        %2888 = vmatpush1.bf16.msra.mxu0 %v2383
        %2889 = vmatprep.subr.bf16.mxu0 %v2388
        %2890 = vmatpush1.bf16.msra.mxu0 %v2387
        %2891 = vmatprep.subr.bf16.mxu0 0
        %2892 = vmatpush1.bf16.msra.mxu0 0
        %2893 = vmatprep.subr.bf16.mxu0 0
        %2894 = vmatpush1.bf16.msra.mxu0 0
        %2895 = vmatprep.subr.bf16.mxu0 0
        %2896 = vmatpush1.bf16.msra.mxu0 0
        %2897 = vmatprep.subr.bf16.mxu0 0
        %2898 = vmatpush1.bf16.msra.mxu0 0
        %2899 = vmatprep.subr.bf16.mxu0 0
        %2900 = vmatpush1.bf16.msra.mxu0 0
        %2901 = vmatprep.subr.bf16.mxu0 0
        %2902 = vmatpush1.bf16.msra.mxu0 0
        %2903 = vmatprep.subr.bf16.mxu0 0
        %2904 = vmatpush1.bf16.msra.mxu0 0
        %2905 = vmatprep.subr.bf16.mxu0 0
        %2906 = vmatpush1.bf16.msra.mxu0 0
        %2907 = vmatprep.mubr.bf16.mxu0 0
        %2908 = vmatmul.mubr.bf16.gmra.mrb[0].mxu0 %v2874
        %v2909 = vpop.f32.mrb[0].mxu0
        %v2910 = vadd.f32 0.0, %v2909
        %v2911 = vpop.f32.mrb[0].mxu0
        %v2912 = vadd.f32 0.0, %v2911
        %v2913 = vpop.f32.mrb[0].mxu0
        %v2914 = vpop.f32.mrb[0].mxu0
        %2915 = vdwg.mxu0
        %2916 = vmatprep.subr.bf16.mxu0 %v2362
        %2917 = vmatpush1.bf16.msra.mxu0 %v2361
        %2918 = vmatprep.subr.bf16.mxu0 %v2366
        %2919 = vmatpush1.bf16.msra.mxu0 %v2365
        %2920 = vmatprep.subr.bf16.mxu0 %v2370
        %2921 = vmatpush1.bf16.msra.mxu0 %v2369
        %2922 = vmatprep.subr.bf16.mxu0 %v2374
        %2923 = vmatpush1.bf16.msra.mxu0 %v2373
        %2924 = vmatprep.subr.bf16.mxu0 %v2378
        %2925 = vmatpush1.bf16.msra.mxu0 %v2377
        %2926 = vmatprep.subr.bf16.mxu0 %v2382
        %2927 = vmatpush1.bf16.msra.mxu0 %v2381
        %2928 = vmatprep.subr.bf16.mxu0 %v2386
        %2929 = vmatpush1.bf16.msra.mxu0 %v2385
        %2930 = vmatprep.subr.bf16.mxu0 %v2390
        %2931 = vmatpush1.bf16.msra.mxu0 %v2389
        %2932 = vmatprep.subr.bf16.mxu0 0
        %2933 = vmatpush1.bf16.msra.mxu0 0
        %2934 = vmatprep.subr.bf16.mxu0 0
        %2935 = vmatpush1.bf16.msra.mxu0 0
        %2936 = vmatprep.subr.bf16.mxu0 0
        %2937 = vmatpush1.bf16.msra.mxu0 0
        %2938 = vmatprep.subr.bf16.mxu0 0
        %2939 = vmatpush1.bf16.msra.mxu0 0
        %2940 = vmatprep.subr.bf16.mxu0 0
        %2941 = vmatpush1.bf16.msra.mxu0 0
        %2942 = vmatprep.subr.bf16.mxu0 0
        %2943 = vmatpush1.bf16.msra.mxu0 0
        %2944 = vmatprep.subr.bf16.mxu0 0
        %2945 = vmatpush1.bf16.msra.mxu0 0
        %2946 = vmatprep.subr.bf16.mxu0 0
        %2947 = vmatpush1.bf16.msra.mxu0 0
        %2948 = vmatprep.mubr.bf16.mxu0 0
        %2949 = vmatmul.mubr.bf16.gmra.mrb[0].mxu0 %v2874
        %v2950 = vpop.f32.mrb[0].mxu0
        %v2951 = vadd.f32 0.0, %v2950
        %v2952 = vpop.f32.mrb[0].mxu0
        %v2953 = vadd.f32 0.0, %v2952
        %v2954 = vpop.f32.mrb[0].mxu0
        %v2955 = vpop.f32.mrb[0].mxu0
        %2956 = vdwg.mxu0
        %v2957 = vadd.f32 %v2870, %v2910
        %v2958 = vadd.f32 %v2871, %v2912
        %v2959 = vadd.f32 %v2872, %v2951
        %v2960 = vadd.f32 %v2873, %v2953
        %v2961 = vsub.f32 0.0, %v2957
        %v2962 = vsub.f32 0.0, %v2958
        %v2963 = vsub.f32 0.0, %v2959
        %v2964 = vmul.f32 %v2961, 1.442695
        %v2965 = vpow.pop %v2964
        %v2966 = vmul.f32 %v2962, 1.442695
        %v2967 = vpow.pop %v2966
        %v2968 = vmul.f32 %v2963, 1.442695
        %v2969 = vpow.pop %v2968
        %v2970 = vadd.f32 %v2965, 1.0
        %v2971 = vadd.f32 %v2967, 1.0
        %v2972 = vadd.f32 %v2969, 1.0
        %v2973 = vrcp.pop %v2970
        %v2974 = vrcp.pop %v2971
        %v2975 = vrcp.pop %v2972
        %v2976 = vtanh.pop %v2960
        %v2977 = vmul.f32 %v2974, %v2866
        %v2978 = vmul.f32 %v2973, %v2976
        %v2979 = vadd.f32 %v2977, %v2978
        %v2980 = vtanh.pop %v2979
        %v2981 = vmul.f32 %v2975, %v2980
        %2982 = vst [vmem:[%s1476] sm:$0xff] %v2981
        %v2983 = vld [vmem:[%s1478] sm:$0xff]
        %v2984 = vld [vmem:[%s1478 + $0x8] sm:$0xff]
        %v2985 = vld [vmem:[%s1478 + $0x10] sm:$0xff]
        %v2986 = vld [vmem:[%s1478 + $0x18] sm:$0xff]
        %v2987 = vpack.c.bf16 %v2981, %v2981
        %2988 = vmatprep.subr.bf16.mxu0 %v2360
        %2989 = vmatpush1.bf16.msra.mxu0 %v2359
        %2990 = vmatprep.subr.bf16.mxu0 %v2364
        %2991 = vmatpush1.bf16.msra.mxu0 %v2363
        %2992 = vmatprep.subr.bf16.mxu0 %v2368
        %2993 = vmatpush1.bf16.msra.mxu0 %v2367
        %2994 = vmatprep.subr.bf16.mxu0 %v2372
        %2995 = vmatpush1.bf16.msra.mxu0 %v2371
        %2996 = vmatprep.subr.bf16.mxu0 %v2376
        %2997 = vmatpush1.bf16.msra.mxu0 %v2375
        %2998 = vmatprep.subr.bf16.mxu0 %v2380
        %2999 = vmatpush1.bf16.msra.mxu0 %v2379
        %3000 = vmatprep.subr.bf16.mxu0 %v2384
        %3001 = vmatpush1.bf16.msra.mxu0 %v2383
        %3002 = vmatprep.subr.bf16.mxu0 %v2388
        %3003 = vmatpush1.bf16.msra.mxu0 %v2387
        %3004 = vmatprep.subr.bf16.mxu0 0
        %3005 = vmatpush1.bf16.msra.mxu0 0
        %3006 = vmatprep.subr.bf16.mxu0 0
        %3007 = vmatpush1.bf16.msra.mxu0 0
        %3008 = vmatprep.subr.bf16.mxu0 0
        %3009 = vmatpush1.bf16.msra.mxu0 0
        %3010 = vmatprep.subr.bf16.mxu0 0
        %3011 = vmatpush1.bf16.msra.mxu0 0
        %3012 = vmatprep.subr.bf16.mxu0 0
        %3013 = vmatpush1.bf16.msra.mxu0 0
        %3014 = vmatprep.subr.bf16.mxu0 0
        %3015 = vmatpush1.bf16.msra.mxu0 0
        %3016 = vmatprep.subr.bf16.mxu0 0
        %3017 = vmatpush1.bf16.msra.mxu0 0
        %3018 = vmatprep.subr.bf16.mxu0 0
        %3019 = vmatpush1.bf16.msra.mxu0 0
        %3020 = vmatprep.mubr.bf16.mxu0 0
        %3021 = vmatmul.mubr.bf16.gmra.mrb[0].mxu0 %v2987
        %v3022 = vpop.f32.mrb[0].mxu0
        %v3023 = vadd.f32 0.0, %v3022
        %v3024 = vpop.f32.mrb[0].mxu0
        %v3025 = vadd.f32 0.0, %v3024
        %v3026 = vpop.f32.mrb[0].mxu0
        %v3027 = vpop.f32.mrb[0].mxu0
        %3028 = vdwg.mxu0
        %3029 = vmatprep.subr.bf16.mxu0 %v2362
        %3030 = vmatpush1.bf16.msra.mxu0 %v2361
        %3031 = vmatprep.subr.bf16.mxu0 %v2366
        %3032 = vmatpush1.bf16.msra.mxu0 %v2365
        %3033 = vmatprep.subr.bf16.mxu0 %v2370
        %3034 = vmatpush1.bf16.msra.mxu0 %v2369
        %3035 = vmatprep.subr.bf16.mxu0 %v2374
        %3036 = vmatpush1.bf16.msra.mxu0 %v2373
        %3037 = vmatprep.subr.bf16.mxu0 %v2378
        %3038 = vmatpush1.bf16.msra.mxu0 %v2377
        %3039 = vmatprep.subr.bf16.mxu0 %v2382
        %3040 = vmatpush1.bf16.msra.mxu0 %v2381
        %3041 = vmatprep.subr.bf16.mxu0 %v2386
        %3042 = vmatpush1.bf16.msra.mxu0 %v2385
        %3043 = vmatprep.subr.bf16.mxu0 %v2390
        %3044 = vmatpush1.bf16.msra.mxu0 %v2389
        %3045 = vmatprep.subr.bf16.mxu0 0
        %3046 = vmatpush1.bf16.msra.mxu0 0
        %3047 = vmatprep.subr.bf16.mxu0 0
        %3048 = vmatpush1.bf16.msra.mxu0 0
        %3049 = vmatprep.subr.bf16.mxu0 0
        %3050 = vmatpush1.bf16.msra.mxu0 0
        %3051 = vmatprep.subr.bf16.mxu0 0
        %3052 = vmatpush1.bf16.msra.mxu0 0
        %3053 = vmatprep.subr.bf16.mxu0 0
        %3054 = vmatpush1.bf16.msra.mxu0 0
        %3055 = vmatprep.subr.bf16.mxu0 0
        %3056 = vmatpush1.bf16.msra.mxu0 0
        %3057 = vmatprep.subr.bf16.mxu0 0
        %3058 = vmatpush1.bf16.msra.mxu0 0
        %3059 = vmatprep.subr.bf16.mxu0 0
        %3060 = vmatpush1.bf16.msra.mxu0 0
        %3061 = vmatprep.mubr.bf16.mxu0 0
        %3062 = vmatmul.mubr.bf16.gmra.mrb[0].mxu0 %v2987
        %v3063 = vpop.f32.mrb[0].mxu0
        %v3064 = vadd.f32 0.0, %v3063
        %v3065 = vpop.f32.mrb[0].mxu0
        %v3066 = vadd.f32 0.0, %v3065
        %v3067 = vpop.f32.mrb[0].mxu0
        %v3068 = vpop.f32.mrb[0].mxu0
        %3069 = vdwg.mxu0
        %v3070 = vadd.f32 %v2983, %v3023
        %v3071 = vadd.f32 %v2984, %v3025
        %v3072 = vadd.f32 %v2985, %v3064
        %v3073 = vadd.f32 %v2986, %v3066
        %v3074 = vsub.f32 0.0, %v3070
        %v3075 = vsub.f32 0.0, %v3071
        %v3076 = vsub.f32 0.0, %v3072
        %v3077 = vmul.f32 %v3074, 1.442695
        %v3078 = vpow.pop %v3077
        %v3079 = vmul.f32 %v3075, 1.442695
        %v3080 = vpow.pop %v3079
        %v3081 = vmul.f32 %v3076, 1.442695
        %v3082 = vpow.pop %v3081
        %v3083 = vadd.f32 %v3078, 1.0
        %v3084 = vadd.f32 %v3080, 1.0
        %v3085 = vadd.f32 %v3082, 1.0
        %v3086 = vrcp.pop %v3083
        %v3087 = vrcp.pop %v3084
        %v3088 = vrcp.pop %v3085
        %v3089 = vtanh.pop %v3073
        %v3090 = vmul.f32 %v3087, %v2979
        %v3091 = vmul.f32 %v3086, %v3089
        %v3092 = vadd.f32 %v3090, %v3091
        %v3093 = vtanh.pop %v3092
        %v3094 = vmul.f32 %v3088, %v3093
        %3095 = vst [vmem:[%s1591] sm:$0xff] %v3094
        %v3096 = vld [vmem:[%s1593] sm:$0xff]
        %v3097 = vld [vmem:[%s1593 + $0x8] sm:$0xff]
        %v3098 = vld [vmem:[%s1593 + $0x10] sm:$0xff]
        %v3099 = vld [vmem:[%s1593 + $0x18] sm:$0xff]
        %v3100 = vpack.c.bf16 %v3094, %v3094
        %3101 = vmatprep.subr.bf16.mxu0 %v2360
        %3102 = vmatpush1.bf16.msra.mxu0 %v2359
        %3103 = vmatprep.subr.bf16.mxu0 %v2364
        %3104 = vmatpush1.bf16.msra.mxu0 %v2363
        %3105 = vmatprep.subr.bf16.mxu0 %v2368
        %3106 = vmatpush1.bf16.msra.mxu0 %v2367
        %3107 = vmatprep.subr.bf16.mxu0 %v2372
        %3108 = vmatpush1.bf16.msra.mxu0 %v2371
        %3109 = vmatprep.subr.bf16.mxu0 %v2376
        %3110 = vmatpush1.bf16.msra.mxu0 %v2375
        %3111 = vmatprep.subr.bf16.mxu0 %v2380
        %3112 = vmatpush1.bf16.msra.mxu0 %v2379
        %3113 = vmatprep.subr.bf16.mxu0 %v2384
        %3114 = vmatpush1.bf16.msra.mxu0 %v2383
        %3115 = vmatprep.subr.bf16.mxu0 %v2388
        %3116 = vmatpush1.bf16.msra.mxu0 %v2387
        %3117 = vmatprep.subr.bf16.mxu0 0
        %3118 = vmatpush1.bf16.msra.mxu0 0
        %3119 = vmatprep.subr.bf16.mxu0 0
        %3120 = vmatpush1.bf16.msra.mxu0 0
        %3121 = vmatprep.subr.bf16.mxu0 0
        %3122 = vmatpush1.bf16.msra.mxu0 0
        %3123 = vmatprep.subr.bf16.mxu0 0
        %3124 = vmatpush1.bf16.msra.mxu0 0
        %3125 = vmatprep.subr.bf16.mxu0 0
        %3126 = vmatpush1.bf16.msra.mxu0 0
        %3127 = vmatprep.subr.bf16.mxu0 0
        %3128 = vmatpush1.bf16.msra.mxu0 0
        %3129 = vmatprep.subr.bf16.mxu0 0
        %3130 = vmatpush1.bf16.msra.mxu0 0
        %3131 = vmatprep.subr.bf16.mxu0 0
        %3132 = vmatpush1.bf16.msra.mxu0 0
        %3133 = vmatprep.mubr.bf16.mxu0 0
        %3134 = vmatmul.mubr.bf16.gmra.mrb[0].mxu0 %v3100
        %v3135 = vpop.f32.mrb[0].mxu0
        %v3136 = vadd.f32 0.0, %v3135
        %v3137 = vpop.f32.mrb[0].mxu0
        %v3138 = vadd.f32 0.0, %v3137
        %v3139 = vpop.f32.mrb[0].mxu0
        %v3140 = vpop.f32.mrb[0].mxu0
        %3141 = vdwg.mxu0
        %3142 = vmatprep.subr.bf16.mxu0 %v2362
        %3143 = vmatpush1.bf16.msra.mxu0 %v2361
        %3144 = vmatprep.subr.bf16.mxu0 %v2366
        %3145 = vmatpush1.bf16.msra.mxu0 %v2365
        %3146 = vmatprep.subr.bf16.mxu0 %v2370
        %3147 = vmatpush1.bf16.msra.mxu0 %v2369
        %3148 = vmatprep.subr.bf16.mxu0 %v2374
        %3149 = vmatpush1.bf16.msra.mxu0 %v2373
        %3150 = vmatprep.subr.bf16.mxu0 %v2378
        %3151 = vmatpush1.bf16.msra.mxu0 %v2377
        %3152 = vmatprep.subr.bf16.mxu0 %v2382
        %3153 = vmatpush1.bf16.msra.mxu0 %v2381
        %3154 = vmatprep.subr.bf16.mxu0 %v2386
        %3155 = vmatpush1.bf16.msra.mxu0 %v2385
        %3156 = vmatprep.subr.bf16.mxu0 %v2390
        %3157 = vmatpush1.bf16.msra.mxu0 %v2389
        %3158 = vmatprep.subr.bf16.mxu0 0
        %3159 = vmatpush1.bf16.msra.mxu0 0
        %3160 = vmatprep.subr.bf16.mxu0 0
        %3161 = vmatpush1.bf16.msra.mxu0 0
        %3162 = vmatprep.subr.bf16.mxu0 0
        %3163 = vmatpush1.bf16.msra.mxu0 0
        %3164 = vmatprep.subr.bf16.mxu0 0
        %3165 = vmatpush1.bf16.msra.mxu0 0
        %3166 = vmatprep.subr.bf16.mxu0 0
        %3167 = vmatpush1.bf16.msra.mxu0 0
        %3168 = vmatprep.subr.bf16.mxu0 0
        %3169 = vmatpush1.bf16.msra.mxu0 0
        %3170 = vmatprep.subr.bf16.mxu0 0
        %3171 = vmatpush1.bf16.msra.mxu0 0
        %3172 = vmatprep.subr.bf16.mxu0 0
        %3173 = vmatpush1.bf16.msra.mxu0 0
        %3174 = vmatprep.mubr.bf16.mxu0 0
        %3175 = vmatmul.mubr.bf16.gmra.mrb[0].mxu0 %v3100
        %v3176 = vpop.f32.mrb[0].mxu0
        %v3177 = vadd.f32 0.0, %v3176
        %v3178 = vpop.f32.mrb[0].mxu0
        %v3179 = vadd.f32 0.0, %v3178
        %v3180 = vpop.f32.mrb[0].mxu0
        %v3181 = vpop.f32.mrb[0].mxu0
        %3182 = vdwg.mxu0
        %v3183 = vadd.f32 %v3096, %v3136
        %v3184 = vadd.f32 %v3097, %v3138
        %v3185 = vadd.f32 %v3098, %v3177
        %v3186 = vadd.f32 %v3099, %v3179
        %v3187 = vsub.f32 0.0, %v3183
        %v3188 = vsub.f32 0.0, %v3184
        %v3189 = vsub.f32 0.0, %v3185
        %v3190 = vmul.f32 %v3187, 1.442695
        %v3191 = vpow.pop %v3190
        %v3192 = vmul.f32 %v3188, 1.442695
        %v3193 = vpow.pop %v3192
        %v3194 = vmul.f32 %v3189, 1.442695
        %v3195 = vpow.pop %v3194
        %v3196 = vadd.f32 %v3191, 1.0
        %v3197 = vadd.f32 %v3193, 1.0
        %v3198 = vadd.f32 %v3195, 1.0
        %v3199 = vrcp.pop %v3196
        %v3200 = vrcp.pop %v3197
        %v3201 = vrcp.pop %v3198
        %v3202 = vtanh.pop %v3186
        %v3203 = vmul.f32 %v3200, %v3092
        %v3204 = vmul.f32 %v3199, %v3202
        %v3205 = vadd.f32 %v3203, %v3204
        %v3206 = vtanh.pop %v3205
        %v3207 = vmul.f32 %v3201, %v3206
        %3208 = vst [vmem:[%s1706] sm:$0xff] %v3207
        %v3209 = vld [vmem:[%s1708] sm:$0xff]
        %v3210 = vld [vmem:[%s1708 + $0x8] sm:$0xff]
        %v3211 = vld [vmem:[%s1708 + $0x10] sm:$0xff]
        %v3212 = vld [vmem:[%s1708 + $0x18] sm:$0xff]
        %v3213 = vpack.c.bf16 %v3207, %v3207
        %3214 = vmatprep.subr.bf16.mxu0 %v2360
        %3215 = vmatpush1.bf16.msra.mxu0 %v2359
        %3216 = vmatprep.subr.bf16.mxu0 %v2364
        %3217 = vmatpush1.bf16.msra.mxu0 %v2363
        %3218 = vmatprep.subr.bf16.mxu0 %v2368
        %3219 = vmatpush1.bf16.msra.mxu0 %v2367
        %3220 = vmatprep.subr.bf16.mxu0 %v2372
        %3221 = vmatpush1.bf16.msra.mxu0 %v2371
        %3222 = vmatprep.subr.bf16.mxu0 %v2376
        %3223 = vmatpush1.bf16.msra.mxu0 %v2375
        %3224 = vmatprep.subr.bf16.mxu0 %v2380
        %3225 = vmatpush1.bf16.msra.mxu0 %v2379
        %3226 = vmatprep.subr.bf16.mxu0 %v2384
        %3227 = vmatpush1.bf16.msra.mxu0 %v2383
        %3228 = vmatprep.subr.bf16.mxu0 %v2388
        %3229 = vmatpush1.bf16.msra.mxu0 %v2387
        %3230 = vmatprep.subr.bf16.mxu0 0
        %3231 = vmatpush1.bf16.msra.mxu0 0
        %3232 = vmatprep.subr.bf16.mxu0 0
        %3233 = vmatpush1.bf16.msra.mxu0 0
        %3234 = vmatprep.subr.bf16.mxu0 0
        %3235 = vmatpush1.bf16.msra.mxu0 0
        %3236 = vmatprep.subr.bf16.mxu0 0
        %3237 = vmatpush1.bf16.msra.mxu0 0
        %3238 = vmatprep.subr.bf16.mxu0 0
        %3239 = vmatpush1.bf16.msra.mxu0 0
        %3240 = vmatprep.subr.bf16.mxu0 0
        %3241 = vmatpush1.bf16.msra.mxu0 0
        %3242 = vmatprep.subr.bf16.mxu0 0
        %3243 = vmatpush1.bf16.msra.mxu0 0
        %3244 = vmatprep.subr.bf16.mxu0 0
        %3245 = vmatpush1.bf16.msra.mxu0 0
        %3246 = vmatprep.mubr.bf16.mxu0 0
        %3247 = vmatmul.mubr.bf16.gmra.mrb[0].mxu0 %v3213
        %v3248 = vpop.f32.mrb[0].mxu0
        %v3249 = vadd.f32 0.0, %v3248
        %v3250 = vpop.f32.mrb[0].mxu0
        %v3251 = vadd.f32 0.0, %v3250
        %v3252 = vpop.f32.mrb[0].mxu0
        %v3253 = vpop.f32.mrb[0].mxu0
        %3254 = vdwg.mxu0
        %3255 = vmatprep.subr.bf16.mxu0 %v2362
        %3256 = vmatpush1.bf16.msra.mxu0 %v2361
        %3257 = vmatprep.subr.bf16.mxu0 %v2366
        %3258 = vmatpush1.bf16.msra.mxu0 %v2365
        %3259 = vmatprep.subr.bf16.mxu0 %v2370
        %3260 = vmatpush1.bf16.msra.mxu0 %v2369
        %3261 = vmatprep.subr.bf16.mxu0 %v2374
        %3262 = vmatpush1.bf16.msra.mxu0 %v2373
        %3263 = vmatprep.subr.bf16.mxu0 %v2378
        %3264 = vmatpush1.bf16.msra.mxu0 %v2377
        %3265 = vmatprep.subr.bf16.mxu0 %v2382
        %3266 = vmatpush1.bf16.msra.mxu0 %v2381
        %3267 = vmatprep.subr.bf16.mxu0 %v2386
        %3268 = vmatpush1.bf16.msra.mxu0 %v2385
        %3269 = vmatprep.subr.bf16.mxu0 %v2390
        %3270 = vmatpush1.bf16.msra.mxu0 %v2389
        %3271 = vmatprep.subr.bf16.mxu0 0
        %3272 = vmatpush1.bf16.msra.mxu0 0
        %3273 = vmatprep.subr.bf16.mxu0 0
        %3274 = vmatpush1.bf16.msra.mxu0 0
        %3275 = vmatprep.subr.bf16.mxu0 0
        %3276 = vmatpush1.bf16.msra.mxu0 0
        %3277 = vmatprep.subr.bf16.mxu0 0
        %3278 = vmatpush1.bf16.msra.mxu0 0
        %3279 = vmatprep.subr.bf16.mxu0 0
        %3280 = vmatpush1.bf16.msra.mxu0 0
        %3281 = vmatprep.subr.bf16.mxu0 0
        %3282 = vmatpush1.bf16.msra.mxu0 0
        %3283 = vmatprep.subr.bf16.mxu0 0
        %3284 = vmatpush1.bf16.msra.mxu0 0
        %3285 = vmatprep.subr.bf16.mxu0 0
        %3286 = vmatpush1.bf16.msra.mxu0 0
        %3287 = vmatprep.mubr.bf16.mxu0 0
        %3288 = vmatmul.mubr.bf16.gmra.mrb[0].mxu0 %v3213
        %v3289 = vpop.f32.mrb[0].mxu0
        %v3290 = vadd.f32 0.0, %v3289
        %v3291 = vpop.f32.mrb[0].mxu0
        %v3292 = vadd.f32 0.0, %v3291
        %v3293 = vpop.f32.mrb[0].mxu0
        %v3294 = vpop.f32.mrb[0].mxu0
        %3295 = vdwg.mxu0
        %v3296 = vadd.f32 %v3209, %v3249
        %v3297 = vadd.f32 %v3210, %v3251
        %v3298 = vadd.f32 %v3211, %v3290
        %v3299 = vadd.f32 %v3212, %v3292
        %v3300 = vsub.f32 0.0, %v3296
        %v3301 = vsub.f32 0.0, %v3297
        %v3302 = vsub.f32 0.0, %v3298
        %v3303 = vmul.f32 %v3300, 1.442695
        %v3304 = vpow.pop %v3303
        %v3305 = vmul.f32 %v3301, 1.442695
        %v3306 = vpow.pop %v3305
        %v3307 = vmul.f32 %v3302, 1.442695
        %v3308 = vpow.pop %v3307
        %v3309 = vadd.f32 %v3304, 1.0
        %v3310 = vadd.f32 %v3306, 1.0
        %v3311 = vadd.f32 %v3308, 1.0
        %v3312 = vrcp.pop %v3309
        %v3313 = vrcp.pop %v3310
        %v3314 = vrcp.pop %v3311
        %v3315 = vtanh.pop %v3299
        %v3316 = vmul.f32 %v3313, %v3205
        %v3317 = vmul.f32 %v3312, %v3315
        %v3318 = vadd.f32 %v3316, %v3317
        %v3319 = vtanh.pop %v3318
        %v3320 = vmul.f32 %v3314, %v3319
        %3321 = vst [vmem:[%s1821] sm:$0xff] %v3320
        %v3322 = vld [vmem:[#allocation13] sm:$0xff]
        %v3323 = vld [vmem:[#allocation13 + $0x8] sm:$0xff]
        %v3324 = vld [vmem:[#allocation13 + $0x10] sm:$0xff]
        %v3325 = vld [vmem:[#allocation13 + $0x18] sm:$0xff]
        %v3326 = vld [vmem:[#allocation13 + $0x20] sm:$0xff]
        %v3327 = vld [vmem:[#allocation13 + $0x28] sm:$0xff]
        %v3328 = vld [vmem:[#allocation13 + $0x30] sm:$0xff]
        %v3329 = vld [vmem:[#allocation13 + $0x38] sm:$0xff]
        %v3330 = vld [vmem:[#allocation13 + $0x40] sm:$0xff]
        %v3331 = vld [vmem:[#allocation13 + $0x48] sm:$0xff]
        %v3332 = vld [vmem:[#allocation13 + $0x50] sm:$0xff]
        %v3333 = vld [vmem:[#allocation13 + $0x58] sm:$0xff]
        %v3334 = vld [vmem:[#allocation13 + $0x60] sm:$0xff]
        %v3335 = vld [vmem:[#allocation13 + $0x68] sm:$0xff]
        %v3336 = vld [vmem:[#allocation13 + $0x70] sm:$0xff]
        %v3337 = vld [vmem:[#allocation13 + $0x78] sm:$0xff]
        %v3338 = vld [vmem:[#allocation13 + $0x80] sm:$0xff]
        %v3339 = vld [vmem:[#allocation13 + $0x88] sm:$0xff]
        %v3340 = vld [vmem:[#allocation13 + $0x90] sm:$0xff]
        %v3341 = vld [vmem:[#allocation13 + $0x98] sm:$0xff]
        %v3342 = vld [vmem:[#allocation13 + $0xa0] sm:$0xff]
        %v3343 = vld [vmem:[#allocation13 + $0xa8] sm:$0xff]
        %v3344 = vld [vmem:[#allocation13 + $0xb0] sm:$0xff]
        %v3345 = vld [vmem:[#allocation13 + $0xb8] sm:$0xff]
        %v3346 = vld [vmem:[#allocation13 + $0xc0] sm:$0xff]
        %v3347 = vld [vmem:[#allocation13 + $0xc8] sm:$0xff]
        %v3348 = vld [vmem:[#allocation13 + $0xd0] sm:$0xff]
        %v3349 = vld [vmem:[#allocation13 + $0xd8] sm:$0xff]
        %v3350 = vld [vmem:[#allocation13 + $0xe0] sm:$0xff]
        %v3351 = vld [vmem:[#allocation13 + $0xe8] sm:$0xff]
        %v3352 = vld [vmem:[#allocation13 + $0xf0] sm:$0xff]
        %v3353 = vld [vmem:[#allocation13 + $0xf8] sm:$0xff]
        %v3354 = vld [vmem:[#allocation15] sm:$0xff]
        %v3355 = vld [vmem:[#allocation15 + $0x8] sm:$0xff]
        %v3356 = vld [vmem:[#allocation15 + $0x10] sm:$0xff]
        %v3357 = vld [vmem:[#allocation15 + $0x18] sm:$0xff]
        %v3358 = vld [vmem:[#allocation15 + $0x20] sm:$0xff]
        %v3359 = vld [vmem:[#allocation15 + $0x28] sm:$0xff]
        %v3360 = vld [vmem:[#allocation15 + $0x30] sm:$0xff]
        %v3361 = vld [vmem:[#allocation15 + $0x38] sm:$0xff]
        %v3362 = vld [vmem:[#allocation15 + $0x40] sm:$0xff]
        %v3363 = vld [vmem:[#allocation15 + $0x48] sm:$0xff]
        %v3364 = vld [vmem:[#allocation15 + $0x50] sm:$0xff]
        %v3365 = vld [vmem:[#allocation15 + $0x58] sm:$0xff]
        %v3366 = vld [vmem:[#allocation15 + $0x60] sm:$0xff]
        %v3367 = vld [vmem:[#allocation15 + $0x68] sm:$0xff]
        %v3368 = vld [vmem:[#allocation15 + $0x70] sm:$0xff]
        %v3369 = vld [vmem:[#allocation15 + $0x78] sm:$0xff]
        %v3370 = vld [vmem:[#allocation15 + $0x80] sm:$0xff]
        %v3371 = vld [vmem:[#allocation15 + $0x88] sm:$0xff]
        %v3372 = vld [vmem:[#allocation15 + $0x90] sm:$0xff]
        %v3373 = vld [vmem:[#allocation15 + $0x98] sm:$0xff]
        %v3374 = vld [vmem:[#allocation15 + $0xa0] sm:$0xff]
        %v3375 = vld [vmem:[#allocation15 + $0xa8] sm:$0xff]
        %v3376 = vld [vmem:[#allocation15 + $0xb0] sm:$0xff]
        %v3377 = vld [vmem:[#allocation15 + $0xb8] sm:$0xff]
        %v3378 = vld [vmem:[#allocation15 + $0xc0] sm:$0xff]
        %v3379 = vld [vmem:[#allocation15 + $0xc8] sm:$0xff]
        %v3380 = vld [vmem:[#allocation15 + $0xd0] sm:$0xff]
        %v3381 = vld [vmem:[#allocation15 + $0xd8] sm:$0xff]
        %v3382 = vld [vmem:[#allocation15 + $0xe0] sm:$0xff]
        %v3383 = vld [vmem:[#allocation15 + $0xe8] sm:$0xff]
        %v3384 = vld [vmem:[#allocation15 + $0xf0] sm:$0xff]
        %v3385 = vld [vmem:[#allocation15 + $0xf8] sm:$0xff]
        %v3386 = vld [vmem:[%s9] sm:$0xf]
        %v3387 = vld [vmem:[#allocation3] sm:$0xff]
        %v3388 = vld [vmem:[#allocation3 + $0x8] sm:$0xff]
        %v3389 = vld [vmem:[#allocation3 + $0x10] sm:$0xff]
        %v3390 = vld [vmem:[#allocation3 + $0x18] sm:$0xff]
        %v3391 = vld [vmem:[#allocation3 + $0x20] sm:$0xff]
        %v3392 = vld [vmem:[#allocation3 + $0x28] sm:$0xff]
        %v3393 = vld [vmem:[#allocation3 + $0x30] sm:$0xff]
        %v3394 = vld [vmem:[#allocation3 + $0x38] sm:$0xff]
        %v3395 = vpack.c.bf16 %v3388, %v3387
        %v3396 = vpack.c.bf16 %v3390, %v3389
        %v3397 = vpack.c.bf16 %v3392, %v3391
        %v3398 = vpack.c.bf16 %v3394, %v3393
        %v3400 = vlaneseq
        %v3401 = vshrl.u32 %v3400, 7
        %v3402 = vsub.s32 0, %v3401
        %v3403 = vrot.slane %v3386, %v3402
        %v3404 = vlaneseq
        %v3405 = vshrl.u32 %v3404, 7
        %v3406 = vsub.s32 1, %v3405
        %v3407 = vrot.slane %v3386, %v3406
        %v3408 = vlaneseq
        %v3409 = vshrl.u32 %v3408, 7
        %v3410 = vsub.s32 2, %v3409
        %v3411 = vrot.slane %v3386, %v3410
        %v3412 = vlaneseq
        %v3413 = vshrl.u32 %v3412, 7
        %v3414 = vsub.s32 3, %v3413
        %v3415 = vrot.slane %v3386, %v3414
        %v3452 = vunpack.c.l.b16 %v3322
        %v3453 = vunpack.c.h.b16 %v3322
        %v3454 = vunpack.c.l.b16 %v3323
        %v3455 = vunpack.c.h.b16 %v3323
        %v3456 = vunpack.c.l.b16 %v3324
        %v3457 = vunpack.c.h.b16 %v3324
        %v3458 = vunpack.c.l.b16 %v3325
        %v3459 = vunpack.c.h.b16 %v3325
        %v3460 = vunpack.c.l.b16 %v3326
        %v3461 = vunpack.c.h.b16 %v3326
        %v3462 = vunpack.c.l.b16 %v3327
        %v3463 = vunpack.c.h.b16 %v3327
        %v3464 = vunpack.c.l.b16 %v3328
        %v3465 = vunpack.c.h.b16 %v3328
        %v3466 = vunpack.c.l.b16 %v3329
        %v3467 = vunpack.c.h.b16 %v3329
        %v3468 = vunpack.c.l.b16 %v3330
        %v3469 = vunpack.c.h.b16 %v3330
        %v3470 = vunpack.c.l.b16 %v3331
        %v3471 = vunpack.c.h.b16 %v3331
        %v3472 = vunpack.c.l.b16 %v3332
        %v3473 = vunpack.c.h.b16 %v3332
        %v3474 = vunpack.c.l.b16 %v3333
        %v3475 = vunpack.c.h.b16 %v3333
        %v3476 = vunpack.c.l.b16 %v3334
        %v3477 = vunpack.c.h.b16 %v3334
        %v3478 = vunpack.c.l.b16 %v3335
        %v3479 = vunpack.c.h.b16 %v3335
        %v3480 = vunpack.c.l.b16 %v3336
        %v3481 = vunpack.c.h.b16 %v3336
        %v3482 = vunpack.c.l.b16 %v3337
        %v3483 = vunpack.c.h.b16 %v3337
        %v3484 = vunpack.c.l.b16 %v3338
        %v3485 = vunpack.c.h.b16 %v3338
        %v3486 = vunpack.c.l.b16 %v3339
        %v3487 = vunpack.c.h.b16 %v3339
        %v3488 = vunpack.c.l.b16 %v3340
        %v3489 = vunpack.c.h.b16 %v3340
        %v3490 = vunpack.c.l.b16 %v3341
        %v3491 = vunpack.c.h.b16 %v3341
        %v3492 = vunpack.c.l.b16 %v3342
        %v3493 = vunpack.c.h.b16 %v3342
        %v3494 = vunpack.c.l.b16 %v3343
        %v3495 = vunpack.c.h.b16 %v3343
        %v3496 = vunpack.c.l.b16 %v3344
        %v3497 = vunpack.c.h.b16 %v3344
        %v3498 = vunpack.c.l.b16 %v3345
        %v3499 = vunpack.c.h.b16 %v3345
        %v3500 = vunpack.c.l.b16 %v3346
        %v3501 = vunpack.c.h.b16 %v3346
        %v3502 = vunpack.c.l.b16 %v3347
        %v3503 = vunpack.c.h.b16 %v3347
        %v3504 = vunpack.c.l.b16 %v3348
        %v3505 = vunpack.c.h.b16 %v3348
        %v3506 = vunpack.c.l.b16 %v3349
        %v3507 = vunpack.c.h.b16 %v3349
        %v3508 = vunpack.c.l.b16 %v3350
        %v3509 = vunpack.c.h.b16 %v3350
        %v3510 = vunpack.c.l.b16 %v3351
        %v3511 = vunpack.c.h.b16 %v3351
        %v3512 = vunpack.c.l.b16 %v3352
        %v3513 = vunpack.c.h.b16 %v3352
        %v3514 = vunpack.c.l.b16 %v3353
        %v3515 = vunpack.c.h.b16 %v3353
        %v3516 = vpack.c.b16 %v3456, %v3452
        %v3517 = vpack.c.b16 %v3457, %v3453
        %v3518 = vpack.c.b16 %v3458, %v3454
        %v3519 = vpack.c.b16 %v3459, %v3455
        %v3520 = vpack.c.b16 %v3464, %v3460
        %v3521 = vpack.c.b16 %v3465, %v3461
        %v3522 = vpack.c.b16 %v3466, %v3462
        %v3523 = vpack.c.b16 %v3467, %v3463
        %v3524 = vpack.c.b16 %v3472, %v3468
        %v3525 = vpack.c.b16 %v3473, %v3469
        %v3526 = vpack.c.b16 %v3474, %v3470
        %v3527 = vpack.c.b16 %v3475, %v3471
        %v3528 = vpack.c.b16 %v3480, %v3476
        %v3529 = vpack.c.b16 %v3481, %v3477
        %v3530 = vpack.c.b16 %v3482, %v3478
        %v3531 = vpack.c.b16 %v3483, %v3479
        %v3532 = vpack.c.b16 %v3488, %v3484
        %v3533 = vpack.c.b16 %v3489, %v3485
        %v3534 = vpack.c.b16 %v3490, %v3486
        %v3535 = vpack.c.b16 %v3491, %v3487
        %v3536 = vpack.c.b16 %v3496, %v3492
        %v3537 = vpack.c.b16 %v3497, %v3493
        %v3538 = vpack.c.b16 %v3498, %v3494
        %v3539 = vpack.c.b16 %v3499, %v3495
        %v3540 = vpack.c.b16 %v3504, %v3500
        %v3541 = vpack.c.b16 %v3505, %v3501
        %v3542 = vpack.c.b16 %v3506, %v3502
        %v3543 = vpack.c.b16 %v3507, %v3503
        %v3544 = vpack.c.b16 %v3512, %v3508
        %v3545 = vpack.c.b16 %v3513, %v3509
        %v3546 = vpack.c.b16 %v3514, %v3510
        %v3547 = vpack.c.b16 %v3515, %v3511
        %3580 = vmatprep.subr.bf16.mxu0 %v3517
        %3581 = vmatpush1.bf16.msra.mxu0 %v3516
        %3582 = vmatprep.subr.bf16.mxu0 %v3521
        %3583 = vmatpush1.bf16.msra.mxu0 %v3520
        %3584 = vmatprep.subr.bf16.mxu0 %v3525
        %3585 = vmatpush1.bf16.msra.mxu0 %v3524
        %3586 = vmatprep.subr.bf16.mxu0 %v3529
        %3587 = vmatpush1.bf16.msra.mxu0 %v3528
        %3588 = vmatprep.subr.bf16.mxu0 %v3533
        %3589 = vmatpush1.bf16.msra.mxu0 %v3532
        %3590 = vmatprep.subr.bf16.mxu0 %v3537
        %3591 = vmatpush1.bf16.msra.mxu0 %v3536
        %3592 = vmatprep.subr.bf16.mxu0 %v3541
        %3593 = vmatpush1.bf16.msra.mxu0 %v3540
        %3594 = vmatprep.subr.bf16.mxu0 %v3545
        %3595 = vmatpush1.bf16.msra.mxu0 %v3544
        %3596 = vmatprep.subr.bf16.mxu0 0
        %3597 = vmatpush1.bf16.msra.mxu0 0
        %3598 = vmatprep.subr.bf16.mxu0 0
        %3599 = vmatpush1.bf16.msra.mxu0 0
        %3600 = vmatprep.subr.bf16.mxu0 0
        %3601 = vmatpush1.bf16.msra.mxu0 0
        %3602 = vmatprep.subr.bf16.mxu0 0
        %3603 = vmatpush1.bf16.msra.mxu0 0
        %3604 = vmatprep.subr.bf16.mxu0 0
        %3605 = vmatpush1.bf16.msra.mxu0 0
        %3606 = vmatprep.subr.bf16.mxu0 0
        %3607 = vmatpush1.bf16.msra.mxu0 0
        %3608 = vmatprep.subr.bf16.mxu0 0
        %3609 = vmatpush1.bf16.msra.mxu0 0
        %3610 = vmatprep.subr.bf16.mxu0 0
        %3611 = vmatpush1.bf16.msra.mxu0 0
        %3612 = vmatprep.mubr.bf16.mxu0 0
        %3613 = vmatmul.mubr.bf16.gmra.mrb[0].mxu0 %v3395
        %v3614 = vpop.f32.mrb[0].mxu0
        %v3615 = vadd.f32 %v3403, %v3614
        %v3616 = vpop.f32.mrb[0].mxu0
        %v3617 = vadd.f32 %v3407, %v3616
        %v3618 = vpop.f32.mrb[0].mxu0
        %v3619 = vadd.f32 %v3403, %v3618
        %v3620 = vpop.f32.mrb[0].mxu0
        %v3621 = vadd.f32 %v3407, %v3620
        %3622 = vmatprep.mubr.bf16.mxu0 0
        %3623 = vmatmul.mubr.bf16.gmra.mrb[0].mxu0 %v3396
        %v3624 = vpop.f32.mrb[0].mxu0
        %v3625 = vadd.f32 %v3403, %v3624
        %v3626 = vpop.f32.mrb[0].mxu0
        %v3627 = vadd.f32 %v3407, %v3626
        %v3628 = vpop.f32.mrb[0].mxu0
        %v3629 = vadd.f32 %v3403, %v3628
        %v3630 = vpop.f32.mrb[0].mxu0
        %v3631 = vadd.f32 %v3407, %v3630
        %3632 = vmatprep.mubr.bf16.mxu0 0
        %3633 = vmatmul.mubr.bf16.gmra.mrb[0].mxu0 %v3397
        %v3634 = vpop.f32.mrb[0].mxu0
        %v3635 = vadd.f32 %v3403, %v3634
        %v3636 = vpop.f32.mrb[0].mxu0
        %v3637 = vadd.f32 %v3407, %v3636
        %v3638 = vpop.f32.mrb[0].mxu0
        %v3639 = vadd.f32 %v3403, %v3638
        %v3640 = vpop.f32.mrb[0].mxu0
        %v3641 = vadd.f32 %v3407, %v3640
        %3642 = vmatprep.mubr.bf16.mxu0 0
        %3643 = vmatmul.mubr.bf16.gmra.mrb[0].mxu0 %v3398
        %v3644 = vpop.f32.mrb[0].mxu0
        %v3645 = vadd.f32 %v3403, %v3644
        %v3646 = vpop.f32.mrb[0].mxu0
        %v3647 = vadd.f32 %v3407, %v3646
        %v3648 = vpop.f32.mrb[0].mxu0
        %v3649 = vadd.f32 %v3403, %v3648
        %v3650 = vpop.f32.mrb[0].mxu0
        %v3651 = vadd.f32 %v3407, %v3650
        %3652 = vdwg.mxu0
        %3653 = vmatprep.subr.bf16.mxu0 %v3519
        %3654 = vmatpush1.bf16.msra.mxu0 %v3518
        %3655 = vmatprep.subr.bf16.mxu0 %v3523
        %3656 = vmatpush1.bf16.msra.mxu0 %v3522
        %3657 = vmatprep.subr.bf16.mxu0 %v3527
        %3658 = vmatpush1.bf16.msra.mxu0 %v3526
        %3659 = vmatprep.subr.bf16.mxu0 %v3531
        %3660 = vmatpush1.bf16.msra.mxu0 %v3530
        %3661 = vmatprep.subr.bf16.mxu0 %v3535
        %3662 = vmatpush1.bf16.msra.mxu0 %v3534
        %3663 = vmatprep.subr.bf16.mxu0 %v3539
        %3664 = vmatpush1.bf16.msra.mxu0 %v3538
        %3665 = vmatprep.subr.bf16.mxu0 %v3543
        %3666 = vmatpush1.bf16.msra.mxu0 %v3542
        %3667 = vmatprep.subr.bf16.mxu0 %v3547
        %3668 = vmatpush1.bf16.msra.mxu0 %v3546
        %3669 = vmatprep.subr.bf16.mxu0 0
        %3670 = vmatpush1.bf16.msra.mxu0 0
        %3671 = vmatprep.subr.bf16.mxu0 0
        %3672 = vmatpush1.bf16.msra.mxu0 0
        %3673 = vmatprep.subr.bf16.mxu0 0
        %3674 = vmatpush1.bf16.msra.mxu0 0
        %3675 = vmatprep.subr.bf16.mxu0 0
        %3676 = vmatpush1.bf16.msra.mxu0 0
        %3677 = vmatprep.subr.bf16.mxu0 0
        %3678 = vmatpush1.bf16.msra.mxu0 0
        %3679 = vmatprep.subr.bf16.mxu0 0
        %3680 = vmatpush1.bf16.msra.mxu0 0
        %3681 = vmatprep.subr.bf16.mxu0 0
        %3682 = vmatpush1.bf16.msra.mxu0 0
        %3683 = vmatprep.subr.bf16.mxu0 0
        %3684 = vmatpush1.bf16.msra.mxu0 0
        %3685 = vmatprep.mubr.bf16.mxu0 0
        %3686 = vmatmul.mubr.bf16.gmra.mrb[0].mxu0 %v3395
        %v3687 = vpop.f32.mrb[0].mxu0
        %v3688 = vadd.f32 %v3411, %v3687
        %v3689 = vpop.f32.mrb[0].mxu0
        %v3690 = vadd.f32 %v3415, %v3689
        %v3691 = vpop.f32.mrb[0].mxu0
        %v3692 = vadd.f32 %v3411, %v3691
        %v3693 = vpop.f32.mrb[0].mxu0
        %v3694 = vadd.f32 %v3415, %v3693
        %3695 = vmatprep.mubr.bf16.mxu0 0
        %3696 = vmatmul.mubr.bf16.gmra.mrb[0].mxu0 %v3396
        %v3697 = vpop.f32.mrb[0].mxu0
        %v3698 = vadd.f32 %v3411, %v3697
        %v3699 = vpop.f32.mrb[0].mxu0
        %v3700 = vadd.f32 %v3415, %v3699
        %v3701 = vpop.f32.mrb[0].mxu0
        %v3702 = vadd.f32 %v3411, %v3701
        %v3703 = vpop.f32.mrb[0].mxu0
        %v3704 = vadd.f32 %v3415, %v3703
        %3705 = vmatprep.mubr.bf16.mxu0 0
        %3706 = vmatmul.mubr.bf16.gmra.mrb[0].mxu0 %v3397
        %v3707 = vpop.f32.mrb[0].mxu0
        %v3708 = vadd.f32 %v3411, %v3707
        %v3709 = vpop.f32.mrb[0].mxu0
        %v3710 = vadd.f32 %v3415, %v3709
        %v3711 = vpop.f32.mrb[0].mxu0
        %v3712 = vadd.f32 %v3411, %v3711
        %v3713 = vpop.f32.mrb[0].mxu0
        %v3714 = vadd.f32 %v3415, %v3713
        %3715 = vmatprep.mubr.bf16.mxu0 0
        %3716 = vmatmul.mubr.bf16.gmra.mrb[0].mxu0 %v3398
        %v3717 = vpop.f32.mrb[0].mxu0
        %v3718 = vadd.f32 %v3411, %v3717
        %v3719 = vpop.f32.mrb[0].mxu0
        %v3720 = vadd.f32 %v3415, %v3719
        %v3721 = vpop.f32.mrb[0].mxu0
        %v3722 = vadd.f32 %v3411, %v3721
        %v3723 = vpop.f32.mrb[0].mxu0
        %v3724 = vadd.f32 %v3415, %v3723
        %3725 = vdwg.mxu0
        %3726 = vst [vmem:[#allocation2] sm:$0xff] %v3615
        %3727 = vst [vmem:[#allocation2 + $0x8] sm:$0xff] %v3617
        %3728 = vst [vmem:[#allocation2 + $0x10] sm:$0xff] %v3688
        %3729 = vst [vmem:[#allocation2 + $0x18] sm:$0xff] %v3690
        %3730 = vst [vmem:[#allocation2 + $0x20] sm:$0xff] %v3619
        %3731 = vst [vmem:[#allocation2 + $0x28] sm:$0xff] %v3621
        %3732 = vst [vmem:[#allocation2 + $0x30] sm:$0xff] %v3692
        %3733 = vst [vmem:[#allocation2 + $0x38] sm:$0xff] %v3694
        %3734 = vst [vmem:[#allocation2 + $0x40] sm:$0xff] %v3625
        %3735 = vst [vmem:[#allocation2 + $0x48] sm:$0xff] %v3627
        %3736 = vst [vmem:[#allocation2 + $0x50] sm:$0xff] %v3698
        %3737 = vst [vmem:[#allocation2 + $0x58] sm:$0xff] %v3700
        %3738 = vst [vmem:[#allocation2 + $0x60] sm:$0xff] %v3629
        %3739 = vst [vmem:[#allocation2 + $0x68] sm:$0xff] %v3631
        %3740 = vst [vmem:[#allocation2 + $0x70] sm:$0xff] %v3702
        %3741 = vst [vmem:[#allocation2 + $0x78] sm:$0xff] %v3704
        %3742 = vst [vmem:[#allocation2 + $0x80] sm:$0xff] %v3635
        %3743 = vst [vmem:[#allocation2 + $0x88] sm:$0xff] %v3637
        %3744 = vst [vmem:[#allocation2 + $0x90] sm:$0xff] %v3708
        %3745 = vst [vmem:[#allocation2 + $0x98] sm:$0xff] %v3710
        %3746 = vst [vmem:[#allocation2 + $0xa0] sm:$0xff] %v3639
        %3747 = vst [vmem:[#allocation2 + $0xa8] sm:$0xff] %v3641
        %3748 = vst [vmem:[#allocation2 + $0xb0] sm:$0xff] %v3712
        %3749 = vst [vmem:[#allocation2 + $0xb8] sm:$0xff] %v3714
        %3750 = vst [vmem:[#allocation2 + $0xc0] sm:$0xff] %v3645
        %3751 = vst [vmem:[#allocation2 + $0xc8] sm:$0xff] %v3647
        %3752 = vst [vmem:[#allocation2 + $0xd0] sm:$0xff] %v3718
        %3753 = vst [vmem:[#allocation2 + $0xd8] sm:$0xff] %v3720
        %3754 = vst [vmem:[#allocation2 + $0xe0] sm:$0xff] %v3649
        %3755 = vst [vmem:[#allocation2 + $0xe8] sm:$0xff] %v3651
        %3756 = vst [vmem:[#allocation2 + $0xf0] sm:$0xff] %v3722
        %3757 = vst [vmem:[#allocation2 + $0xf8] sm:$0xff] %v3724
        %v3758 = vld [vmem:[#allocation2] sm:$0xff]
        %v3759 = vld [vmem:[#allocation2 + $0x8] sm:$0xff]
        %v3760 = vld [vmem:[#allocation2 + $0x10] sm:$0xff]
        %v3761 = vld [vmem:[#allocation2 + $0x18] sm:$0xff]
        %v3794 = vunpack.c.l.b16 %v3354
        %v3795 = vunpack.c.h.b16 %v3354
        %v3796 = vunpack.c.l.b16 %v3355
        %v3797 = vunpack.c.h.b16 %v3355
        %v3798 = vunpack.c.l.b16 %v3356
        %v3799 = vunpack.c.h.b16 %v3356
        %v3800 = vunpack.c.l.b16 %v3357
        %v3801 = vunpack.c.h.b16 %v3357
        %v3802 = vunpack.c.l.b16 %v3358
        %v3803 = vunpack.c.h.b16 %v3358
        %v3804 = vunpack.c.l.b16 %v3359
        %v3805 = vunpack.c.h.b16 %v3359
        %v3806 = vunpack.c.l.b16 %v3360
        %v3807 = vunpack.c.h.b16 %v3360
        %v3808 = vunpack.c.l.b16 %v3361
        %v3809 = vunpack.c.h.b16 %v3361
        %v3810 = vunpack.c.l.b16 %v3362
        %v3811 = vunpack.c.h.b16 %v3362
        %v3812 = vunpack.c.l.b16 %v3363
        %v3813 = vunpack.c.h.b16 %v3363
        %v3814 = vunpack.c.l.b16 %v3364
        %v3815 = vunpack.c.h.b16 %v3364
        %v3816 = vunpack.c.l.b16 %v3365
        %v3817 = vunpack.c.h.b16 %v3365
        %v3818 = vunpack.c.l.b16 %v3366
        %v3819 = vunpack.c.h.b16 %v3366
        %v3820 = vunpack.c.l.b16 %v3367
        %v3821 = vunpack.c.h.b16 %v3367
        %v3822 = vunpack.c.l.b16 %v3368
        %v3823 = vunpack.c.h.b16 %v3368
        %v3824 = vunpack.c.l.b16 %v3369
        %v3825 = vunpack.c.h.b16 %v3369
        %v3826 = vunpack.c.l.b16 %v3370
        %v3827 = vunpack.c.h.b16 %v3370
        %v3828 = vunpack.c.l.b16 %v3371
        %v3829 = vunpack.c.h.b16 %v3371
        %v3830 = vunpack.c.l.b16 %v3372
        %v3831 = vunpack.c.h.b16 %v3372
        %v3832 = vunpack.c.l.b16 %v3373
        %v3833 = vunpack.c.h.b16 %v3373
        %v3834 = vunpack.c.l.b16 %v3374
        %v3835 = vunpack.c.h.b16 %v3374
        %v3836 = vunpack.c.l.b16 %v3375
        %v3837 = vunpack.c.h.b16 %v3375
        %v3838 = vunpack.c.l.b16 %v3376
        %v3839 = vunpack.c.h.b16 %v3376
        %v3840 = vunpack.c.l.b16 %v3377
        %v3841 = vunpack.c.h.b16 %v3377
        %v3842 = vunpack.c.l.b16 %v3378
        %v3843 = vunpack.c.h.b16 %v3378
        %v3844 = vunpack.c.l.b16 %v3379
        %v3845 = vunpack.c.h.b16 %v3379
        %v3846 = vunpack.c.l.b16 %v3380
        %v3847 = vunpack.c.h.b16 %v3380
        %v3848 = vunpack.c.l.b16 %v3381
        %v3849 = vunpack.c.h.b16 %v3381
        %v3850 = vunpack.c.l.b16 %v3382
        %v3851 = vunpack.c.h.b16 %v3382
        %v3852 = vunpack.c.l.b16 %v3383
        %v3853 = vunpack.c.h.b16 %v3383
        %v3854 = vunpack.c.l.b16 %v3384
        %v3855 = vunpack.c.h.b16 %v3384
        %v3856 = vunpack.c.l.b16 %v3385
        %v3857 = vunpack.c.h.b16 %v3385
        %v3858 = vpack.c.b16 %v3798, %v3794
        %v3859 = vpack.c.b16 %v3799, %v3795
        %v3860 = vpack.c.b16 %v3800, %v3796
        %v3861 = vpack.c.b16 %v3801, %v3797
        %v3862 = vpack.c.b16 %v3806, %v3802
        %v3863 = vpack.c.b16 %v3807, %v3803
        %v3864 = vpack.c.b16 %v3808, %v3804
        %v3865 = vpack.c.b16 %v3809, %v3805
        %v3866 = vpack.c.b16 %v3814, %v3810
        %v3867 = vpack.c.b16 %v3815, %v3811
        %v3868 = vpack.c.b16 %v3816, %v3812
        %v3869 = vpack.c.b16 %v3817, %v3813
        %v3870 = vpack.c.b16 %v3822, %v3818
        %v3871 = vpack.c.b16 %v3823, %v3819
        %v3872 = vpack.c.b16 %v3824, %v3820
        %v3873 = vpack.c.b16 %v3825, %v3821
        %v3874 = vpack.c.b16 %v3830, %v3826
        %v3875 = vpack.c.b16 %v3831, %v3827
        %v3876 = vpack.c.b16 %v3832, %v3828
        %v3877 = vpack.c.b16 %v3833, %v3829
        %v3878 = vpack.c.b16 %v3838, %v3834
        %v3879 = vpack.c.b16 %v3839, %v3835
        %v3880 = vpack.c.b16 %v3840, %v3836
        %v3881 = vpack.c.b16 %v3841, %v3837
        %v3882 = vpack.c.b16 %v3846, %v3842
        %v3883 = vpack.c.b16 %v3847, %v3843
        %v3884 = vpack.c.b16 %v3848, %v3844
        %v3885 = vpack.c.b16 %v3849, %v3845
        %v3886 = vpack.c.b16 %v3854, %v3850
        %v3887 = vpack.c.b16 %v3855, %v3851
        %v3888 = vpack.c.b16 %v3856, %v3852
        %v3889 = vpack.c.b16 %v3857, %v3853
        %3922 = vmatprep.subr.bf16.mxu0 %v3859
        %3923 = vmatpush1.bf16.msra.mxu0 %v3858
        %3924 = vmatprep.subr.bf16.mxu0 %v3863
        %3925 = vmatpush1.bf16.msra.mxu0 %v3862
        %3926 = vmatprep.subr.bf16.mxu0 %v3867
        %3927 = vmatpush1.bf16.msra.mxu0 %v3866
        %3928 = vmatprep.subr.bf16.mxu0 %v3871
        %3929 = vmatpush1.bf16.msra.mxu0 %v3870
        %3930 = vmatprep.subr.bf16.mxu0 %v3875
        %3931 = vmatpush1.bf16.msra.mxu0 %v3874
        %3932 = vmatprep.subr.bf16.mxu0 %v3879
        %3933 = vmatpush1.bf16.msra.mxu0 %v3878
        %3934 = vmatprep.subr.bf16.mxu0 %v3883
        %3935 = vmatpush1.bf16.msra.mxu0 %v3882
        %3936 = vmatprep.subr.bf16.mxu0 %v3887
        %3937 = vmatpush1.bf16.msra.mxu0 %v3886
        %3938 = vmatprep.subr.bf16.mxu0 0
        %3939 = vmatpush1.bf16.msra.mxu0 0
        %3940 = vmatprep.subr.bf16.mxu0 0
        %3941 = vmatpush1.bf16.msra.mxu0 0
        %3942 = vmatprep.subr.bf16.mxu0 0
        %3943 = vmatpush1.bf16.msra.mxu0 0
        %3944 = vmatprep.subr.bf16.mxu0 0
        %3945 = vmatpush1.bf16.msra.mxu0 0
        %3946 = vmatprep.subr.bf16.mxu0 0
        %3947 = vmatpush1.bf16.msra.mxu0 0
        %3948 = vmatprep.subr.bf16.mxu0 0
        %3949 = vmatpush1.bf16.msra.mxu0 0
        %3950 = vmatprep.subr.bf16.mxu0 0
        %3951 = vmatpush1.bf16.msra.mxu0 0
        %3952 = vmatprep.subr.bf16.mxu0 0
        %3953 = vmatpush1.bf16.msra.mxu0 0
        %3954 = vmatprep.mubr.bf16.mxu0 0
        %3955 = vmatmul.mubr.bf16.gmra.mrb[0].mxu0 0
        %v3956 = vpop.f32.mrb[0].mxu0
        %v3957 = vadd.f32 0.0, %v3956
        %v3958 = vpop.f32.mrb[0].mxu0
        %v3959 = vadd.f32 0.0, %v3958
        %v3960 = vpop.f32.mrb[0].mxu0
        %v3961 = vpop.f32.mrb[0].mxu0
        %3962 = vdwg.mxu0
        %3963 = vmatprep.subr.bf16.mxu0 %v3861
        %3964 = vmatpush1.bf16.msra.mxu0 %v3860
        %3965 = vmatprep.subr.bf16.mxu0 %v3865
        %3966 = vmatpush1.bf16.msra.mxu0 %v3864
        %3967 = vmatprep.subr.bf16.mxu0 %v3869
        %3968 = vmatpush1.bf16.msra.mxu0 %v3868
        %3969 = vmatprep.subr.bf16.mxu0 %v3873
        %3970 = vmatpush1.bf16.msra.mxu0 %v3872
        %3971 = vmatprep.subr.bf16.mxu0 %v3877
        %3972 = vmatpush1.bf16.msra.mxu0 %v3876
        %3973 = vmatprep.subr.bf16.mxu0 %v3881
        %3974 = vmatpush1.bf16.msra.mxu0 %v3880
        %3975 = vmatprep.subr.bf16.mxu0 %v3885
        %3976 = vmatpush1.bf16.msra.mxu0 %v3884
        %3977 = vmatprep.subr.bf16.mxu0 %v3889
        %3978 = vmatpush1.bf16.msra.mxu0 %v3888
        %3979 = vmatprep.subr.bf16.mxu0 0
        %3980 = vmatpush1.bf16.msra.mxu0 0
        %3981 = vmatprep.subr.bf16.mxu0 0
        %3982 = vmatpush1.bf16.msra.mxu0 0
        %3983 = vmatprep.subr.bf16.mxu0 0
        %3984 = vmatpush1.bf16.msra.mxu0 0
        %3985 = vmatprep.subr.bf16.mxu0 0
        %3986 = vmatpush1.bf16.msra.mxu0 0
        %3987 = vmatprep.subr.bf16.mxu0 0
        %3988 = vmatpush1.bf16.msra.mxu0 0
        %3989 = vmatprep.subr.bf16.mxu0 0
        %3990 = vmatpush1.bf16.msra.mxu0 0
        %3991 = vmatprep.subr.bf16.mxu0 0
        %3992 = vmatpush1.bf16.msra.mxu0 0
        %3993 = vmatprep.subr.bf16.mxu0 0
        %3994 = vmatpush1.bf16.msra.mxu0 0
        %3995 = vmatprep.mubr.bf16.mxu0 0
        %3996 = vmatmul.mubr.bf16.gmra.mrb[0].mxu0 0
        %v3997 = vpop.f32.mrb[0].mxu0
        %v3998 = vadd.f32 0.0, %v3997
        %v3999 = vpop.f32.mrb[0].mxu0
        %v4000 = vadd.f32 0.0, %v3999
        %v4001 = vpop.f32.mrb[0].mxu0
        %v4002 = vpop.f32.mrb[0].mxu0
        %4003 = vdwg.mxu0
        %v4004 = vadd.f32 %v3758, %v3957
        %v4005 = vadd.f32 %v3759, %v3959
        %v4006 = vadd.f32 %v3760, %v3998
        %v4007 = vadd.f32 %v3761, %v4000
        %v4008 = vsub.f32 0.0, %v4004
        %v4009 = vsub.f32 0.0, %v4005
        %v4010 = vsub.f32 0.0, %v4006
        %v4011 = vmul.f32 %v4008, 1.442695
        %v4012 = vpow.pop %v4011
        %v4013 = vmul.f32 %v4009, 1.442695
        %v4014 = vpow.pop %v4013
        %v4015 = vmul.f32 %v4010, 1.442695
        %v4016 = vpow.pop %v4015
        %v4017 = vadd.f32 %v4012, 1.0
        %v4018 = vadd.f32 %v4014, 1.0
        %v4019 = vadd.f32 %v4016, 1.0
        %v4020 = vrcp.pop %v4017
        %v4021 = vrcp.pop %v4018
        %v4022 = vrcp.pop %v4019
        %v4023 = vtanh.pop %v4007
        %v4024 = vmul.f32 %v4021, 0.0
        %v4025 = vmul.f32 %v4020, %v4023
        %v4026 = vadd.f32 %v4024, %v4025
        %v4027 = vtanh.pop %v4026
        %v4028 = vmul.f32 %v4022, %v4027
        %4029 = vst [vmem:[%s463] sm:$0xff] %v4028
        %v4030 = vld [vmem:[%s1018] sm:$0xff]
        %v4031 = vld [vmem:[%s1018 + $0x8] sm:$0xff]
        %v4032 = vld [vmem:[%s1018 + $0x10] sm:$0xff]
        %v4033 = vld [vmem:[%s1018 + $0x18] sm:$0xff]
        %v4034 = vpack.c.bf16 %v4028, %v4028
        %4035 = vmatprep.subr.bf16.mxu0 %v3859
        %4036 = vmatpush1.bf16.msra.mxu0 %v3858
        %4037 = vmatprep.subr.bf16.mxu0 %v3863
        %4038 = vmatpush1.bf16.msra.mxu0 %v3862
        %4039 = vmatprep.subr.bf16.mxu0 %v3867
        %4040 = vmatpush1.bf16.msra.mxu0 %v3866
        %4041 = vmatprep.subr.bf16.mxu0 %v3871
        %4042 = vmatpush1.bf16.msra.mxu0 %v3870
        %4043 = vmatprep.subr.bf16.mxu0 %v3875
        %4044 = vmatpush1.bf16.msra.mxu0 %v3874
        %4045 = vmatprep.subr.bf16.mxu0 %v3879
        %4046 = vmatpush1.bf16.msra.mxu0 %v3878
        %4047 = vmatprep.subr.bf16.mxu0 %v3883
        %4048 = vmatpush1.bf16.msra.mxu0 %v3882
        %4049 = vmatprep.subr.bf16.mxu0 %v3887
        %4050 = vmatpush1.bf16.msra.mxu0 %v3886
        %4051 = vmatprep.subr.bf16.mxu0 0
        %4052 = vmatpush1.bf16.msra.mxu0 0
        %4053 = vmatprep.subr.bf16.mxu0 0
        %4054 = vmatpush1.bf16.msra.mxu0 0
        %4055 = vmatprep.subr.bf16.mxu0 0
        %4056 = vmatpush1.bf16.msra.mxu0 0
        %4057 = vmatprep.subr.bf16.mxu0 0
        %4058 = vmatpush1.bf16.msra.mxu0 0
        %4059 = vmatprep.subr.bf16.mxu0 0
        %4060 = vmatpush1.bf16.msra.mxu0 0
        %4061 = vmatprep.subr.bf16.mxu0 0
        %4062 = vmatpush1.bf16.msra.mxu0 0
        %4063 = vmatprep.subr.bf16.mxu0 0
        %4064 = vmatpush1.bf16.msra.mxu0 0
        %4065 = vmatprep.subr.bf16.mxu0 0
        %4066 = vmatpush1.bf16.msra.mxu0 0
        %4067 = vmatprep.mubr.bf16.mxu0 0
        %4068 = vmatmul.mubr.bf16.gmra.mrb[0].mxu0 %v4034
        %v4069 = vpop.f32.mrb[0].mxu0
        %v4070 = vadd.f32 0.0, %v4069
        %v4071 = vpop.f32.mrb[0].mxu0
        %v4072 = vadd.f32 0.0, %v4071
        %v4073 = vpop.f32.mrb[0].mxu0
        %v4074 = vpop.f32.mrb[0].mxu0
        %4075 = vdwg.mxu0
        %4076 = vmatprep.subr.bf16.mxu0 %v3861
        %4077 = vmatpush1.bf16.msra.mxu0 %v3860
        %4078 = vmatprep.subr.bf16.mxu0 %v3865
        %4079 = vmatpush1.bf16.msra.mxu0 %v3864
        %4080 = vmatprep.subr.bf16.mxu0 %v3869
        %4081 = vmatpush1.bf16.msra.mxu0 %v3868
        %4082 = vmatprep.subr.bf16.mxu0 %v3873
        %4083 = vmatpush1.bf16.msra.mxu0 %v3872
        %4084 = vmatprep.subr.bf16.mxu0 %v3877
        %4085 = vmatpush1.bf16.msra.mxu0 %v3876
        %4086 = vmatprep.subr.bf16.mxu0 %v3881
        %4087 = vmatpush1.bf16.msra.mxu0 %v3880
        %4088 = vmatprep.subr.bf16.mxu0 %v3885
        %4089 = vmatpush1.bf16.msra.mxu0 %v3884
        %4090 = vmatprep.subr.bf16.mxu0 %v3889
        %4091 = vmatpush1.bf16.msra.mxu0 %v3888
        %4092 = vmatprep.subr.bf16.mxu0 0
        %4093 = vmatpush1.bf16.msra.mxu0 0
        %4094 = vmatprep.subr.bf16.mxu0 0
        %4095 = vmatpush1.bf16.msra.mxu0 0
        %4096 = vmatprep.subr.bf16.mxu0 0
        %4097 = vmatpush1.bf16.msra.mxu0 0
        %4098 = vmatprep.subr.bf16.mxu0 0
        %4099 = vmatpush1.bf16.msra.mxu0 0
        %4100 = vmatprep.subr.bf16.mxu0 0
        %4101 = vmatpush1.bf16.msra.mxu0 0
        %4102 = vmatprep.subr.bf16.mxu0 0
        %4103 = vmatpush1.bf16.msra.mxu0 0
        %4104 = vmatprep.subr.bf16.mxu0 0
        %4105 = vmatpush1.bf16.msra.mxu0 0
        %4106 = vmatprep.subr.bf16.mxu0 0
        %4107 = vmatpush1.bf16.msra.mxu0 0
        %4108 = vmatprep.mubr.bf16.mxu0 0
        %4109 = vmatmul.mubr.bf16.gmra.mrb[0].mxu0 %v4034
        %v4110 = vpop.f32.mrb[0].mxu0
        %v4111 = vadd.f32 0.0, %v4110
        %v4112 = vpop.f32.mrb[0].mxu0
        %v4113 = vadd.f32 0.0, %v4112
        %v4114 = vpop.f32.mrb[0].mxu0
        %v4115 = vpop.f32.mrb[0].mxu0
        %4116 = vdwg.mxu0
        %v4117 = vadd.f32 %v4030, %v4070
        %v4118 = vadd.f32 %v4031, %v4072
        %v4119 = vadd.f32 %v4032, %v4111
        %v4120 = vadd.f32 %v4033, %v4113
        %v4121 = vsub.f32 0.0, %v4117
        %v4122 = vsub.f32 0.0, %v4118
        %v4123 = vsub.f32 0.0, %v4119
        %v4124 = vmul.f32 %v4121, 1.442695
        %v4125 = vpow.pop %v4124
        %v4126 = vmul.f32 %v4122, 1.442695
        %v4127 = vpow.pop %v4126
        %v4128 = vmul.f32 %v4123, 1.442695
        %v4129 = vpow.pop %v4128
        %v4130 = vadd.f32 %v4125, 1.0
        %v4131 = vadd.f32 %v4127, 1.0
        %v4132 = vadd.f32 %v4129, 1.0
        %v4133 = vrcp.pop %v4130
        %v4134 = vrcp.pop %v4131
        %v4135 = vrcp.pop %v4132
        %v4136 = vtanh.pop %v4120
        %v4137 = vmul.f32 %v4134, %v4026
        %v4138 = vmul.f32 %v4133, %v4136
        %v4139 = vadd.f32 %v4137, %v4138
        %v4140 = vtanh.pop %v4139
        %v4141 = vmul.f32 %v4135, %v4140
        %s4142 = scalar_lea.vmem %s463, 8 [#allocation16]
        %4143 = vst [vmem:[%s4142] sm:$0xff] %v4141
        %v4144 = vld [vmem:[%s1133] sm:$0xff]
        %v4145 = vld [vmem:[%s1133 + $0x8] sm:$0xff]
        %v4146 = vld [vmem:[%s1133 + $0x10] sm:$0xff]
        %v4147 = vld [vmem:[%s1133 + $0x18] sm:$0xff]
        %v4148 = vpack.c.bf16 %v4141, %v4141
        %4149 = vmatprep.subr.bf16.mxu0 %v3859
        %4150 = vmatpush1.bf16.msra.mxu0 %v3858
        %4151 = vmatprep.subr.bf16.mxu0 %v3863
        %4152 = vmatpush1.bf16.msra.mxu0 %v3862
        %4153 = vmatprep.subr.bf16.mxu0 %v3867
        %4154 = vmatpush1.bf16.msra.mxu0 %v3866
        %4155 = vmatprep.subr.bf16.mxu0 %v3871
        %4156 = vmatpush1.bf16.msra.mxu0 %v3870
        %4157 = vmatprep.subr.bf16.mxu0 %v3875
        %4158 = vmatpush1.bf16.msra.mxu0 %v3874
        %4159 = vmatprep.subr.bf16.mxu0 %v3879
        %4160 = vmatpush1.bf16.msra.mxu0 %v3878
        %4161 = vmatprep.subr.bf16.mxu0 %v3883
        %4162 = vmatpush1.bf16.msra.mxu0 %v3882
        %4163 = vmatprep.subr.bf16.mxu0 %v3887
        %4164 = vmatpush1.bf16.msra.mxu0 %v3886
        %4165 = vmatprep.subr.bf16.mxu0 0
        %4166 = vmatpush1.bf16.msra.mxu0 0
        %4167 = vmatprep.subr.bf16.mxu0 0
        %4168 = vmatpush1.bf16.msra.mxu0 0
        %4169 = vmatprep.subr.bf16.mxu0 0
        %4170 = vmatpush1.bf16.msra.mxu0 0
        %4171 = vmatprep.subr.bf16.mxu0 0
        %4172 = vmatpush1.bf16.msra.mxu0 0
        %4173 = vmatprep.subr.bf16.mxu0 0
        %4174 = vmatpush1.bf16.msra.mxu0 0
        %4175 = vmatprep.subr.bf16.mxu0 0
        %4176 = vmatpush1.bf16.msra.mxu0 0
        %4177 = vmatprep.subr.bf16.mxu0 0
        %4178 = vmatpush1.bf16.msra.mxu0 0
        %4179 = vmatprep.subr.bf16.mxu0 0
        %4180 = vmatpush1.bf16.msra.mxu0 0
        %4181 = vmatprep.mubr.bf16.mxu0 0
        %4182 = vmatmul.mubr.bf16.gmra.mrb[0].mxu0 %v4148
        %v4183 = vpop.f32.mrb[0].mxu0
        %v4184 = vadd.f32 0.0, %v4183
        %v4185 = vpop.f32.mrb[0].mxu0
        %v4186 = vadd.f32 0.0, %v4185
        %v4187 = vpop.f32.mrb[0].mxu0
        %v4188 = vpop.f32.mrb[0].mxu0
        %4189 = vdwg.mxu0
        %4190 = vmatprep.subr.bf16.mxu0 %v3861
        %4191 = vmatpush1.bf16.msra.mxu0 %v3860
        %4192 = vmatprep.subr.bf16.mxu0 %v3865
        %4193 = vmatpush1.bf16.msra.mxu0 %v3864
        %4194 = vmatprep.subr.bf16.mxu0 %v3869
        %4195 = vmatpush1.bf16.msra.mxu0 %v3868
        %4196 = vmatprep.subr.bf16.mxu0 %v3873
        %4197 = vmatpush1.bf16.msra.mxu0 %v3872
        %4198 = vmatprep.subr.bf16.mxu0 %v3877
        %4199 = vmatpush1.bf16.msra.mxu0 %v3876
        %4200 = vmatprep.subr.bf16.mxu0 %v3881
        %4201 = vmatpush1.bf16.msra.mxu0 %v3880
        %4202 = vmatprep.subr.bf16.mxu0 %v3885
        %4203 = vmatpush1.bf16.msra.mxu0 %v3884
        %4204 = vmatprep.subr.bf16.mxu0 %v3889
        %4205 = vmatpush1.bf16.msra.mxu0 %v3888
        %4206 = vmatprep.subr.bf16.mxu0 0
        %4207 = vmatpush1.bf16.msra.mxu0 0
        %4208 = vmatprep.subr.bf16.mxu0 0
        %4209 = vmatpush1.bf16.msra.mxu0 0
        %4210 = vmatprep.subr.bf16.mxu0 0
        %4211 = vmatpush1.bf16.msra.mxu0 0
        %4212 = vmatprep.subr.bf16.mxu0 0
        %4213 = vmatpush1.bf16.msra.mxu0 0
        %4214 = vmatprep.subr.bf16.mxu0 0
        %4215 = vmatpush1.bf16.msra.mxu0 0
        %4216 = vmatprep.subr.bf16.mxu0 0
        %4217 = vmatpush1.bf16.msra.mxu0 0
        %4218 = vmatprep.subr.bf16.mxu0 0
        %4219 = vmatpush1.bf16.msra.mxu0 0
        %4220 = vmatprep.subr.bf16.mxu0 0
        %4221 = vmatpush1.bf16.msra.mxu0 0
        %4222 = vmatprep.mubr.bf16.mxu0 0
        %4223 = vmatmul.mubr.bf16.gmra.mrb[0].mxu0 %v4148
        %v4224 = vpop.f32.mrb[0].mxu0
        %v4225 = vadd.f32 0.0, %v4224
        %v4226 = vpop.f32.mrb[0].mxu0
        %v4227 = vadd.f32 0.0, %v4226
        %v4228 = vpop.f32.mrb[0].mxu0
        %v4229 = vpop.f32.mrb[0].mxu0
        %4230 = vdwg.mxu0
        %v4231 = vadd.f32 %v4144, %v4184
        %v4232 = vadd.f32 %v4145, %v4186
        %v4233 = vadd.f32 %v4146, %v4225
        %v4234 = vadd.f32 %v4147, %v4227
        %v4235 = vsub.f32 0.0, %v4231
        %v4236 = vsub.f32 0.0, %v4232
        %v4237 = vsub.f32 0.0, %v4233
        %v4238 = vmul.f32 %v4235, 1.442695
        %v4239 = vpow.pop %v4238
        %v4240 = vmul.f32 %v4236, 1.442695
        %v4241 = vpow.pop %v4240
        %v4242 = vmul.f32 %v4237, 1.442695
        %v4243 = vpow.pop %v4242
        %v4244 = vadd.f32 %v4239, 1.0
        %v4245 = vadd.f32 %v4241, 1.0
        %v4246 = vadd.f32 %v4243, 1.0
        %v4247 = vrcp.pop %v4244
        %v4248 = vrcp.pop %v4245
        %v4249 = vrcp.pop %v4246
        %v4250 = vtanh.pop %v4234
        %v4251 = vmul.f32 %v4248, %v4139
        %v4252 = vmul.f32 %v4247, %v4250
        %v4253 = vadd.f32 %v4251, %v4252
        %v4254 = vtanh.pop %v4253
        %v4255 = vmul.f32 %v4249, %v4254
        %s4256 = scalar_lea.vmem %s463, 16 [#allocation16]
        %4257 = vst [vmem:[%s4256] sm:$0xff] %v4255
        %v4258 = vld [vmem:[%s1248] sm:$0xff]
        %v4259 = vld [vmem:[%s1248 + $0x8] sm:$0xff]
        %v4260 = vld [vmem:[%s1248 + $0x10] sm:$0xff]
        %v4261 = vld [vmem:[%s1248 + $0x18] sm:$0xff]
        %v4262 = vpack.c.bf16 %v4255, %v4255
        %4263 = vmatprep.subr.bf16.mxu0 %v3859
        %4264 = vmatpush1.bf16.msra.mxu0 %v3858
        %4265 = vmatprep.subr.bf16.mxu0 %v3863
        %4266 = vmatpush1.bf16.msra.mxu0 %v3862
        %4267 = vmatprep.subr.bf16.mxu0 %v3867
        %4268 = vmatpush1.bf16.msra.mxu0 %v3866
        %4269 = vmatprep.subr.bf16.mxu0 %v3871
        %4270 = vmatpush1.bf16.msra.mxu0 %v3870
        %4271 = vmatprep.subr.bf16.mxu0 %v3875
        %4272 = vmatpush1.bf16.msra.mxu0 %v3874
        %4273 = vmatprep.subr.bf16.mxu0 %v3879
        %4274 = vmatpush1.bf16.msra.mxu0 %v3878
        %4275 = vmatprep.subr.bf16.mxu0 %v3883
        %4276 = vmatpush1.bf16.msra.mxu0 %v3882
        %4277 = vmatprep.subr.bf16.mxu0 %v3887
        %4278 = vmatpush1.bf16.msra.mxu0 %v3886
        %4279 = vmatprep.subr.bf16.mxu0 0
        %4280 = vmatpush1.bf16.msra.mxu0 0
        %4281 = vmatprep.subr.bf16.mxu0 0
        %4282 = vmatpush1.bf16.msra.mxu0 0
        %4283 = vmatprep.subr.bf16.mxu0 0
        %4284 = vmatpush1.bf16.msra.mxu0 0
        %4285 = vmatprep.subr.bf16.mxu0 0
        %4286 = vmatpush1.bf16.msra.mxu0 0
        %4287 = vmatprep.subr.bf16.mxu0 0
        %4288 = vmatpush1.bf16.msra.mxu0 0
        %4289 = vmatprep.subr.bf16.mxu0 0
        %4290 = vmatpush1.bf16.msra.mxu0 0
        %4291 = vmatprep.subr.bf16.mxu0 0
        %4292 = vmatpush1.bf16.msra.mxu0 0
        %4293 = vmatprep.subr.bf16.mxu0 0
        %4294 = vmatpush1.bf16.msra.mxu0 0
        %4295 = vmatprep.mubr.bf16.mxu0 0
        %4296 = vmatmul.mubr.bf16.gmra.mrb[0].mxu0 %v4262
        %v4297 = vpop.f32.mrb[0].mxu0
        %v4298 = vadd.f32 0.0, %v4297
        %v4299 = vpop.f32.mrb[0].mxu0
        %v4300 = vadd.f32 0.0, %v4299
        %v4301 = vpop.f32.mrb[0].mxu0
        %v4302 = vpop.f32.mrb[0].mxu0
        %4303 = vdwg.mxu0
        %4304 = vmatprep.subr.bf16.mxu0 %v3861
        %4305 = vmatpush1.bf16.msra.mxu0 %v3860
        %4306 = vmatprep.subr.bf16.mxu0 %v3865
        %4307 = vmatpush1.bf16.msra.mxu0 %v3864
        %4308 = vmatprep.subr.bf16.mxu0 %v3869
        %4309 = vmatpush1.bf16.msra.mxu0 %v3868
        %4310 = vmatprep.subr.bf16.mxu0 %v3873
        %4311 = vmatpush1.bf16.msra.mxu0 %v3872
        %4312 = vmatprep.subr.bf16.mxu0 %v3877
        %4313 = vmatpush1.bf16.msra.mxu0 %v3876
        %4314 = vmatprep.subr.bf16.mxu0 %v3881
        %4315 = vmatpush1.bf16.msra.mxu0 %v3880
        %4316 = vmatprep.subr.bf16.mxu0 %v3885
        %4317 = vmatpush1.bf16.msra.mxu0 %v3884
        %4318 = vmatprep.subr.bf16.mxu0 %v3889
        %4319 = vmatpush1.bf16.msra.mxu0 %v3888
        %4320 = vmatprep.subr.bf16.mxu0 0
        %4321 = vmatpush1.bf16.msra.mxu0 0
        %4322 = vmatprep.subr.bf16.mxu0 0
        %4323 = vmatpush1.bf16.msra.mxu0 0
        %4324 = vmatprep.subr.bf16.mxu0 0
        %4325 = vmatpush1.bf16.msra.mxu0 0
        %4326 = vmatprep.subr.bf16.mxu0 0
        %4327 = vmatpush1.bf16.msra.mxu0 0
        %4328 = vmatprep.subr.bf16.mxu0 0
        %4329 = vmatpush1.bf16.msra.mxu0 0
        %4330 = vmatprep.subr.bf16.mxu0 0
        %4331 = vmatpush1.bf16.msra.mxu0 0
        %4332 = vmatprep.subr.bf16.mxu0 0
        %4333 = vmatpush1.bf16.msra.mxu0 0
        %4334 = vmatprep.subr.bf16.mxu0 0
        %4335 = vmatpush1.bf16.msra.mxu0 0
        %4336 = vmatprep.mubr.bf16.mxu0 0
        %4337 = vmatmul.mubr.bf16.gmra.mrb[0].mxu0 %v4262
        %v4338 = vpop.f32.mrb[0].mxu0
        %v4339 = vadd.f32 0.0, %v4338
        %v4340 = vpop.f32.mrb[0].mxu0
        %v4341 = vadd.f32 0.0, %v4340
        %v4342 = vpop.f32.mrb[0].mxu0
        %v4343 = vpop.f32.mrb[0].mxu0
        %4344 = vdwg.mxu0
        %v4345 = vadd.f32 %v4258, %v4298
        %v4346 = vadd.f32 %v4259, %v4300
        %v4347 = vadd.f32 %v4260, %v4339
        %v4348 = vadd.f32 %v4261, %v4341
        %v4349 = vsub.f32 0.0, %v4345
        %v4350 = vsub.f32 0.0, %v4346
        %v4351 = vsub.f32 0.0, %v4347
        %v4352 = vmul.f32 %v4349, 1.442695
        %v4353 = vpow.pop %v4352
        %v4354 = vmul.f32 %v4350, 1.442695
        %v4355 = vpow.pop %v4354
        %v4356 = vmul.f32 %v4351, 1.442695
        %v4357 = vpow.pop %v4356
        %v4358 = vadd.f32 %v4353, 1.0
        %v4359 = vadd.f32 %v4355, 1.0
        %v4360 = vadd.f32 %v4357, 1.0
        %v4361 = vrcp.pop %v4358
        %v4362 = vrcp.pop %v4359
        %v4363 = vrcp.pop %v4360
        %v4364 = vtanh.pop %v4348
        %v4365 = vmul.f32 %v4362, %v4253
        %v4366 = vmul.f32 %v4361, %v4364
        %v4367 = vadd.f32 %v4365, %v4366
        %v4368 = vtanh.pop %v4367
        %v4369 = vmul.f32 %v4363, %v4368
        %s4370 = scalar_lea.vmem %s463, 24 [#allocation16]
        %4371 = vst [vmem:[%s4370] sm:$0xff] %v4369
        %v4372 = vld [vmem:[%s1363] sm:$0xff]
        %v4373 = vld [vmem:[%s1363 + $0x8] sm:$0xff]
        %v4374 = vld [vmem:[%s1363 + $0x10] sm:$0xff]
        %v4375 = vld [vmem:[%s1363 + $0x18] sm:$0xff]
        %v4376 = vpack.c.bf16 %v4369, %v4369
        %4377 = vmatprep.subr.bf16.mxu0 %v3859
        %4378 = vmatpush1.bf16.msra.mxu0 %v3858
        %4379 = vmatprep.subr.bf16.mxu0 %v3863
        %4380 = vmatpush1.bf16.msra.mxu0 %v3862
        %4381 = vmatprep.subr.bf16.mxu0 %v3867
        %4382 = vmatpush1.bf16.msra.mxu0 %v3866
        %4383 = vmatprep.subr.bf16.mxu0 %v3871
        %4384 = vmatpush1.bf16.msra.mxu0 %v3870
        %4385 = vmatprep.subr.bf16.mxu0 %v3875
        %4386 = vmatpush1.bf16.msra.mxu0 %v3874
        %4387 = vmatprep.subr.bf16.mxu0 %v3879
        %4388 = vmatpush1.bf16.msra.mxu0 %v3878
        %4389 = vmatprep.subr.bf16.mxu0 %v3883
        %4390 = vmatpush1.bf16.msra.mxu0 %v3882
        %4391 = vmatprep.subr.bf16.mxu0 %v3887
        %4392 = vmatpush1.bf16.msra.mxu0 %v3886
        %4393 = vmatprep.subr.bf16.mxu0 0
        %4394 = vmatpush1.bf16.msra.mxu0 0
        %4395 = vmatprep.subr.bf16.mxu0 0
        %4396 = vmatpush1.bf16.msra.mxu0 0
        %4397 = vmatprep.subr.bf16.mxu0 0
        %4398 = vmatpush1.bf16.msra.mxu0 0
        %4399 = vmatprep.subr.bf16.mxu0 0
        %4400 = vmatpush1.bf16.msra.mxu0 0
        %4401 = vmatprep.subr.bf16.mxu0 0
        %4402 = vmatpush1.bf16.msra.mxu0 0
        %4403 = vmatprep.subr.bf16.mxu0 0
        %4404 = vmatpush1.bf16.msra.mxu0 0
        %4405 = vmatprep.subr.bf16.mxu0 0
        %4406 = vmatpush1.bf16.msra.mxu0 0
        %4407 = vmatprep.subr.bf16.mxu0 0
        %4408 = vmatpush1.bf16.msra.mxu0 0
        %4409 = vmatprep.mubr.bf16.mxu0 0
        %4410 = vmatmul.mubr.bf16.gmra.mrb[0].mxu0 %v4376
        %v4411 = vpop.f32.mrb[0].mxu0
        %v4412 = vadd.f32 0.0, %v4411
        %v4413 = vpop.f32.mrb[0].mxu0
        %v4414 = vadd.f32 0.0, %v4413
        %v4415 = vpop.f32.mrb[0].mxu0
        %v4416 = vpop.f32.mrb[0].mxu0
        %4417 = vdwg.mxu0
        %4418 = vmatprep.subr.bf16.mxu0 %v3861
        %4419 = vmatpush1.bf16.msra.mxu0 %v3860
        %4420 = vmatprep.subr.bf16.mxu0 %v3865
        %4421 = vmatpush1.bf16.msra.mxu0 %v3864
        %4422 = vmatprep.subr.bf16.mxu0 %v3869
        %4423 = vmatpush1.bf16.msra.mxu0 %v3868
        %4424 = vmatprep.subr.bf16.mxu0 %v3873
        %4425 = vmatpush1.bf16.msra.mxu0 %v3872
        %4426 = vmatprep.subr.bf16.mxu0 %v3877
        %4427 = vmatpush1.bf16.msra.mxu0 %v3876
        %4428 = vmatprep.subr.bf16.mxu0 %v3881
        %4429 = vmatpush1.bf16.msra.mxu0 %v3880
        %4430 = vmatprep.subr.bf16.mxu0 %v3885
        %4431 = vmatpush1.bf16.msra.mxu0 %v3884
        %4432 = vmatprep.subr.bf16.mxu0 %v3889
        %4433 = vmatpush1.bf16.msra.mxu0 %v3888
        %4434 = vmatprep.subr.bf16.mxu0 0
        %4435 = vmatpush1.bf16.msra.mxu0 0
        %4436 = vmatprep.subr.bf16.mxu0 0
        %4437 = vmatpush1.bf16.msra.mxu0 0
        %4438 = vmatprep.subr.bf16.mxu0 0
        %4439 = vmatpush1.bf16.msra.mxu0 0
        %4440 = vmatprep.subr.bf16.mxu0 0
        %4441 = vmatpush1.bf16.msra.mxu0 0
        %4442 = vmatprep.subr.bf16.mxu0 0
        %4443 = vmatpush1.bf16.msra.mxu0 0
        %4444 = vmatprep.subr.bf16.mxu0 0
        %4445 = vmatpush1.bf16.msra.mxu0 0
        %4446 = vmatprep.subr.bf16.mxu0 0
        %4447 = vmatpush1.bf16.msra.mxu0 0
        %4448 = vmatprep.subr.bf16.mxu0 0
        %4449 = vmatpush1.bf16.msra.mxu0 0
        %4450 = vmatprep.mubr.bf16.mxu0 0
        %4451 = vmatmul.mubr.bf16.gmra.mrb[0].mxu0 %v4376
        %v4452 = vpop.f32.mrb[0].mxu0
        %v4453 = vadd.f32 0.0, %v4452
        %v4454 = vpop.f32.mrb[0].mxu0
        %v4455 = vadd.f32 0.0, %v4454
        %v4456 = vpop.f32.mrb[0].mxu0
        %v4457 = vpop.f32.mrb[0].mxu0
        %4458 = vdwg.mxu0
        %v4459 = vadd.f32 %v4372, %v4412
        %v4460 = vadd.f32 %v4373, %v4414
        %v4461 = vadd.f32 %v4374, %v4453
        %v4462 = vadd.f32 %v4375, %v4455
        %v4463 = vsub.f32 0.0, %v4459
        %v4464 = vsub.f32 0.0, %v4460
        %v4465 = vsub.f32 0.0, %v4461
        %v4466 = vmul.f32 %v4463, 1.442695
        %v4467 = vpow.pop %v4466
        %v4468 = vmul.f32 %v4464, 1.442695
        %v4469 = vpow.pop %v4468
        %v4470 = vmul.f32 %v4465, 1.442695
        %v4471 = vpow.pop %v4470
        %v4472 = vadd.f32 %v4467, 1.0
        %v4473 = vadd.f32 %v4469, 1.0
        %v4474 = vadd.f32 %v4471, 1.0
        %v4475 = vrcp.pop %v4472
        %v4476 = vrcp.pop %v4473
        %v4477 = vrcp.pop %v4474
        %v4478 = vtanh.pop %v4462
        %v4479 = vmul.f32 %v4476, %v4367
        %v4480 = vmul.f32 %v4475, %v4478
        %v4481 = vadd.f32 %v4479, %v4480
        %v4482 = vtanh.pop %v4481
        %v4483 = vmul.f32 %v4477, %v4482
        %s4484 = scalar_lea.vmem %s463, 32 [#allocation16]
        %4485 = vst [vmem:[%s4484] sm:$0xff] %v4483
        %v4486 = vld [vmem:[%s1478] sm:$0xff]
        %v4487 = vld [vmem:[%s1478 + $0x8] sm:$0xff]
        %v4488 = vld [vmem:[%s1478 + $0x10] sm:$0xff]
        %v4489 = vld [vmem:[%s1478 + $0x18] sm:$0xff]
        %v4490 = vpack.c.bf16 %v4483, %v4483
        %4491 = vmatprep.subr.bf16.mxu0 %v3859
        %4492 = vmatpush1.bf16.msra.mxu0 %v3858
        %4493 = vmatprep.subr.bf16.mxu0 %v3863
        %4494 = vmatpush1.bf16.msra.mxu0 %v3862
        %4495 = vmatprep.subr.bf16.mxu0 %v3867
        %4496 = vmatpush1.bf16.msra.mxu0 %v3866
        %4497 = vmatprep.subr.bf16.mxu0 %v3871
        %4498 = vmatpush1.bf16.msra.mxu0 %v3870
        %4499 = vmatprep.subr.bf16.mxu0 %v3875
        %4500 = vmatpush1.bf16.msra.mxu0 %v3874
        %4501 = vmatprep.subr.bf16.mxu0 %v3879
        %4502 = vmatpush1.bf16.msra.mxu0 %v3878
        %4503 = vmatprep.subr.bf16.mxu0 %v3883
        %4504 = vmatpush1.bf16.msra.mxu0 %v3882
        %4505 = vmatprep.subr.bf16.mxu0 %v3887
        %4506 = vmatpush1.bf16.msra.mxu0 %v3886
        %4507 = vmatprep.subr.bf16.mxu0 0
        %4508 = vmatpush1.bf16.msra.mxu0 0
        %4509 = vmatprep.subr.bf16.mxu0 0
        %4510 = vmatpush1.bf16.msra.mxu0 0
        %4511 = vmatprep.subr.bf16.mxu0 0
        %4512 = vmatpush1.bf16.msra.mxu0 0
        %4513 = vmatprep.subr.bf16.mxu0 0
        %4514 = vmatpush1.bf16.msra.mxu0 0
        %4515 = vmatprep.subr.bf16.mxu0 0
        %4516 = vmatpush1.bf16.msra.mxu0 0
        %4517 = vmatprep.subr.bf16.mxu0 0
        %4518 = vmatpush1.bf16.msra.mxu0 0
        %4519 = vmatprep.subr.bf16.mxu0 0
        %4520 = vmatpush1.bf16.msra.mxu0 0
        %4521 = vmatprep.subr.bf16.mxu0 0
        %4522 = vmatpush1.bf16.msra.mxu0 0
        %4523 = vmatprep.mubr.bf16.mxu0 0
        %4524 = vmatmul.mubr.bf16.gmra.mrb[0].mxu0 %v4490
        %v4525 = vpop.f32.mrb[0].mxu0
        %v4526 = vadd.f32 0.0, %v4525
        %v4527 = vpop.f32.mrb[0].mxu0
        %v4528 = vadd.f32 0.0, %v4527
        %v4529 = vpop.f32.mrb[0].mxu0
        %v4530 = vpop.f32.mrb[0].mxu0
        %4531 = vdwg.mxu0
        %4532 = vmatprep.subr.bf16.mxu0 %v3861
        %4533 = vmatpush1.bf16.msra.mxu0 %v3860
        %4534 = vmatprep.subr.bf16.mxu0 %v3865
        %4535 = vmatpush1.bf16.msra.mxu0 %v3864
        %4536 = vmatprep.subr.bf16.mxu0 %v3869
        %4537 = vmatpush1.bf16.msra.mxu0 %v3868
        %4538 = vmatprep.subr.bf16.mxu0 %v3873
        %4539 = vmatpush1.bf16.msra.mxu0 %v3872
        %4540 = vmatprep.subr.bf16.mxu0 %v3877
        %4541 = vmatpush1.bf16.msra.mxu0 %v3876
        %4542 = vmatprep.subr.bf16.mxu0 %v3881
        %4543 = vmatpush1.bf16.msra.mxu0 %v3880
        %4544 = vmatprep.subr.bf16.mxu0 %v3885
        %4545 = vmatpush1.bf16.msra.mxu0 %v3884
        %4546 = vmatprep.subr.bf16.mxu0 %v3889
        %4547 = vmatpush1.bf16.msra.mxu0 %v3888
        %4548 = vmatprep.subr.bf16.mxu0 0
        %4549 = vmatpush1.bf16.msra.mxu0 0
        %4550 = vmatprep.subr.bf16.mxu0 0
        %4551 = vmatpush1.bf16.msra.mxu0 0
        %4552 = vmatprep.subr.bf16.mxu0 0
        %4553 = vmatpush1.bf16.msra.mxu0 0
        %4554 = vmatprep.subr.bf16.mxu0 0
        %4555 = vmatpush1.bf16.msra.mxu0 0
        %4556 = vmatprep.subr.bf16.mxu0 0
        %4557 = vmatpush1.bf16.msra.mxu0 0
        %4558 = vmatprep.subr.bf16.mxu0 0
        %4559 = vmatpush1.bf16.msra.mxu0 0
        %4560 = vmatprep.subr.bf16.mxu0 0
        %4561 = vmatpush1.bf16.msra.mxu0 0
        %4562 = vmatprep.subr.bf16.mxu0 0
        %4563 = vmatpush1.bf16.msra.mxu0 0
        %4564 = vmatprep.mubr.bf16.mxu0 0
        %4565 = vmatmul.mubr.bf16.gmra.mrb[0].mxu0 %v4490
        %v4566 = vpop.f32.mrb[0].mxu0
        %v4567 = vadd.f32 0.0, %v4566
        %v4568 = vpop.f32.mrb[0].mxu0
        %v4569 = vadd.f32 0.0, %v4568
        %v4570 = vpop.f32.mrb[0].mxu0
        %v4571 = vpop.f32.mrb[0].mxu0
        %4572 = vdwg.mxu0
        %v4573 = vadd.f32 %v4486, %v4526
        %v4574 = vadd.f32 %v4487, %v4528
        %v4575 = vadd.f32 %v4488, %v4567
        %v4576 = vadd.f32 %v4489, %v4569
        %v4577 = vsub.f32 0.0, %v4573
        %v4578 = vsub.f32 0.0, %v4574
        %v4579 = vsub.f32 0.0, %v4575
        %v4580 = vmul.f32 %v4577, 1.442695
        %v4581 = vpow.pop %v4580
        %v4582 = vmul.f32 %v4578, 1.442695
        %v4583 = vpow.pop %v4582
        %v4584 = vmul.f32 %v4579, 1.442695
        %v4585 = vpow.pop %v4584
        %v4586 = vadd.f32 %v4581, 1.0
        %v4587 = vadd.f32 %v4583, 1.0
        %v4588 = vadd.f32 %v4585, 1.0
        %v4589 = vrcp.pop %v4586
        %v4590 = vrcp.pop %v4587
        %v4591 = vrcp.pop %v4588
        %v4592 = vtanh.pop %v4576
        %v4593 = vmul.f32 %v4590, %v4481
        %v4594 = vmul.f32 %v4589, %v4592
        %v4595 = vadd.f32 %v4593, %v4594
        %v4596 = vtanh.pop %v4595
        %v4597 = vmul.f32 %v4591, %v4596
        %s4598 = scalar_lea.vmem %s463, 40 [#allocation16]
        %4599 = vst [vmem:[%s4598] sm:$0xff] %v4597
        %v4600 = vld [vmem:[%s1593] sm:$0xff]
        %v4601 = vld [vmem:[%s1593 + $0x8] sm:$0xff]
        %v4602 = vld [vmem:[%s1593 + $0x10] sm:$0xff]
        %v4603 = vld [vmem:[%s1593 + $0x18] sm:$0xff]
        %v4604 = vpack.c.bf16 %v4597, %v4597
        %4605 = vmatprep.subr.bf16.mxu0 %v3859
        %4606 = vmatpush1.bf16.msra.mxu0 %v3858
        %4607 = vmatprep.subr.bf16.mxu0 %v3863
        %4608 = vmatpush1.bf16.msra.mxu0 %v3862
        %4609 = vmatprep.subr.bf16.mxu0 %v3867
        %4610 = vmatpush1.bf16.msra.mxu0 %v3866
        %4611 = vmatprep.subr.bf16.mxu0 %v3871
        %4612 = vmatpush1.bf16.msra.mxu0 %v3870
        %4613 = vmatprep.subr.bf16.mxu0 %v3875
        %4614 = vmatpush1.bf16.msra.mxu0 %v3874
        %4615 = vmatprep.subr.bf16.mxu0 %v3879
        %4616 = vmatpush1.bf16.msra.mxu0 %v3878
        %4617 = vmatprep.subr.bf16.mxu0 %v3883
        %4618 = vmatpush1.bf16.msra.mxu0 %v3882
        %4619 = vmatprep.subr.bf16.mxu0 %v3887
        %4620 = vmatpush1.bf16.msra.mxu0 %v3886
        %4621 = vmatprep.subr.bf16.mxu0 0
        %4622 = vmatpush1.bf16.msra.mxu0 0
        %4623 = vmatprep.subr.bf16.mxu0 0
        %4624 = vmatpush1.bf16.msra.mxu0 0
        %4625 = vmatprep.subr.bf16.mxu0 0
        %4626 = vmatpush1.bf16.msra.mxu0 0
        %4627 = vmatprep.subr.bf16.mxu0 0
        %4628 = vmatpush1.bf16.msra.mxu0 0
        %4629 = vmatprep.subr.bf16.mxu0 0
        %4630 = vmatpush1.bf16.msra.mxu0 0
        %4631 = vmatprep.subr.bf16.mxu0 0
        %4632 = vmatpush1.bf16.msra.mxu0 0
        %4633 = vmatprep.subr.bf16.mxu0 0
        %4634 = vmatpush1.bf16.msra.mxu0 0
        %4635 = vmatprep.subr.bf16.mxu0 0
        %4636 = vmatpush1.bf16.msra.mxu0 0
        %4637 = vmatprep.mubr.bf16.mxu0 0
        %4638 = vmatmul.mubr.bf16.gmra.mrb[0].mxu0 %v4604
        %v4639 = vpop.f32.mrb[0].mxu0
        %v4640 = vadd.f32 0.0, %v4639
        %v4641 = vpop.f32.mrb[0].mxu0
        %v4642 = vadd.f32 0.0, %v4641
        %v4643 = vpop.f32.mrb[0].mxu0
        %v4644 = vpop.f32.mrb[0].mxu0
        %4645 = vdwg.mxu0
        %4646 = vmatprep.subr.bf16.mxu0 %v3861
        %4647 = vmatpush1.bf16.msra.mxu0 %v3860
        %4648 = vmatprep.subr.bf16.mxu0 %v3865
        %4649 = vmatpush1.bf16.msra.mxu0 %v3864
        %4650 = vmatprep.subr.bf16.mxu0 %v3869
        %4651 = vmatpush1.bf16.msra.mxu0 %v3868
        %4652 = vmatprep.subr.bf16.mxu0 %v3873
        %4653 = vmatpush1.bf16.msra.mxu0 %v3872
        %4654 = vmatprep.subr.bf16.mxu0 %v3877
        %4655 = vmatpush1.bf16.msra.mxu0 %v3876
        %4656 = vmatprep.subr.bf16.mxu0 %v3881
        %4657 = vmatpush1.bf16.msra.mxu0 %v3880
        %4658 = vmatprep.subr.bf16.mxu0 %v3885
        %4659 = vmatpush1.bf16.msra.mxu0 %v3884
        %4660 = vmatprep.subr.bf16.mxu0 %v3889
        %4661 = vmatpush1.bf16.msra.mxu0 %v3888
        %4662 = vmatprep.subr.bf16.mxu0 0
        %4663 = vmatpush1.bf16.msra.mxu0 0
        %4664 = vmatprep.subr.bf16.mxu0 0
        %4665 = vmatpush1.bf16.msra.mxu0 0
        %4666 = vmatprep.subr.bf16.mxu0 0
        %4667 = vmatpush1.bf16.msra.mxu0 0
        %4668 = vmatprep.subr.bf16.mxu0 0
        %4669 = vmatpush1.bf16.msra.mxu0 0
        %4670 = vmatprep.subr.bf16.mxu0 0
        %4671 = vmatpush1.bf16.msra.mxu0 0
        %4672 = vmatprep.subr.bf16.mxu0 0
        %4673 = vmatpush1.bf16.msra.mxu0 0
        %4674 = vmatprep.subr.bf16.mxu0 0
        %4675 = vmatpush1.bf16.msra.mxu0 0
        %4676 = vmatprep.subr.bf16.mxu0 0
        %4677 = vmatpush1.bf16.msra.mxu0 0
        %4678 = vmatprep.mubr.bf16.mxu0 0
        %4679 = vmatmul.mubr.bf16.gmra.mrb[0].mxu0 %v4604
        %v4680 = vpop.f32.mrb[0].mxu0
        %v4681 = vadd.f32 0.0, %v4680
        %v4682 = vpop.f32.mrb[0].mxu0
        %v4683 = vadd.f32 0.0, %v4682
        %v4684 = vpop.f32.mrb[0].mxu0
        %v4685 = vpop.f32.mrb[0].mxu0
        %4686 = vdwg.mxu0
        %v4687 = vadd.f32 %v4600, %v4640
        %v4688 = vadd.f32 %v4601, %v4642
        %v4689 = vadd.f32 %v4602, %v4681
        %v4690 = vadd.f32 %v4603, %v4683
        %v4691 = vsub.f32 0.0, %v4687
        %v4692 = vsub.f32 0.0, %v4688
        %v4693 = vsub.f32 0.0, %v4689
        %v4694 = vmul.f32 %v4691, 1.442695
        %v4695 = vpow.pop %v4694
        %v4696 = vmul.f32 %v4692, 1.442695
        %v4697 = vpow.pop %v4696
        %v4698 = vmul.f32 %v4693, 1.442695
        %v4699 = vpow.pop %v4698
        %v4700 = vadd.f32 %v4695, 1.0
        %v4701 = vadd.f32 %v4697, 1.0
        %v4702 = vadd.f32 %v4699, 1.0
        %v4703 = vrcp.pop %v4700
        %v4704 = vrcp.pop %v4701
        %v4705 = vrcp.pop %v4702
        %v4706 = vtanh.pop %v4690
        %v4707 = vmul.f32 %v4704, %v4595
        %v4708 = vmul.f32 %v4703, %v4706
        %v4709 = vadd.f32 %v4707, %v4708
        %v4710 = vtanh.pop %v4709
        %v4711 = vmul.f32 %v4705, %v4710
        %s4712 = scalar_lea.vmem %s463, 48 [#allocation16]
        %4713 = vst [vmem:[%s4712] sm:$0xff] %v4711
        %v4714 = vld [vmem:[%s1708] sm:$0xff]
        %v4715 = vld [vmem:[%s1708 + $0x8] sm:$0xff]
        %v4716 = vld [vmem:[%s1708 + $0x10] sm:$0xff]
        %v4717 = vld [vmem:[%s1708 + $0x18] sm:$0xff]
        %v4718 = vpack.c.bf16 %v4711, %v4711
        %4719 = vmatprep.subr.bf16.mxu0 %v3859
        %4720 = vmatpush1.bf16.msra.mxu0 %v3858
        %4721 = vmatprep.subr.bf16.mxu0 %v3863
        %4722 = vmatpush1.bf16.msra.mxu0 %v3862
        %4723 = vmatprep.subr.bf16.mxu0 %v3867
        %4724 = vmatpush1.bf16.msra.mxu0 %v3866
        %4725 = vmatprep.subr.bf16.mxu0 %v3871
        %4726 = vmatpush1.bf16.msra.mxu0 %v3870
        %4727 = vmatprep.subr.bf16.mxu0 %v3875
        %4728 = vmatpush1.bf16.msra.mxu0 %v3874
        %4729 = vmatprep.subr.bf16.mxu0 %v3879
        %4730 = vmatpush1.bf16.msra.mxu0 %v3878
        %4731 = vmatprep.subr.bf16.mxu0 %v3883
        %4732 = vmatpush1.bf16.msra.mxu0 %v3882
        %4733 = vmatprep.subr.bf16.mxu0 %v3887
        %4734 = vmatpush1.bf16.msra.mxu0 %v3886
        %4735 = vmatprep.subr.bf16.mxu0 0
        %4736 = vmatpush1.bf16.msra.mxu0 0
        %4737 = vmatprep.subr.bf16.mxu0 0
        %4738 = vmatpush1.bf16.msra.mxu0 0
        %4739 = vmatprep.subr.bf16.mxu0 0
        %4740 = vmatpush1.bf16.msra.mxu0 0
        %4741 = vmatprep.subr.bf16.mxu0 0
        %4742 = vmatpush1.bf16.msra.mxu0 0
        %4743 = vmatprep.subr.bf16.mxu0 0
        %4744 = vmatpush1.bf16.msra.mxu0 0
        %4745 = vmatprep.subr.bf16.mxu0 0
        %4746 = vmatpush1.bf16.msra.mxu0 0
        %4747 = vmatprep.subr.bf16.mxu0 0
        %4748 = vmatpush1.bf16.msra.mxu0 0
        %4749 = vmatprep.subr.bf16.mxu0 0
        %4750 = vmatpush1.bf16.msra.mxu0 0
        %4751 = vmatprep.mubr.bf16.mxu0 0
        %4752 = vmatmul.mubr.bf16.gmra.mrb[0].mxu0 %v4718
        %v4753 = vpop.f32.mrb[0].mxu0
        %v4754 = vadd.f32 0.0, %v4753
        %v4755 = vpop.f32.mrb[0].mxu0
        %v4756 = vadd.f32 0.0, %v4755
        %v4757 = vpop.f32.mrb[0].mxu0
        %v4758 = vpop.f32.mrb[0].mxu0
        %4759 = vdwg.mxu0
        %4760 = vmatprep.subr.bf16.mxu0 %v3861
        %4761 = vmatpush1.bf16.msra.mxu0 %v3860
        %4762 = vmatprep.subr.bf16.mxu0 %v3865
        %4763 = vmatpush1.bf16.msra.mxu0 %v3864
        %4764 = vmatprep.subr.bf16.mxu0 %v3869
        %4765 = vmatpush1.bf16.msra.mxu0 %v3868
        %4766 = vmatprep.subr.bf16.mxu0 %v3873
        %4767 = vmatpush1.bf16.msra.mxu0 %v3872
        %4768 = vmatprep.subr.bf16.mxu0 %v3877
        %4769 = vmatpush1.bf16.msra.mxu0 %v3876
        %4770 = vmatprep.subr.bf16.mxu0 %v3881
        %4771 = vmatpush1.bf16.msra.mxu0 %v3880
        %4772 = vmatprep.subr.bf16.mxu0 %v3885
        %4773 = vmatpush1.bf16.msra.mxu0 %v3884
        %4774 = vmatprep.subr.bf16.mxu0 %v3889
        %4775 = vmatpush1.bf16.msra.mxu0 %v3888
        %4776 = vmatprep.subr.bf16.mxu0 0
        %4777 = vmatpush1.bf16.msra.mxu0 0
        %4778 = vmatprep.subr.bf16.mxu0 0
        %4779 = vmatpush1.bf16.msra.mxu0 0
        %4780 = vmatprep.subr.bf16.mxu0 0
        %4781 = vmatpush1.bf16.msra.mxu0 0
        %4782 = vmatprep.subr.bf16.mxu0 0
        %4783 = vmatpush1.bf16.msra.mxu0 0
        %4784 = vmatprep.subr.bf16.mxu0 0
        %4785 = vmatpush1.bf16.msra.mxu0 0
        %4786 = vmatprep.subr.bf16.mxu0 0
        %4787 = vmatpush1.bf16.msra.mxu0 0
        %4788 = vmatprep.subr.bf16.mxu0 0
        %4789 = vmatpush1.bf16.msra.mxu0 0
        %4790 = vmatprep.subr.bf16.mxu0 0
        %4791 = vmatpush1.bf16.msra.mxu0 0
        %4792 = vmatprep.mubr.bf16.mxu0 0
        %4793 = vmatmul.mubr.bf16.gmra.mrb[0].mxu0 %v4718
        %v4794 = vpop.f32.mrb[0].mxu0
        %v4795 = vadd.f32 0.0, %v4794
        %v4796 = vpop.f32.mrb[0].mxu0
        %v4797 = vadd.f32 0.0, %v4796
        %v4798 = vpop.f32.mrb[0].mxu0
        %v4799 = vpop.f32.mrb[0].mxu0
        %4800 = vdwg.mxu0
        %v4801 = vadd.f32 %v4714, %v4754
        %v4802 = vadd.f32 %v4715, %v4756
        %v4803 = vadd.f32 %v4716, %v4795
        %v4804 = vadd.f32 %v4717, %v4797
        %v4805 = vsub.f32 0.0, %v4801
        %v4806 = vsub.f32 0.0, %v4802
        %v4807 = vsub.f32 0.0, %v4803
        %v4808 = vmul.f32 %v4805, 1.442695
        %v4809 = vpow.pop %v4808
        %v4810 = vmul.f32 %v4806, 1.442695
        %v4811 = vpow.pop %v4810
        %v4812 = vmul.f32 %v4807, 1.442695
        %v4813 = vpow.pop %v4812
        %v4814 = vadd.f32 %v4809, 1.0
        %v4815 = vadd.f32 %v4811, 1.0
        %v4816 = vadd.f32 %v4813, 1.0
        %v4817 = vrcp.pop %v4814
        %v4818 = vrcp.pop %v4815
        %v4819 = vrcp.pop %v4816
        %v4820 = vtanh.pop %v4804
        %v4821 = vmul.f32 %v4818, %v4709
        %v4822 = vmul.f32 %v4817, %v4820
        %v4823 = vadd.f32 %v4821, %v4822
        %v4824 = vtanh.pop %v4823
        %v4825 = vmul.f32 %v4819, %v4824
        %s4826 = scalar_lea.vmem %s463, 56 [#allocation16]
        %4827 = vst [vmem:[%s4826] sm:$0xff] %v4825
        %s4828 = sand.u32 %s253, 1
        %s4829 = scalar_lea.sflag [#allocation6], %s4828
        %s4830 = sand.u32 %s253, 1
        %s4831 = smul.addr %s4830, 64
        %s4832 = scalar_lea.vmem [#allocation16], %s4831
        // Predicated region
        $region89: #{tpu_custom_call.1} parent=59 // pred_check
          %p4833 = pneg %p263
        $region90: #{tpu_custom_call.1} parent=59 // pred_check_branch
          %4835 = sbr.rel (%p4833) target = $region92
        $region91: #{tpu_custom_call.1} parent=59 // pred_region
          %s4837 = ssub.s32 1024, 1024
          %4838 = vsyncadd %s4829, %s4837
          %s4839 = smul.addr %s30, 128
          %s4840 = scalar_lea.hbm %s10, %s4839
          %s4841 = sshll.u32 %s4832, 4
          %s4842 = int_to_ptr.vmem [resolvable:$true] %s4841
          %4847 = dma.vmem_to_hbm [thread:$0]  %s4842, 1024, %s4840, %s4829, 128, 256, 8
        $region92: #{tpu_custom_call.1} parent=59 // pred_fallthru
          _
      $region60: #{tpu_custom_call.1} parent=5 // pred_fallthru
        _
      %p4848 = scmp.le.s32.totalorder 2, %s25
      // Predicated region
      $region93: #{tpu_custom_call.1} parent=5 // pred_check
        %p4849 = pneg %p4848
      $region94: #{tpu_custom_call.1} parent=5 // pred_check_branch
        %4851 = sbr.rel (%p4849) target = $region96
      $region95: #{tpu_custom_call.1} parent=5 // pred_region
        %s4852 = ssub.s32 %s25, 2
        // Predicated region
        $region97: #{tpu_custom_call.1} parent=95 // pred_check
          %p4853 = pneg %p269
        $region98: #{tpu_custom_call.1} parent=95 // pred_check_branch
          %4855 = sbr.rel (%p4853) target = $region100
        $region99: #{tpu_custom_call.1} parent=95 // pred_region
          %s4856 = sand.u32 %s254, 1
          %s4857 = scalar_lea.sflag [#allocation6], %s4856
          %s4858 = sand.u32 %s254, 1
          %s4859 = smul.addr %s4858, 64
          %s4860 = scalar_lea.vmem [#allocation16], %s4859
          %4861 = dma.done %s4857, 1024
        $region100: #{tpu_custom_call.1} parent=95 // pred_fallthru
          _
      $region96: #{tpu_custom_call.1} parent=5 // pred_fallthru
        _
    $region6: #{tpu_custom_call.1} parent=1 // loop_footer
      %s29 = sadd.s32 1, %s25
    $region7: #{tpu_custom_call.1} parent=1 // loop_footer_branch
      %24 = sbr.rel target = $region3
    $region8: #{tpu_custom_call.1} parent=1 // loop_exit
      _
    %4862 = vsyncpa [#allocation5], 1
    %s4863 = scalar_lea.sflag [#allocation5], 1
    %4864 = vsyncpa %s4863, 1
    %4865 = vsyncpa [#allocation8], 1
    %4866 = vsyncpa [#allocation11], 1
    %4867 = vsyncpa [#allocation14], 1
    %4868 = vsyncpa [#allocation6], 1
    %s4869 = scalar_lea.sflag [#allocation6], 1
    %4870 = vsyncpa %s4869, 1

</llo_original>
